<compile_context>
chip_gen: v6e
topology: v6e:2x2x1
jax: 0.10.0
libtpu: 0.0.40
codegen_flags: <defaults>
</compile_context>

<pallas_src>
import numpy as np

import jax
import jax.numpy as jnp
from jax import lax
from jax.experimental import pallas as pl
from jax.experimental.pallas import tpu as pltpu


# ---------------------------------------------------------------------------
# In-kernel helpers (traced inside the Pallas kernel)
# ---------------------------------------------------------------------------

def _pool_rows(y):
    """Max over adjacent row pairs: [H, K] -> [H//2, K] via even/odd selection."""
    H = y.shape[0]
    i = lax.broadcasted_iota(jnp.int32, (H // 2, H), 0)
    h = lax.broadcasted_iota(jnp.int32, (H // 2, H), 1)
    even = jnp.where(h == 2 * i, 1.0, 0.0).astype(jnp.float32)
    odd = jnp.where(h == 2 * i + 1, 1.0, 0.0).astype(jnp.float32)
    return jnp.maximum(
        jnp.dot(even, y, preferred_element_type=jnp.float32),
        jnp.dot(odd, y, preferred_element_type=jnp.float32))


def _pool_cols(y):
    """Max over adjacent column pairs: [H, K] -> [H, K//2].

    Columns are packed as contiguous per-channel blocks of even width, so the
    even/odd column of output column c is simply column 2c / 2c+1.
    """
    K = y.shape[1]
    r = lax.broadcasted_iota(jnp.int32, (K, K // 2), 0)
    c = lax.broadcasted_iota(jnp.int32, (K, K // 2), 1)
    even = jnp.where(r == 2 * c, 1.0, 0.0).astype(jnp.float32)
    odd = jnp.where(r == 2 * c + 1, 1.0, 0.0).astype(jnp.float32)
    return jnp.maximum(
        jnp.dot(y, even, preferred_element_type=jnp.float32),
        jnp.dot(y, odd, preferred_element_type=jnp.float32))


# ---------------------------------------------------------------------------
# The fused LeNet kernel: one grid step == one sample
# ---------------------------------------------------------------------------

def _lenet_kernel(x_ref,               # [1, 30, 30]  padded input (sample n)
                  w1c_ref, b1c_ref,    # [3, 30, 168], [1, 168]
                  w2c_ref, b2c_ref,    # [5, 84, 160], [1, 160]
                  wf1_ref, bf1_ref,    # [5, 80, 120], [1, 120]
                  wf2_ref, bf2_ref,    # [120, 84],    [1, 84]
                  wf3_ref, bf3_ref,    # [84, 10],     [1, 10]
                  o_ref):              # [1, 1, 10]
    f32 = jnp.float32
    xp = x_ref[0]                                            # [30, 30]

    # --- conv1: 3x3, 1->6, pad pre-applied.  Toeplitz-packed matmuls.
    # Y1[i, c*28 + j] = conv1[c, i, j]
    y1 = jnp.dot(xp[0:28, :], w1c_ref[0], preferred_element_type=f32)
    for kh in (1, 2):
        y1 = y1 + jnp.dot(xp[kh:kh + 28, :], w1c_ref[kh],
                          preferred_element_type=f32)
    y1 = y1 + b1c_ref[...]                                   # [28, 168]

    # --- maxpool 2x2 (fused): P1[i, c*14 + j] = pool1[c, i, j]
    p1 = _pool_cols(_pool_rows(y1))                          # [14, 84]

    # --- conv2: 5x5, 6->16.  Y2[i, oc*10 + j] = conv2[oc, i, j]
    y2 = jnp.dot(p1[0:10, :], w2c_ref[0], preferred_element_type=f32)
    for kh in (1, 2, 3, 4):
        y2 = y2 + jnp.dot(p1[kh:kh + 10, :], w2c_ref[kh],
                          preferred_element_type=f32)
    y2 = y2 + b2c_ref[...]                                   # [10, 160]

    # --- maxpool 2x2 (fused): P2[i, oc*5 + j] = pool2[oc, i, j]
    p2 = _pool_cols(_pool_rows(y2))                          # [5, 80]

    # --- fc1: the torch NCHW flatten (oc*25 + i*5 + j) is folded into the
    #     packed fc1 weight, so it is just a sum of 5 row-matmuls.
    h = bf1_ref[...]                                         # [1, 120]
    for i in range(5):
        h = h + jnp.dot(p2[i:i + 1, :], wf1_ref[i], preferred_element_type=f32)

    # --- fc2, fc3
    h = jnp.dot(h, wf2_ref[...], preferred_element_type=f32) + bf2_ref[...]
    out = jnp.dot(h, wf3_ref[...], preferred_element_type=f32) + bf3_ref[...]

    o_ref[0] = out                                           # [1, 10]


# ---------------------------------------------------------------------------
# One-time parameter packing (host-side; NOT part of the traced forward)
# ---------------------------------------------------------------------------

def pack_params(p):
    w1 = np.asarray(p["conv1_w"], np.float32)   # [6, 1, 3, 3]
    b1 = np.asarray(p["conv1_b"], np.float32)   # [6]
    w2 = np.asarray(p["conv2_w"], np.float32)   # [16, 6, 5, 5]
    b2 = np.asarray(p["conv2_b"], np.float32)   # [16]
    f1w = np.asarray(p["fc1_w"], np.float32)    # [120, 400]
    f1b = np.asarray(p["fc1_b"], np.float32)
    f2w = np.asarray(p["fc2_w"], np.float32)    # [84, 120]
    f2b = np.asarray(p["fc2_b"], np.float32)
    f3w = np.asarray(p["fc3_w"], np.float32)    # [10, 84]
    f3b = np.asarray(p["fc3_b"], np.float32)

    # conv1 Toeplitz pack: W1[kh][j+kw, c*28 + j] = w1[c, 0, kh, kw]
    W1 = np.zeros((3, 30, 6 * 28), np.float32)
    j = np.arange(28)
    for kh in range(3):
        for c in range(6):
            for kw in range(3):
                W1[kh, j + kw, c * 28 + j] = w1[c, 0, kh, kw]
    B1 = np.repeat(b1, 28)[None, :]                           # [1, 168]

    # conv2 Toeplitz pack: W2[kh][ic*14 + j+kw, oc*10 + j] = w2[oc, ic, kh, kw]
    W2 = np.zeros((5, 6 * 14, 16 * 10), np.float32)
    j = np.arange(10)
    for kh in range(5):
        for ic in range(6):
            for kw in range(5):
                for oc in range(16):
                    W2[kh, ic * 14 + j + kw, oc * 10 + j] = w2[oc, ic, kh, kw]
    B2 = np.repeat(b2, 10)[None, :]                           # [1, 160]

    # fc1 pack: rows ordered like P2 columns (oc*5 + j), one slab per row i;
    # this bakes the torch NCHW flatten (oc*25 + i*5 + j) into the weights.
    WF1 = np.zeros((5, 80, 120), np.float32)
    for i2 in range(5):
        for oc in range(16):
            for j2 in range(5):
                WF1[i2, oc * 5 + j2, :] = f1w[:, oc * 25 + i2 * 5 + j2]

    return {
        "w1c": jnp.asarray(W1), "b1c": jnp.asarray(B1),
        "w2c": jnp.asarray(W2), "b2c": jnp.asarray(B2),
        "wf1": jnp.asarray(WF1), "bf1": jnp.asarray(f1b[None, :]),
        "wf2": jnp.asarray(f2w.T), "bf2": jnp.asarray(f2b[None, :]),
        "wf3": jnp.asarray(f3w.T), "bf3": jnp.asarray(f3b[None, :]),
    }


# ---------------------------------------------------------------------------
# Forward pass: one fused pallas_call, grid over batch
# ---------------------------------------------------------------------------

def lenet_forward(x_nchw, packed):
    N = x_nchw.shape[0]
    # pad=1 for conv1, drop the singleton channel dim -> [N, 30, 30]
    xp = jnp.pad(x_nchw[:, 0, :, :], ((0, 0), (1, 1), (1, 1)))

    out3 = pl.pallas_call(
        _lenet_kernel,
        out_shape=jax.ShapeDtypeStruct((N, 1, 10), jnp.float32),
        grid=(N,),
        in_specs=[
            pl.BlockSpec((1, 30, 30), lambda n: (n, 0, 0)),      # x (per sample)
            pl.BlockSpec((3, 30, 168), lambda n: (0, 0, 0)),     # conv1 packed
            pl.BlockSpec((1, 168), lambda n: (0, 0)),
            pl.BlockSpec((5, 84, 160), lambda n: (0, 0, 0)),     # conv2 packed
            pl.BlockSpec((1, 160), lambda n: (0, 0)),
            pl.BlockSpec((5, 80, 120), lambda n: (0, 0, 0)),     # fc1 packed
            pl.BlockSpec((1, 120), lambda n: (0, 0)),
            pl.BlockSpec((120, 84), lambda n: (0, 0)),           # fc2
            pl.BlockSpec((1, 84), lambda n: (0, 0)),
            pl.BlockSpec((84, 10), lambda n: (0, 0)),            # fc3
            pl.BlockSpec((1, 10), lambda n: (0, 0)),
        ],
        out_specs=pl.BlockSpec((1, 1, 10), lambda n: (n, 0, 0)),
        compiler_params=pltpu.CompilerParams(
            dimension_semantics=("parallel",)),
    )(xp,
      packed["w1c"], packed["b1c"],
      packed["w2c"], packed["b2c"],
      packed["wf1"], packed["bf1"],
      packed["wf2"], packed["bf2"],
      packed["wf3"], packed["bf3"])
    return out3.reshape(N, 10)


# ---------------------------------------------------------------------------
# Pure-JAX reference (for the correctness check)
# ---------------------------------------------------------------------------

def lenet_reference(x_nchw, p):
    hp = jax.lax.Precision.HIGHEST

    def conv(x, w, b, pad):
        dn = jax.lax.conv_dimension_numbers(x.shape, w.shape,
                                            ("NCHW", "OIHW", "NCHW"))
        y = jax.lax.conv_general_dilated(x, w, (1, 1), ((pad, pad), (pad, pad)),
                                         dimension_numbers=dn, precision=hp)
        return y + b[None, :, None, None]

    def pool(x):
        return jax.lax.reduce_window(x, -jnp.inf, jax.lax.max,
                                     (1, 1, 2, 2), (1, 1, 2, 2), "VALID")

    x = pool(conv(x_nchw, p["conv1_w"], p["conv1_b"], 1))
    x = pool(conv(x, p["conv2_w"], p["conv2_b"], 0))
    x = x.reshape(x.shape[0], -1)
    x = jnp.dot(x, p["fc1_w"].T, precision=hp) + p["fc1_b"]
    x = jnp.dot(x, p["fc2_w"].T, precision=hp) + p["fc2_b"]
    x = jnp.dot(x, p["fc3_w"].T, precision=hp) + p["fc3_b"]
    return x


# ---------------------------------------------------------------------------
# Deterministic parameter init (PyTorch-default-style uniform bounds)
# ---------------------------------------------------------------------------

def init_params(key):
    def uniform(k, shape, fan_in):
        bound = 1.0 / (float(fan_in) ** 0.5)
        return jax.random.uniform(k, shape, jnp.float32, -bound, bound)

    ks = jax.random.split(key, 10)
    return {
        "conv1_w": uniform(ks[0], (6, 1, 3, 3), 1 * 3 * 3),
        "conv1_b": uniform(ks[1], (6,), 1 * 3 * 3),
        "conv2_w": uniform(ks[2], (16, 6, 5, 5), 6 * 5 * 5),
        "conv2_b": uniform(ks[3], (16,), 6 * 5 * 5),
        "fc1_w": uniform(ks[4], (120, 400), 400),
        "fc1_b": uniform(ks[5], (120,), 400),
        "fc2_w": uniform(ks[6], (84, 120), 120),
        "fc2_b": uniform(ks[7], (84,), 120),
        "fc3_w": uniform(ks[8], (10, 84), 84),
        "fc3_b": uniform(ks[9], (84,) if False else (10,), 84),
    }


if __name__ == "__main__":
    key = jax.random.PRNGKey(0)
    k_x, k_p = jax.random.split(key)
    # batch=2, 1 channel, 28x28 (the only spatial size consistent with the
    # Linear(400, 120) flatten in the module).
    x = jax.random.normal(k_x, (2, 1, 28, 28), dtype=jnp.float32)
    params = init_params(k_p)
    packed = pack_params(params)          # one-time weight packing (host side)

    out = jax.jit(lenet_forward)(x, packed)
    out = jax.block_until_ready(out)
    assert out.shape == (2, 10) and out.dtype == jnp.float32

    ref = jax.jit(lenet_reference)(x, params)
    ref = jax.block_until_ready(ref)
    assert jnp.allclose(out, ref, rtol=2e-2, atol=2e-2), "mismatch vs reference"

    print("KERNEL_OK")
</pallas_src>

<mosaic_0001>
module attributes {stable_mosaic.version = 11 : i64} {
  func.func @_lenet_kernel(%arg0: i32, %arg1: memref<1x30x30xf32, #tpu.memory_space<vmem>>, %arg2: memref<3x30x168xf32, #tpu.memory_space<vmem>>, %arg3: memref<1x168xf32, #tpu.memory_space<vmem>>, %arg4: memref<5x84x160xf32, #tpu.memory_space<vmem>>, %arg5: memref<1x160xf32, #tpu.memory_space<vmem>>, %arg6: memref<5x80x120xf32, #tpu.memory_space<vmem>>, %arg7: memref<1x120xf32, #tpu.memory_space<vmem>>, %arg8: memref<120x84xf32, #tpu.memory_space<vmem>>, %arg9: memref<1x84xf32, #tpu.memory_space<vmem>>, %arg10: memref<84x10xf32, #tpu.memory_space<vmem>>, %arg11: memref<1x10xf32, #tpu.memory_space<vmem>>, %arg12: memref<1x1x10xf32, #tpu.memory_space<vmem>>) attributes {dimension_semantics = [#tpu.dimension_semantics<parallel>], iteration_bounds = array<i64: 2>, scalar_prefetch = 0 : i64, scratch_operands = 0 : i64, tpu.core_type = #tpu.core_type<tc>, window_params = [{transform_indices = @transform_0, window_bounds = array<i64: 1, 30, 30>}, {pipeline_mode = #tpu.pipeline_mode<synchronous>, transform_indices = @transform_1, window_bounds = array<i64: 3, 30, 168>}, {pipeline_mode = #tpu.pipeline_mode<synchronous>, transform_indices = @transform_2, window_bounds = array<i64: 1, 168>}, {pipeline_mode = #tpu.pipeline_mode<synchronous>, transform_indices = @transform_3, window_bounds = array<i64: 5, 84, 160>}, {pipeline_mode = #tpu.pipeline_mode<synchronous>, transform_indices = @transform_4, window_bounds = array<i64: 1, 160>}, {pipeline_mode = #tpu.pipeline_mode<synchronous>, transform_indices = @transform_5, window_bounds = array<i64: 5, 80, 120>}, {pipeline_mode = #tpu.pipeline_mode<synchronous>, transform_indices = @transform_6, window_bounds = array<i64: 1, 120>}, {pipeline_mode = #tpu.pipeline_mode<synchronous>, transform_indices = @transform_7, window_bounds = array<i64: 120, 84>}, {pipeline_mode = #tpu.pipeline_mode<synchronous>, transform_indices = @transform_8, window_bounds = array<i64: 1, 84>}, {pipeline_mode = #tpu.pipeline_mode<synchronous>, transform_indices = @transform_9, window_bounds = array<i64: 84, 10>}, {pipeline_mode = #tpu.pipeline_mode<synchronous>, transform_indices = @transform_10, window_bounds = array<i64: 1, 10>}, {transform_indices = @transform_11, window_bounds = array<i64: 1, 1, 10>}]} {
    %c0 = arith.constant 0 : index
    %c0_0 = arith.constant 0 : index
    %c0_1 = arith.constant 0 : index
    %0 = vector.load %arg1[%c0, %c0_0, %c0_1] : memref<1x30x30xf32, #tpu.memory_space<vmem>>, vector<1x30x30xf32>
    %1 = vector.shape_cast %0 : vector<1x30x30xf32> to vector<30x30xf32>
    %2 = vector.extract_strided_slice %1 {offsets = [0, 0], sizes = [28, 30], strides = [1, 1]} : vector<30x30xf32> to vector<28x30xf32>
    %c0_2 = arith.constant 0 : index
    %c0_3 = arith.constant 0 : index
    %c0_4 = arith.constant 0 : index
    %3 = vector.load %arg2[%c0_2, %c0_3, %c0_4] : memref<3x30x168xf32, #tpu.memory_space<vmem>>, vector<1x30x168xf32>
    %4 = vector.shape_cast %3 : vector<1x30x168xf32> to vector<30x168xf32>
    %cst = arith.constant dense<0.000000e+00> : vector<28x168xf32>
    %5 = tpu.matmul %2, %4, %cst {dimension_numbers = #tpu.dot_dimension_numbers<[1], [0], [0], [1], [0, 0, 1, 1], [], []>} : vector<28x30xf32>, vector<30x168xf32>, vector<28x168xf32> -> vector<28x168xf32>
    %6 = vector.extract_strided_slice %1 {offsets = [1, 0], sizes = [28, 30], strides = [1, 1]} : vector<30x30xf32> to vector<28x30xf32>
    %c1 = arith.constant 1 : index
    %c0_5 = arith.constant 0 : index
    %c0_6 = arith.constant 0 : index
    %7 = vector.load %arg2[%c1, %c0_5, %c0_6] : memref<3x30x168xf32, #tpu.memory_space<vmem>>, vector<1x30x168xf32>
    %8 = vector.shape_cast %7 : vector<1x30x168xf32> to vector<30x168xf32>
    %cst_7 = arith.constant dense<0.000000e+00> : vector<28x168xf32>
    %9 = tpu.matmul %6, %8, %cst_7 {dimension_numbers = #tpu.dot_dimension_numbers<[1], [0], [0], [1], [0, 0, 1, 1], [], []>} : vector<28x30xf32>, vector<30x168xf32>, vector<28x168xf32> -> vector<28x168xf32>
    %10 = arith.addf %5, %9 : vector<28x168xf32>
    %11 = vector.extract_strided_slice %1 {offsets = [2, 0], sizes = [28, 30], strides = [1, 1]} : vector<30x30xf32> to vector<28x30xf32>
    %c2 = arith.constant 2 : index
    %c0_8 = arith.constant 0 : index
    %c0_9 = arith.constant 0 : index
    %12 = vector.load %arg2[%c2, %c0_8, %c0_9] : memref<3x30x168xf32, #tpu.memory_space<vmem>>, vector<1x30x168xf32>
    %13 = vector.shape_cast %12 : vector<1x30x168xf32> to vector<30x168xf32>
    %cst_10 = arith.constant dense<0.000000e+00> : vector<28x168xf32>
    %14 = tpu.matmul %11, %13, %cst_10 {dimension_numbers = #tpu.dot_dimension_numbers<[1], [0], [0], [1], [0, 0, 1, 1], [], []>} : vector<28x30xf32>, vector<30x168xf32>, vector<28x168xf32> -> vector<28x168xf32>
    %15 = arith.addf %10, %14 : vector<28x168xf32>
    %c0_11 = arith.constant 0 : index
    %c0_12 = arith.constant 0 : index
    %16 = vector.load %arg3[%c0_11, %c0_12] : memref<1x168xf32, #tpu.memory_space<vmem>>, vector<1x168xf32>
    %17 = vector.broadcast %16 : vector<1x168xf32> to vector<28x168xf32>
    %18 = arith.addf %15, %17 : vector<28x168xf32>
    %19 = tpu.iota {dimensions = array<i32: 0>} : vector<14x28xi32>
    %20 = tpu.iota {dimensions = array<i32: 1>} : vector<14x28xi32>
    %c2_i32 = arith.constant 2 : i32
    %21 = vector.broadcast %c2_i32 : i32 to vector<14x28xi32>
    %22 = arith.muli %21, %19 : vector<14x28xi32>
    %23 = arith.cmpi eq, %20, %22 : vector<14x28xi32>
    %cst_13 = arith.constant 1.000000e+00 : f32
    %cst_14 = arith.constant 0.000000e+00 : f32
    %24 = vector.broadcast %cst_13 : f32 to vector<14x28xf32>
    %25 = vector.broadcast %cst_14 : f32 to vector<14x28xf32>
    %26 = arith.select %23, %24, %25 : vector<14x28xi1>, vector<14x28xf32>
    %c2_i32_15 = arith.constant 2 : i32
    %27 = vector.broadcast %c2_i32_15 : i32 to vector<14x28xi32>
    %28 = arith.muli %27, %19 : vector<14x28xi32>
    %c1_i32 = arith.constant 1 : i32
    %29 = vector.broadcast %c1_i32 : i32 to vector<14x28xi32>
    %30 = arith.addi %28, %29 : vector<14x28xi32>
    %31 = arith.cmpi eq, %20, %30 : vector<14x28xi32>
    %cst_16 = arith.constant 1.000000e+00 : f32
    %cst_17 = arith.constant 0.000000e+00 : f32
    %32 = vector.broadcast %cst_16 : f32 to vector<14x28xf32>
    %33 = vector.broadcast %cst_17 : f32 to vector<14x28xf32>
    %34 = arith.select %31, %32, %33 : vector<14x28xi1>, vector<14x28xf32>
    %cst_18 = arith.constant dense<0.000000e+00> : vector<14x168xf32>
    %35 = tpu.matmul %26, %18, %cst_18 {dimension_numbers = #tpu.dot_dimension_numbers<[1], [0], [0], [1], [0, 0, 1, 1], [], []>} : vector<14x28xf32>, vector<28x168xf32>, vector<14x168xf32> -> vector<14x168xf32>
    %cst_19 = arith.constant dense<0.000000e+00> : vector<14x168xf32>
    %36 = tpu.matmul %34, %18, %cst_19 {dimension_numbers = #tpu.dot_dimension_numbers<[1], [0], [0], [1], [0, 0, 1, 1], [], []>} : vector<14x28xf32>, vector<28x168xf32>, vector<14x168xf32> -> vector<14x168xf32>
    %37 = arith.maximumf %35, %36 : vector<14x168xf32>
    %38 = tpu.iota {dimensions = array<i32: 0>} : vector<168x84xi32>
    %39 = tpu.iota {dimensions = array<i32: 1>} : vector<168x84xi32>
    %c2_i32_20 = arith.constant 2 : i32
    %40 = vector.broadcast %c2_i32_20 : i32 to vector<168x84xi32>
    %41 = arith.muli %40, %39 : vector<168x84xi32>
    %42 = arith.cmpi eq, %38, %41 : vector<168x84xi32>
    %cst_21 = arith.constant 1.000000e+00 : f32
    %cst_22 = arith.constant 0.000000e+00 : f32
    %43 = vector.broadcast %cst_21 : f32 to vector<168x84xf32>
    %44 = vector.broadcast %cst_22 : f32 to vector<168x84xf32>
    %45 = arith.select %42, %43, %44 : vector<168x84xi1>, vector<168x84xf32>
    %c2_i32_23 = arith.constant 2 : i32
    %46 = vector.broadcast %c2_i32_23 : i32 to vector<168x84xi32>
    %47 = arith.muli %46, %39 : vector<168x84xi32>
    %c1_i32_24 = arith.constant 1 : i32
    %48 = vector.broadcast %c1_i32_24 : i32 to vector<168x84xi32>
    %49 = arith.addi %47, %48 : vector<168x84xi32>
    %50 = arith.cmpi eq, %38, %49 : vector<168x84xi32>
    %cst_25 = arith.constant 1.000000e+00 : f32
    %cst_26 = arith.constant 0.000000e+00 : f32
    %51 = vector.broadcast %cst_25 : f32 to vector<168x84xf32>
    %52 = vector.broadcast %cst_26 : f32 to vector<168x84xf32>
    %53 = arith.select %50, %51, %52 : vector<168x84xi1>, vector<168x84xf32>
    %cst_27 = arith.constant dense<0.000000e+00> : vector<14x84xf32>
    %54 = tpu.matmul %37, %45, %cst_27 {dimension_numbers = #tpu.dot_dimension_numbers<[1], [0], [0], [1], [0, 0, 1, 1], [], []>} : vector<14x168xf32>, vector<168x84xf32>, vector<14x84xf32> -> vector<14x84xf32>
    %cst_28 = arith.constant dense<0.000000e+00> : vector<14x84xf32>
    %55 = tpu.matmul %37, %53, %cst_28 {dimension_numbers = #tpu.dot_dimension_numbers<[1], [0], [0], [1], [0, 0, 1, 1], [], []>} : vector<14x168xf32>, vector<168x84xf32>, vector<14x84xf32> -> vector<14x84xf32>
    %56 = arith.maximumf %54, %55 : vector<14x84xf32>
    %57 = vector.extract_strided_slice %56 {offsets = [0, 0], sizes = [10, 84], strides = [1, 1]} : vector<14x84xf32> to vector<10x84xf32>
    %c0_29 = arith.constant 0 : index
    %c0_30 = arith.constant 0 : index
    %c0_31 = arith.constant 0 : index
    %58 = vector.load %arg4[%c0_29, %c0_30, %c0_31] : memref<5x84x160xf32, #tpu.memory_space<vmem>>, vector<1x84x160xf32>
    %59 = vector.shape_cast %58 : vector<1x84x160xf32> to vector<84x160xf32>
    %cst_32 = arith.constant dense<0.000000e+00> : vector<10x160xf32>
    %60 = tpu.matmul %57, %59, %cst_32 {dimension_numbers = #tpu.dot_dimension_numbers<[1], [0], [0], [1], [0, 0, 1, 1], [], []>} : vector<10x84xf32>, vector<84x160xf32>, vector<10x160xf32> -> vector<10x160xf32>
    %61 = vector.extract_strided_slice %56 {offsets = [1, 0], sizes = [10, 84], strides = [1, 1]} : vector<14x84xf32> to vector<10x84xf32>
    %c1_33 = arith.constant 1 : index
    %c0_34 = arith.constant 0 : index
    %c0_35 = arith.constant 0 : index
    %62 = vector.load %arg4[%c1_33, %c0_34, %c0_35] : memref<5x84x160xf32, #tpu.memory_space<vmem>>, vector<1x84x160xf32>
    %63 = vector.shape_cast %62 : vector<1x84x160xf32> to vector<84x160xf32>
    %cst_36 = arith.constant dense<0.000000e+00> : vector<10x160xf32>
    %64 = tpu.matmul %61, %63, %cst_36 {dimension_numbers = #tpu.dot_dimension_numbers<[1], [0], [0], [1], [0, 0, 1, 1], [], []>} : vector<10x84xf32>, vector<84x160xf32>, vector<10x160xf32> -> vector<10x160xf32>
    %65 = arith.addf %60, %64 : vector<10x160xf32>
    %66 = vector.extract_strided_slice %56 {offsets = [2, 0], sizes = [10, 84], strides = [1, 1]} : vector<14x84xf32> to vector<10x84xf32>
    %c2_37 = arith.constant 2 : index
    %c0_38 = arith.constant 0 : index
    %c0_39 = arith.constant 0 : index
    %67 = vector.load %arg4[%c2_37, %c0_38, %c0_39] : memref<5x84x160xf32, #tpu.memory_space<vmem>>, vector<1x84x160xf32>
    %68 = vector.shape_cast %67 : vector<1x84x160xf32> to vector<84x160xf32>
    %cst_40 = arith.constant dense<0.000000e+00> : vector<10x160xf32>
    %69 = tpu.matmul %66, %68, %cst_40 {dimension_numbers = #tpu.dot_dimension_numbers<[1], [0], [0], [1], [0, 0, 1, 1], [], []>} : vector<10x84xf32>, vector<84x160xf32>, vector<10x160xf32> -> vector<10x160xf32>
    %70 = arith.addf %65, %69 : vector<10x160xf32>
    %71 = vector.extract_strided_slice %56 {offsets = [3, 0], sizes = [10, 84], strides = [1, 1]} : vector<14x84xf32> to vector<10x84xf32>
    %c3 = arith.constant 3 : index
    %c0_41 = arith.constant 0 : index
    %c0_42 = arith.constant 0 : index
    %72 = vector.load %arg4[%c3, %c0_41, %c0_42] : memref<5x84x160xf32, #tpu.memory_space<vmem>>, vector<1x84x160xf32>
    %73 = vector.shape_cast %72 : vector<1x84x160xf32> to vector<84x160xf32>
    %cst_43 = arith.constant dense<0.000000e+00> : vector<10x160xf32>
    %74 = tpu.matmul %71, %73, %cst_43 {dimension_numbers = #tpu.dot_dimension_numbers<[1], [0], [0], [1], [0, 0, 1, 1], [], []>} : vector<10x84xf32>, vector<84x160xf32>, vector<10x160xf32> -> vector<10x160xf32>
    %75 = arith.addf %70, %74 : vector<10x160xf32>
    %76 = vector.extract_strided_slice %56 {offsets = [4, 0], sizes = [10, 84], strides = [1, 1]} : vector<14x84xf32> to vector<10x84xf32>
    %c4 = arith.constant 4 : index
    %c0_44 = arith.constant 0 : index
    %c0_45 = arith.constant 0 : index
    %77 = vector.load %arg4[%c4, %c0_44, %c0_45] : memref<5x84x160xf32, #tpu.memory_space<vmem>>, vector<1x84x160xf32>
    %78 = vector.shape_cast %77 : vector<1x84x160xf32> to vector<84x160xf32>
    %cst_46 = arith.constant dense<0.000000e+00> : vector<10x160xf32>
    %79 = tpu.matmul %76, %78, %cst_46 {dimension_numbers = #tpu.dot_dimension_numbers<[1], [0], [0], [1], [0, 0, 1, 1], [], []>} : vector<10x84xf32>, vector<84x160xf32>, vector<10x160xf32> -> vector<10x160xf32>
    %80 = arith.addf %75, %79 : vector<10x160xf32>
    %c0_47 = arith.constant 0 : index
    %c0_48 = arith.constant 0 : index
    %81 = vector.load %arg5[%c0_47, %c0_48] : memref<1x160xf32, #tpu.memory_space<vmem>>, vector<1x160xf32>
    %82 = vector.broadcast %81 : vector<1x160xf32> to vector<10x160xf32>
    %83 = arith.addf %80, %82 : vector<10x160xf32>
    %84 = tpu.iota {dimensions = array<i32: 0>} : vector<5x10xi32>
    %85 = tpu.iota {dimensions = array<i32: 1>} : vector<5x10xi32>
    %c2_i32_49 = arith.constant 2 : i32
    %86 = vector.broadcast %c2_i32_49 : i32 to vector<5x10xi32>
    %87 = arith.muli %86, %84 : vector<5x10xi32>
    %88 = arith.cmpi eq, %85, %87 : vector<5x10xi32>
    %cst_50 = arith.constant 1.000000e+00 : f32
    %cst_51 = arith.constant 0.000000e+00 : f32
    %89 = vector.broadcast %cst_50 : f32 to vector<5x10xf32>
    %90 = vector.broadcast %cst_51 : f32 to vector<5x10xf32>
    %91 = arith.select %88, %89, %90 : vector<5x10xi1>, vector<5x10xf32>
    %c2_i32_52 = arith.constant 2 : i32
    %92 = vector.broadcast %c2_i32_52 : i32 to vector<5x10xi32>
    %93 = arith.muli %92, %84 : vector<5x10xi32>
    %c1_i32_53 = arith.constant 1 : i32
    %94 = vector.broadcast %c1_i32_53 : i32 to vector<5x10xi32>
    %95 = arith.addi %93, %94 : vector<5x10xi32>
    %96 = arith.cmpi eq, %85, %95 : vector<5x10xi32>
    %cst_54 = arith.constant 1.000000e+00 : f32
    %cst_55 = arith.constant 0.000000e+00 : f32
    %97 = vector.broadcast %cst_54 : f32 to vector<5x10xf32>
    %98 = vector.broadcast %cst_55 : f32 to vector<5x10xf32>
    %99 = arith.select %96, %97, %98 : vector<5x10xi1>, vector<5x10xf32>
    %cst_56 = arith.constant dense<0.000000e+00> : vector<5x160xf32>
    %100 = tpu.matmul %91, %83, %cst_56 {dimension_numbers = #tpu.dot_dimension_numbers<[1], [0], [0], [1], [0, 0, 1, 1], [], []>} : vector<5x10xf32>, vector<10x160xf32>, vector<5x160xf32> -> vector<5x160xf32>
    %cst_57 = arith.constant dense<0.000000e+00> : vector<5x160xf32>
    %101 = tpu.matmul %99, %83, %cst_57 {dimension_numbers = #tpu.dot_dimension_numbers<[1], [0], [0], [1], [0, 0, 1, 1], [], []>} : vector<5x10xf32>, vector<10x160xf32>, vector<5x160xf32> -> vector<5x160xf32>
    %102 = arith.maximumf %100, %101 : vector<5x160xf32>
    %103 = tpu.iota {dimensions = array<i32: 0>} : vector<160x80xi32>
    %104 = tpu.iota {dimensions = array<i32: 1>} : vector<160x80xi32>
    %c2_i32_58 = arith.constant 2 : i32
    %105 = vector.broadcast %c2_i32_58 : i32 to vector<160x80xi32>
    %106 = arith.muli %105, %104 : vector<160x80xi32>
    %107 = arith.cmpi eq, %103, %106 : vector<160x80xi32>
    %cst_59 = arith.constant 1.000000e+00 : f32
    %cst_60 = arith.constant 0.000000e+00 : f32
    %108 = vector.broadcast %cst_59 : f32 to vector<160x80xf32>
    %109 = vector.broadcast %cst_60 : f32 to vector<160x80xf32>
    %110 = arith.select %107, %108, %109 : vector<160x80xi1>, vector<160x80xf32>
    %c2_i32_61 = arith.constant 2 : i32
    %111 = vector.broadcast %c2_i32_61 : i32 to vector<160x80xi32>
    %112 = arith.muli %111, %104 : vector<160x80xi32>
    %c1_i32_62 = arith.constant 1 : i32
    %113 = vector.broadcast %c1_i32_62 : i32 to vector<160x80xi32>
    %114 = arith.addi %112, %113 : vector<160x80xi32>
    %115 = arith.cmpi eq, %103, %114 : vector<160x80xi32>
    %cst_63 = arith.constant 1.000000e+00 : f32
    %cst_64 = arith.constant 0.000000e+00 : f32
    %116 = vector.broadcast %cst_63 : f32 to vector<160x80xf32>
    %117 = vector.broadcast %cst_64 : f32 to vector<160x80xf32>
    %118 = arith.select %115, %116, %117 : vector<160x80xi1>, vector<160x80xf32>
    %cst_65 = arith.constant dense<0.000000e+00> : vector<5x80xf32>
    %119 = tpu.matmul %102, %110, %cst_65 {dimension_numbers = #tpu.dot_dimension_numbers<[1], [0], [0], [1], [0, 0, 1, 1], [], []>} : vector<5x160xf32>, vector<160x80xf32>, vector<5x80xf32> -> vector<5x80xf32>
    %cst_66 = arith.constant dense<0.000000e+00> : vector<5x80xf32>
    %120 = tpu.matmul %102, %118, %cst_66 {dimension_numbers = #tpu.dot_dimension_numbers<[1], [0], [0], [1], [0, 0, 1, 1], [], []>} : vector<5x160xf32>, vector<160x80xf32>, vector<5x80xf32> -> vector<5x80xf32>
    %121 = arith.maximumf %119, %120 : vector<5x80xf32>
    %c0_67 = arith.constant 0 : index
    %c0_68 = arith.constant 0 : index
    %122 = vector.load %arg7[%c0_67, %c0_68] : memref<1x120xf32, #tpu.memory_space<vmem>>, vector<1x120xf32>
    %123 = vector.extract_strided_slice %121 {offsets = [0, 0], sizes = [1, 80], strides = [1, 1]} : vector<5x80xf32> to vector<1x80xf32>
    %c0_69 = arith.constant 0 : index
    %c0_70 = arith.constant 0 : index
    %c0_71 = arith.constant 0 : index
    %124 = vector.load %arg6[%c0_69, %c0_70, %c0_71] : memref<5x80x120xf32, #tpu.memory_space<vmem>>, vector<1x80x120xf32>
    %125 = vector.shape_cast %124 : vector<1x80x120xf32> to vector<80x120xf32>
    %cst_72 = arith.constant dense<0.000000e+00> : vector<1x120xf32>
    %126 = tpu.matmul %123, %125, %cst_72 {dimension_numbers = #tpu.dot_dimension_numbers<[1], [0], [0], [1], [0, 0, 1, 1], [], []>} : vector<1x80xf32>, vector<80x120xf32>, vector<1x120xf32> -> vector<1x120xf32>
    %127 = arith.addf %122, %126 : vector<1x120xf32>
    %128 = vector.extract_strided_slice %121 {offsets = [1, 0], sizes = [1, 80], strides = [1, 1]} : vector<5x80xf32> to vector<1x80xf32>
    %c1_73 = arith.constant 1 : index
    %c0_74 = arith.constant 0 : index
    %c0_75 = arith.constant 0 : index
    %129 = vector.load %arg6[%c1_73, %c0_74, %c0_75] : memref<5x80x120xf32, #tpu.memory_space<vmem>>, vector<1x80x120xf32>
    %130 = vector.shape_cast %129 : vector<1x80x120xf32> to vector<80x120xf32>
    %cst_76 = arith.constant dense<0.000000e+00> : vector<1x120xf32>
    %131 = tpu.matmul %128, %130, %cst_76 {dimension_numbers = #tpu.dot_dimension_numbers<[1], [0], [0], [1], [0, 0, 1, 1], [], []>} : vector<1x80xf32>, vector<80x120xf32>, vector<1x120xf32> -> vector<1x120xf32>
    %132 = arith.addf %127, %131 : vector<1x120xf32>
    %133 = vector.extract_strided_slice %121 {offsets = [2, 0], sizes = [1, 80], strides = [1, 1]} : vector<5x80xf32> to vector<1x80xf32>
    %c2_77 = arith.constant 2 : index
    %c0_78 = arith.constant 0 : index
    %c0_79 = arith.constant 0 : index
    %134 = vector.load %arg6[%c2_77, %c0_78, %c0_79] : memref<5x80x120xf32, #tpu.memory_space<vmem>>, vector<1x80x120xf32>
    %135 = vector.shape_cast %134 : vector<1x80x120xf32> to vector<80x120xf32>
    %cst_80 = arith.constant dense<0.000000e+00> : vector<1x120xf32>
    %136 = tpu.matmul %133, %135, %cst_80 {dimension_numbers = #tpu.dot_dimension_numbers<[1], [0], [0], [1], [0, 0, 1, 1], [], []>} : vector<1x80xf32>, vector<80x120xf32>, vector<1x120xf32> -> vector<1x120xf32>
    %137 = arith.addf %132, %136 : vector<1x120xf32>
    %138 = vector.extract_strided_slice %121 {offsets = [3, 0], sizes = [1, 80], strides = [1, 1]} : vector<5x80xf32> to vector<1x80xf32>
    %c3_81 = arith.constant 3 : index
    %c0_82 = arith.constant 0 : index
    %c0_83 = arith.constant 0 : index
    %139 = vector.load %arg6[%c3_81, %c0_82, %c0_83] : memref<5x80x120xf32, #tpu.memory_space<vmem>>, vector<1x80x120xf32>
    %140 = vector.shape_cast %139 : vector<1x80x120xf32> to vector<80x120xf32>
    %cst_84 = arith.constant dense<0.000000e+00> : vector<1x120xf32>
    %141 = tpu.matmul %138, %140, %cst_84 {dimension_numbers = #tpu.dot_dimension_numbers<[1], [0], [0], [1], [0, 0, 1, 1], [], []>} : vector<1x80xf32>, vector<80x120xf32>, vector<1x120xf32> -> vector<1x120xf32>
    %142 = arith.addf %137, %141 : vector<1x120xf32>
    %143 = vector.extract_strided_slice %121 {offsets = [4, 0], sizes = [1, 80], strides = [1, 1]} : vector<5x80xf32> to vector<1x80xf32>
    %c4_85 = arith.constant 4 : index
    %c0_86 = arith.constant 0 : index
    %c0_87 = arith.constant 0 : index
    %144 = vector.load %arg6[%c4_85, %c0_86, %c0_87] : memref<5x80x120xf32, #tpu.memory_space<vmem>>, vector<1x80x120xf32>
    %145 = vector.shape_cast %144 : vector<1x80x120xf32> to vector<80x120xf32>
    %cst_88 = arith.constant dense<0.000000e+00> : vector<1x120xf32>
    %146 = tpu.matmul %143, %145, %cst_88 {dimension_numbers = #tpu.dot_dimension_numbers<[1], [0], [0], [1], [0, 0, 1, 1], [], []>} : vector<1x80xf32>, vector<80x120xf32>, vector<1x120xf32> -> vector<1x120xf32>
    %147 = arith.addf %142, %146 : vector<1x120xf32>
    %c0_89 = arith.constant 0 : index
    %c0_90 = arith.constant 0 : index
    %148 = vector.load %arg8[%c0_89, %c0_90] : memref<120x84xf32, #tpu.memory_space<vmem>>, vector<120x84xf32>
    %cst_91 = arith.constant dense<0.000000e+00> : vector<1x84xf32>
    %149 = tpu.matmul %147, %148, %cst_91 {dimension_numbers = #tpu.dot_dimension_numbers<[1], [0], [0], [1], [0, 0, 1, 1], [], []>} : vector<1x120xf32>, vector<120x84xf32>, vector<1x84xf32> -> vector<1x84xf32>
    %c0_92 = arith.constant 0 : index
    %c0_93 = arith.constant 0 : index
    %150 = vector.load %arg9[%c0_92, %c0_93] : memref<1x84xf32, #tpu.memory_space<vmem>>, vector<1x84xf32>
    %151 = arith.addf %149, %150 : vector<1x84xf32>
    %c0_94 = arith.constant 0 : index
    %c0_95 = arith.constant 0 : index
    %152 = vector.load %arg10[%c0_94, %c0_95] : memref<84x10xf32, #tpu.memory_space<vmem>>, vector<84x10xf32>
    %cst_96 = arith.constant dense<0.000000e+00> : vector<1x10xf32>
    %153 = tpu.matmul %151, %152, %cst_96 {dimension_numbers = #tpu.dot_dimension_numbers<[1], [0], [0], [1], [0, 0, 1, 1], [], []>} : vector<1x84xf32>, vector<84x10xf32>, vector<1x10xf32> -> vector<1x10xf32>
    %c0_97 = arith.constant 0 : index
    %c0_98 = arith.constant 0 : index
    %154 = vector.load %arg11[%c0_97, %c0_98] : memref<1x10xf32, #tpu.memory_space<vmem>>, vector<1x10xf32>
    %155 = arith.addf %153, %154 : vector<1x10xf32>
    %c0_99 = arith.constant 0 : index
    %c0_100 = arith.constant 0 : index
    %c0_101 = arith.constant 0 : index
    %156 = vector.load %arg12[%c0_99, %c0_100, %c0_101] : memref<1x1x10xf32, #tpu.memory_space<vmem>>, vector<1x1x10xf32>
    %157 = vector.shape_cast %156 : vector<1x1x10xf32> to vector<1x10xf32>
    %158 = vector.shape_cast %155 : vector<1x10xf32> to vector<1x1x10xf32>
    tpu.vector_store %arg12[%c0_99, %c0_100, %c0_101], %158 {strides = array<i32>} : memref<1x1x10xf32, #tpu.memory_space<vmem>>, vector<1x1x10xf32>,
    return
  }
  func.func @transform_0(%arg0: i32) -> (i32, i32, i32) {
    %c0_i32 = arith.constant 0 : i32
    %c0_i32_0 = arith.constant 0 : i32
    %c0_i32_1 = arith.constant 0 : i32
    return %arg0, %c0_i32, %c0_i32_0 : i32, i32, i32
  }
  func.func @transform_1(%arg0: i32) -> (i32, i32, i32) {
    %c0_i32 = arith.constant 0 : i32
    %c0_i32_0 = arith.constant 0 : i32
    %c0_i32_1 = arith.constant 0 : i32
    %c0_i32_2 = arith.constant 0 : i32
    return %c0_i32, %c0_i32_0, %c0_i32_1 : i32, i32, i32
  }
  func.func @transform_2(%arg0: i32) -> (i32, i32) {
    %c0_i32 = arith.constant 0 : i32
    %c0_i32_0 = arith.constant 0 : i32
    %c0_i32_1 = arith.constant 0 : i32
    return %c0_i32, %c0_i32_0 : i32, i32
  }
  func.func @transform_3(%arg0: i32) -> (i32, i32, i32) {
    %c0_i32 = arith.constant 0 : i32
    %c0_i32_0 = arith.constant 0 : i32
    %c0_i32_1 = arith.constant 0 : i32
    %c0_i32_2 = arith.constant 0 : i32
    return %c0_i32, %c0_i32_0, %c0_i32_1 : i32, i32, i32
  }
  func.func @transform_4(%arg0: i32) -> (i32, i32) {
    %c0_i32 = arith.constant 0 : i32
    %c0_i32_0 = arith.constant 0 : i32
    %c0_i32_1 = arith.constant 0 : i32
    return %c0_i32, %c0_i32_0 : i32, i32
  }
  func.func @transform_5(%arg0: i32) -> (i32, i32, i32) {
    %c0_i32 = arith.constant 0 : i32
    %c0_i32_0 = arith.constant 0 : i32
    %c0_i32_1 = arith.constant 0 : i32
    %c0_i32_2 = arith.constant 0 : i32
    return %c0_i32, %c0_i32_0, %c0_i32_1 : i32, i32, i32
  }
  func.func @transform_6(%arg0: i32) -> (i32, i32) {
    %c0_i32 = arith.constant 0 : i32
    %c0_i32_0 = arith.constant 0 : i32
    %c0_i32_1 = arith.constant 0 : i32
    return %c0_i32, %c0_i32_0 : i32, i32
  }
  func.func @transform_7(%arg0: i32) -> (i32, i32) {
    %c0_i32 = arith.constant 0 : i32
    %c0_i32_0 = arith.constant 0 : i32
    %c0_i32_1 = arith.constant 0 : i32
    return %c0_i32, %c0_i32_0 : i32, i32
  }
  func.func @transform_8(%arg0: i32) -> (i32, i32) {
    %c0_i32 = arith.constant 0 : i32
    %c0_i32_0 = arith.constant 0 : i32
    %c0_i32_1 = arith.constant 0 : i32
    return %c0_i32, %c0_i32_0 : i32, i32
  }
  func.func @transform_9(%arg0: i32) -> (i32, i32) {
    %c0_i32 = arith.constant 0 : i32
    %c0_i32_0 = arith.constant 0 : i32
    %c0_i32_1 = arith.constant 0 : i32
    return %c0_i32, %c0_i32_0 : i32, i32
  }
  func.func @transform_10(%arg0: i32) -> (i32, i32) {
    %c0_i32 = arith.constant 0 : i32
    %c0_i32_0 = arith.constant 0 : i32
    %c0_i32_1 = arith.constant 0 : i32
    return %c0_i32, %c0_i32_0 : i32, i32
  }
  func.func @transform_11(%arg0: i32) -> (i32, i32, i32) {
    %c0_i32 = arith.constant 0 : i32
    %c0_i32_0 = arith.constant 0 : i32
    %c0_i32_1 = arith.constant 0 : i32
    return %arg0, %c0_i32, %c0_i32_0 : i32, i32, i32
  }
}

</mosaic_0001>

<llo_original>
// kernel: lenet_forward.1
$region0: #{lenet_forward.1}
  #allocation0 [shape = 'u32[]', space=smem, size = 0x4, offset = 0x4, fixed_abs, tag = 'smem constant byte address 0x4 - core index']
  #allocation1 [shape = 'u32[144,128]{1,0:T(1,128)}', space=vmem, size = 0x12000, scoped, tag = 'internal scratch']
  %s0 = inlined_call_operand.vmem [shape: f32[2,30,30], index: 0, kind: input, shape index: {}]
  %s1 = inlined_call_operand.vmem [shape: f32[3,30,168], index: 1, kind: input, shape index: {}]
  %s2 = inlined_call_operand.vmem [shape: f32[1,168], index: 2, kind: input, shape index: {}]
  %s3 = inlined_call_operand.vmem [shape: f32[5,84,160], index: 3, kind: input, shape index: {}]
  %s4 = inlined_call_operand.vmem [shape: f32[1,160], index: 4, kind: input, shape index: {}]
  %s5 = inlined_call_operand.vmem [shape: f32[5,80,120], index: 5, kind: input, shape index: {}]
  %s6 = inlined_call_operand.vmem [shape: f32[1,120], index: 6, kind: input, shape index: {}]
  %s7 = inlined_call_operand.vmem [shape: f32[120,84], index: 7, kind: input, shape index: {}]
  %s8 = inlined_call_operand.vmem [shape: f32[1,84], index: 8, kind: input, shape index: {}]
  %s9 = inlined_call_operand.vmem [shape: f32[84,10], index: 9, kind: input, shape index: {}]
  %s10 = inlined_call_operand.vmem [shape: f32[1,10], index: 10, kind: input, shape index: {}]
  %s11 = inlined_call_operand.hbm [shape: f32[2,1,10], index: 11, kind: output, shape index: {}]
  %s12 = sld [smem:[#allocation0]]
  $region77: #{lenet_forward.1} parent=0
    _
  %s14 = ssub.s32 1, %s12
  %s15 = scalar_select 0, %s14, %s12
  $region1: #{lenet_forward.1} parent=0
    #allocation2 [shape = 'u8[1024]{0}', space=vmem, size = 0x400, scoped, tag = 'output window, operand 0']
    #allocation3 [shape = 's32[2]{0}', space=sflag, size = 0x8, scoped, tag = 'scoped memory for lenet_forward.1']
    %16 = vsyncpa [#allocation3], 0
    %s17 = scalar_lea.sflag [#allocation3], 1
    %18 = vsyncpa %s17, 0
    loop: start=0, step=1, limit=4
    $region2: #{lenet_forward.1} parent=1 // loop_pre_header
      _
    $region3: #{lenet_forward.1} parent=1 // loop_header
      %s20 = sphi 0, %s24
      %p21 = scmp.ge.s32.totalorder %s20, 4
      %s30 = sphi 0, %s32
      %s33 = sphi 0, %s30
      %s34 = sphi 0, %s33
      %s50 = sphi 0, %s34
      %s54 = sphi 0, %s54
      %s56 = sphi 0, %s54
      %s57 = sphi 0, %s56
      %s71 = sphi 0, %s57
      %s75 = sphi 0, %s75
      %s77 = sphi 0, %s75
      %s78 = sphi 0, %s77
      %s92 = sphi 0, %s78
      %s96 = sphi 0, %s96
      %s98 = sphi 0, %s96
      %s99 = sphi 0, %s98
      %s113 = sphi 0, %s99
      %s117 = sphi 0, %s117
      %s119 = sphi 0, %s117
      %s120 = sphi 0, %s119
      %s134 = sphi 0, %s120
      %s138 = sphi 0, %s138
      %s140 = sphi 0, %s138
      %s141 = sphi 0, %s140
      %s155 = sphi 0, %s141
      %s159 = sphi 0, %s159
      %s161 = sphi 0, %s159
      %s162 = sphi 0, %s161
      %s176 = sphi 0, %s162
      %s180 = sphi 0, %s180
      %s182 = sphi 0, %s180
      %s183 = sphi 0, %s182
      %s197 = sphi 0, %s183
      %s201 = sphi 0, %s201
      %s203 = sphi 0, %s201
      %s204 = sphi 0, %s203
      %s218 = sphi 0, %s204
      %s222 = sphi 0, %s222
      %s224 = sphi 0, %s222
      %s225 = sphi 0, %s224
      %s239 = sphi 0, %s225
      %s243 = sphi 0, %s243
      %s245 = sphi 0, %s243
      %s246 = sphi 0, %s245
      %s260 = sphi 0, %s246
      %s266 = sphi 0, %s268
      %s269 = sphi 0, %s266
      %s270 = sphi 0, %s269
      %s286 = sphi 0, %s270
    $region4: #{lenet_forward.1} parent=1 // loop_header_branch
      %23 = sbr.rel (%p21) target = $region8
    $region5: #{lenet_forward.1} parent=1 // loop_body
      %s25 = ssub.s32 %s20, 1
      %s26 = ssub.s32 %s20, 2
      %s27 = sadd.s32 %s20, 1
      %s28 = ssub.s32 %s20, %s27
      %p29 = scmp.eq.s32.totalorder %s28, 0
      %s31 = sadd.s32 %s30, 1
      %s32 = scalar_select %p29, %s30, %s31
      %p35 = pneg %p29
      %p36 = scmp.eq.s32.totalorder %s20, 1
      %p37 = por %p35, %p36
      %p38 = scmp.ne.s32.totalorder %s30, %s33
      %p39 = scmp.eq.s32.totalorder %s20, 0
      %p40 = por %p38, %p39
      %p41 = scmp.ne.s32.totalorder %s30, %s33
      %p42 = scmp.eq.s32.totalorder %s25, 1
      %p43 = por %p41, %p42
      %p44 = scmp.ne.s32.totalorder %s33, %s34
      %p45 = scmp.eq.s32.totalorder %s25, 0
      %p46 = por %p44, %p45
      %p47 = scmp.ne.s32.totalorder %s33, %s34
      %p48 = scmp.eq.s32.totalorder %s26, 1
      %p49 = por %p47, %p48
      %p51 = scmp.ne.s32.totalorder %s34, %s50
      %p52 = scmp.eq.s32.totalorder %s26, 0
      %p53 = por %p51, %p52
      %s55 = sadd.s32 %s54, 1
      %p58 = scmp.eq.s32.totalorder %s20, 1
      %p59 = scmp.ne.s32.totalorder %s54, %s56
      %p60 = scmp.eq.s32.totalorder %s20, 0
      %p61 = por %p59, %p60
      %p62 = scmp.ne.s32.totalorder %s54, %s56
      %p63 = scmp.eq.s32.totalorder %s25, 1
      %p64 = por %p62, %p63
      %p65 = scmp.ne.s32.totalorder %s56, %s57
      %p66 = scmp.eq.s32.totalorder %s25, 0
      %p67 = por %p65, %p66
      %p68 = scmp.ne.s32.totalorder %s56, %s57
      %p69 = scmp.eq.s32.totalorder %s26, 1
      %p70 = por %p68, %p69
      %p72 = scmp.ne.s32.totalorder %s57, %s71
      %p73 = scmp.eq.s32.totalorder %s26, 0
      %p74 = por %p72, %p73
      %s76 = sadd.s32 %s75, 1
      %p79 = scmp.eq.s32.totalorder %s20, 1
      %p80 = scmp.ne.s32.totalorder %s75, %s77
      %p81 = scmp.eq.s32.totalorder %s20, 0
      %p82 = por %p80, %p81
      %p83 = scmp.ne.s32.totalorder %s75, %s77
      %p84 = scmp.eq.s32.totalorder %s25, 1
      %p85 = por %p83, %p84
      %p86 = scmp.ne.s32.totalorder %s77, %s78
      %p87 = scmp.eq.s32.totalorder %s25, 0
      %p88 = por %p86, %p87
      %p89 = scmp.ne.s32.totalorder %s77, %s78
      %p90 = scmp.eq.s32.totalorder %s26, 1
      %p91 = por %p89, %p90
      %p93 = scmp.ne.s32.totalorder %s78, %s92
      %p94 = scmp.eq.s32.totalorder %s26, 0
      %p95 = por %p93, %p94
      %s97 = sadd.s32 %s96, 1
      %p100 = scmp.eq.s32.totalorder %s20, 1
      %p101 = scmp.ne.s32.totalorder %s96, %s98
      %p102 = scmp.eq.s32.totalorder %s20, 0
      %p103 = por %p101, %p102
      %p104 = scmp.ne.s32.totalorder %s96, %s98
      %p105 = scmp.eq.s32.totalorder %s25, 1
      %p106 = por %p104, %p105
      %p107 = scmp.ne.s32.totalorder %s98, %s99
      %p108 = scmp.eq.s32.totalorder %s25, 0
      %p109 = por %p107, %p108
      %p110 = scmp.ne.s32.totalorder %s98, %s99
      %p111 = scmp.eq.s32.totalorder %s26, 1
      %p112 = por %p110, %p111
      %p114 = scmp.ne.s32.totalorder %s99, %s113
      %p115 = scmp.eq.s32.totalorder %s26, 0
      %p116 = por %p114, %p115
      %s118 = sadd.s32 %s117, 1
      %p121 = scmp.eq.s32.totalorder %s20, 1
      %p122 = scmp.ne.s32.totalorder %s117, %s119
      %p123 = scmp.eq.s32.totalorder %s20, 0
      %p124 = por %p122, %p123
      %p125 = scmp.ne.s32.totalorder %s117, %s119
      %p126 = scmp.eq.s32.totalorder %s25, 1
      %p127 = por %p125, %p126
      %p128 = scmp.ne.s32.totalorder %s119, %s120
      %p129 = scmp.eq.s32.totalorder %s25, 0
      %p130 = por %p128, %p129
      %p131 = scmp.ne.s32.totalorder %s119, %s120
      %p132 = scmp.eq.s32.totalorder %s26, 1
      %p133 = por %p131, %p132
      %p135 = scmp.ne.s32.totalorder %s120, %s134
      %p136 = scmp.eq.s32.totalorder %s26, 0
      %p137 = por %p135, %p136
      %s139 = sadd.s32 %s138, 1
      %p142 = scmp.eq.s32.totalorder %s20, 1
      %p143 = scmp.ne.s32.totalorder %s138, %s140
      %p144 = scmp.eq.s32.totalorder %s20, 0
      %p145 = por %p143, %p144
      %p146 = scmp.ne.s32.totalorder %s138, %s140
      %p147 = scmp.eq.s32.totalorder %s25, 1
      %p148 = por %p146, %p147
      %p149 = scmp.ne.s32.totalorder %s140, %s141
      %p150 = scmp.eq.s32.totalorder %s25, 0
      %p151 = por %p149, %p150
      %p152 = scmp.ne.s32.totalorder %s140, %s141
      %p153 = scmp.eq.s32.totalorder %s26, 1
      %p154 = por %p152, %p153
      %p156 = scmp.ne.s32.totalorder %s141, %s155
      %p157 = scmp.eq.s32.totalorder %s26, 0
      %p158 = por %p156, %p157
      %s160 = sadd.s32 %s159, 1
      %p163 = scmp.eq.s32.totalorder %s20, 1
      %p164 = scmp.ne.s32.totalorder %s159, %s161
      %p165 = scmp.eq.s32.totalorder %s20, 0
      %p166 = por %p164, %p165
      %p167 = scmp.ne.s32.totalorder %s159, %s161
      %p168 = scmp.eq.s32.totalorder %s25, 1
      %p169 = por %p167, %p168
      %p170 = scmp.ne.s32.totalorder %s161, %s162
      %p171 = scmp.eq.s32.totalorder %s25, 0
      %p172 = por %p170, %p171
      %p173 = scmp.ne.s32.totalorder %s161, %s162
      %p174 = scmp.eq.s32.totalorder %s26, 1
      %p175 = por %p173, %p174
      %p177 = scmp.ne.s32.totalorder %s162, %s176
      %p178 = scmp.eq.s32.totalorder %s26, 0
      %p179 = por %p177, %p178
      %s181 = sadd.s32 %s180, 1
      %p184 = scmp.eq.s32.totalorder %s20, 1
      %p185 = scmp.ne.s32.totalorder %s180, %s182
      %p186 = scmp.eq.s32.totalorder %s20, 0
      %p187 = por %p185, %p186
      %p188 = scmp.ne.s32.totalorder %s180, %s182
      %p189 = scmp.eq.s32.totalorder %s25, 1
      %p190 = por %p188, %p189
      %p191 = scmp.ne.s32.totalorder %s182, %s183
      %p192 = scmp.eq.s32.totalorder %s25, 0
      %p193 = por %p191, %p192
      %p194 = scmp.ne.s32.totalorder %s182, %s183
      %p195 = scmp.eq.s32.totalorder %s26, 1
      %p196 = por %p194, %p195
      %p198 = scmp.ne.s32.totalorder %s183, %s197
      %p199 = scmp.eq.s32.totalorder %s26, 0
      %p200 = por %p198, %p199
      %s202 = sadd.s32 %s201, 1
      %p205 = scmp.eq.s32.totalorder %s20, 1
      %p206 = scmp.ne.s32.totalorder %s201, %s203
      %p207 = scmp.eq.s32.totalorder %s20, 0
      %p208 = por %p206, %p207
      %p209 = scmp.ne.s32.totalorder %s201, %s203
      %p210 = scmp.eq.s32.totalorder %s25, 1
      %p211 = por %p209, %p210
      %p212 = scmp.ne.s32.totalorder %s203, %s204
      %p213 = scmp.eq.s32.totalorder %s25, 0
      %p214 = por %p212, %p213
      %p215 = scmp.ne.s32.totalorder %s203, %s204
      %p216 = scmp.eq.s32.totalorder %s26, 1
      %p217 = por %p215, %p216
      %p219 = scmp.ne.s32.totalorder %s204, %s218
      %p220 = scmp.eq.s32.totalorder %s26, 0
      %p221 = por %p219, %p220
      %s223 = sadd.s32 %s222, 1
      %p226 = scmp.eq.s32.totalorder %s20, 1
      %p227 = scmp.ne.s32.totalorder %s222, %s224
      %p228 = scmp.eq.s32.totalorder %s20, 0
      %p229 = por %p227, %p228
      %p230 = scmp.ne.s32.totalorder %s222, %s224
      %p231 = scmp.eq.s32.totalorder %s25, 1
      %p232 = por %p230, %p231
      %p233 = scmp.ne.s32.totalorder %s224, %s225
      %p234 = scmp.eq.s32.totalorder %s25, 0
      %p235 = por %p233, %p234
      %p236 = scmp.ne.s32.totalorder %s224, %s225
      %p237 = scmp.eq.s32.totalorder %s26, 1
      %p238 = por %p236, %p237
      %p240 = scmp.ne.s32.totalorder %s225, %s239
      %p241 = scmp.eq.s32.totalorder %s26, 0
      %p242 = por %p240, %p241
      %s244 = sadd.s32 %s243, 1
      %p247 = scmp.eq.s32.totalorder %s20, 1
      %p248 = scmp.ne.s32.totalorder %s243, %s245
      %p249 = scmp.eq.s32.totalorder %s20, 0
      %p250 = por %p248, %p249
      %p251 = scmp.ne.s32.totalorder %s243, %s245
      %p252 = scmp.eq.s32.totalorder %s25, 1
      %p253 = por %p251, %p252
      %p254 = scmp.ne.s32.totalorder %s245, %s246
      %p255 = scmp.eq.s32.totalorder %s25, 0
      %p256 = por %p254, %p255
      %p257 = scmp.ne.s32.totalorder %s245, %s246
      %p258 = scmp.eq.s32.totalorder %s26, 1
      %p259 = por %p257, %p258
      %p261 = scmp.ne.s32.totalorder %s246, %s260
      %p262 = scmp.eq.s32.totalorder %s26, 0
      %p263 = por %p261, %p262
      %s264 = ssub.s32 %s20, %s27
      %p265 = scmp.eq.s32.totalorder %s264, 0
      %s267 = sadd.s32 %s266, 1
      %s268 = scalar_select %p265, %s266, %s267
      %p271 = pneg %p265
      %p272 = scmp.eq.s32.totalorder %s20, 1
      %p273 = por %p271, %p272
      %p274 = scmp.ne.s32.totalorder %s266, %s269
      %p275 = scmp.eq.s32.totalorder %s20, 0
      %p276 = por %p274, %p275
      %p277 = scmp.ne.s32.totalorder %s266, %s269
      %p278 = scmp.eq.s32.totalorder %s25, 1
      %p279 = por %p277, %p278
      %p280 = scmp.ne.s32.totalorder %s269, %s270
      %p281 = scmp.eq.s32.totalorder %s25, 0
      %p282 = por %p280, %p281
      %p283 = scmp.ne.s32.totalorder %s269, %s270
      %p284 = scmp.eq.s32.totalorder %s26, 1
      %p285 = por %p283, %p284
      %p287 = scmp.ne.s32.totalorder %s270, %s286
      %p288 = scmp.eq.s32.totalorder %s26, 0
      %p289 = por %p287, %p288
      %p290 = scmp.le.s32.totalorder 1, %s20
      %p291 = scmp.lt.s32.totalorder %s20, 3
      %p292 = pnand %p290, %p291
      %p293 = pneg %p292
      // Predicated region
      $region9: #{lenet_forward.1} parent=5 // pred_check
        _
      $region10: #{lenet_forward.1} parent=5 // pred_check_branch
        %295 = sbr.rel (%p292) target = $region12
      $region11: #{lenet_forward.1} parent=5 // pred_region
        %s296 = ssub.s32 %s20, 1
        // Predicated region
        $region13: #{lenet_forward.1} parent=11 // pred_check
          %p297 = pneg %p67
        $region14: #{lenet_forward.1} parent=11 // pred_check_branch
          %299 = sbr.rel (%p297) target = $region16
        $region15: #{lenet_forward.1} parent=11 // pred_region
          _
        $region16: #{lenet_forward.1} parent=11 // pred_fallthru
          _
        // Predicated region
        $region17: #{lenet_forward.1} parent=11 // pred_check
          %p300 = pneg %p88
        $region18: #{lenet_forward.1} parent=11 // pred_check_branch
          %302 = sbr.rel (%p300) target = $region20
        $region19: #{lenet_forward.1} parent=11 // pred_region
          _
        $region20: #{lenet_forward.1} parent=11 // pred_fallthru
          _
        // Predicated region
        $region21: #{lenet_forward.1} parent=11 // pred_check
          %p303 = pneg %p109
        $region22: #{lenet_forward.1} parent=11 // pred_check_branch
          %305 = sbr.rel (%p303) target = $region24
        $region23: #{lenet_forward.1} parent=11 // pred_region
          _
        $region24: #{lenet_forward.1} parent=11 // pred_fallthru
          _
        // Predicated region
        $region25: #{lenet_forward.1} parent=11 // pred_check
          %p306 = pneg %p130
        $region26: #{lenet_forward.1} parent=11 // pred_check_branch
          %308 = sbr.rel (%p306) target = $region28
        $region27: #{lenet_forward.1} parent=11 // pred_region
          _
        $region28: #{lenet_forward.1} parent=11 // pred_fallthru
          _
        // Predicated region
        $region29: #{lenet_forward.1} parent=11 // pred_check
          %p309 = pneg %p151
        $region30: #{lenet_forward.1} parent=11 // pred_check_branch
          %311 = sbr.rel (%p309) target = $region32
        $region31: #{lenet_forward.1} parent=11 // pred_region
          _
        $region32: #{lenet_forward.1} parent=11 // pred_fallthru
          _
        // Predicated region
        $region33: #{lenet_forward.1} parent=11 // pred_check
          %p312 = pneg %p172
        $region34: #{lenet_forward.1} parent=11 // pred_check_branch
          %314 = sbr.rel (%p312) target = $region36
        $region35: #{lenet_forward.1} parent=11 // pred_region
          _
        $region36: #{lenet_forward.1} parent=11 // pred_fallthru
          _
        // Predicated region
        $region37: #{lenet_forward.1} parent=11 // pred_check
          %p315 = pneg %p193
        $region38: #{lenet_forward.1} parent=11 // pred_check_branch
          %317 = sbr.rel (%p315) target = $region40
        $region39: #{lenet_forward.1} parent=11 // pred_region
          _
        $region40: #{lenet_forward.1} parent=11 // pred_fallthru
          _
        // Predicated region
        $region41: #{lenet_forward.1} parent=11 // pred_check
          %p318 = pneg %p214
        $region42: #{lenet_forward.1} parent=11 // pred_check_branch
          %320 = sbr.rel (%p318) target = $region44
        $region43: #{lenet_forward.1} parent=11 // pred_region
          _
        $region44: #{lenet_forward.1} parent=11 // pred_fallthru
          _
        // Predicated region
        $region45: #{lenet_forward.1} parent=11 // pred_check
          %p321 = pneg %p235
        $region46: #{lenet_forward.1} parent=11 // pred_check_branch
          %323 = sbr.rel (%p321) target = $region48
        $region47: #{lenet_forward.1} parent=11 // pred_region
          _
        $region48: #{lenet_forward.1} parent=11 // pred_fallthru
          _
        // Predicated region
        $region49: #{lenet_forward.1} parent=11 // pred_check
          %p324 = pneg %p256
        $region50: #{lenet_forward.1} parent=11 // pred_check_branch
          %326 = sbr.rel (%p324) target = $region52
        $region51: #{lenet_forward.1} parent=11 // pred_region
          _
        $region52: #{lenet_forward.1} parent=11 // pred_fallthru
          _
      $region12: #{lenet_forward.1} parent=5 // pred_fallthru
        _
      %p327 = scmp.lt.s32.totalorder %s20, 2
      // Predicated region
      $region53: #{lenet_forward.1} parent=5 // pred_check
        %p328 = pneg %p327
      $region54: #{lenet_forward.1} parent=5 // pred_check_branch
        %330 = sbr.rel (%p328) target = $region56
      $region55: #{lenet_forward.1} parent=5 // pred_region
        // Predicated region
        $region57: #{lenet_forward.1} parent=55 // pred_check
          %p331 = pneg %p40
        $region58: #{lenet_forward.1} parent=55 // pred_check_branch
          %333 = sbr.rel (%p331) target = $region60
        $region59: #{lenet_forward.1} parent=55 // pred_region
          %p334 = scmp.lt.s32.totalorder %s20, 1
          %s335 = scalar_select %p334, %s20, 1
          %s336 = smul.addr %s335, 4
          %s337 = smul.addr %s336, 8
          %s338 = scalar_lea.vmem %s0, %s337
        $region60: #{lenet_forward.1} parent=55 // pred_fallthru
          _
      $region56: #{lenet_forward.1} parent=5 // pred_fallthru
        _
      %p339 = scmp.le.s32.totalorder 1, %s20
      %p340 = scmp.lt.s32.totalorder %s20, 3
      %p341 = pnand %p339, %p340
      %p342 = pneg %p341
      // Predicated region
      $region61: #{lenet_forward.1} parent=5 // pred_check
        _
      $region62: #{lenet_forward.1} parent=5 // pred_check_branch
        %344 = sbr.rel (%p341) target = $region64
      $region63: #{lenet_forward.1} parent=5 // pred_region
        %s345 = ssub.s32 %s20, 1
        %p346 = scmp.lt.s32.totalorder %s25, 1
        %s347 = scalar_select %p346, %s25, 1
        %s348 = smul.addr %s347, 4
        %s349 = smul.addr %s348, 8
        %s350 = scalar_lea.vmem %s0, %s349
        %p351 = pneg %p46
        %p352 = pneg %p43
        %p353 = pneg %p67
        %p354 = pneg %p64
        %p355 = pneg %p88
        %p356 = pneg %p85
        %p357 = pneg %p109
        %p358 = pneg %p106
        %p359 = pneg %p130
        %p360 = pneg %p127
        %p361 = pneg %p151
        %p362 = pneg %p148
        %p363 = pneg %p172
        %p364 = pneg %p169
        %p365 = pneg %p193
        %p366 = pneg %p190
        %p367 = pneg %p214
        %p368 = pneg %p211
        %p369 = pneg %p235
        %p370 = pneg %p232
        %p371 = pneg %p256
        %p372 = pneg %p253
        %p373 = pneg %p282
        %p374 = pneg %p279
        %s375 = sand.u32 %s269, 1
        %s376 = scalar_lea.sflag [#allocation3], %s375
        %s377 = sand.u32 %s269, 1
        %s378 = scalar_lea.vmem [#allocation2], %s377
        %p379 = scmp.lt.s32.totalorder %s25, 1
        %s380 = scalar_select %p379, %s25, 1
        %s381 = smul.addr %s380, 4
        %s382 = smul.addr %s381, 8
        %s383 = scalar_lea.vmem %s0, %s382
        %v384 = vld [vmem:[%s383] sm:$0xff]
        %v385 = vld [vmem:[%s383 + $0x8] sm:$0xff]
        %v386 = vld [vmem:[%s383 + $0x10] sm:$0xff]
        %v387 = vld [vmem:[%s383 + $0x18] sm:$0x3f]
        %v388 = vld [vmem:[%s1] sm:$0xff]
        %v389 = vld [vmem:[%s1 + $0x8] sm:$0xff]
        %v390 = vld [vmem:[%s1 + $0x10] sm:$0xff]
        %v391 = vld [vmem:[%s1 + $0x18] sm:$0xff]
        %v392 = vld [vmem:[%s1 + $0x20] sm:$0xff]
        %v393 = vld [vmem:[%s1 + $0x28] sm:$0xff]
        %v394 = vld [vmem:[%s1 + $0x30] sm:$0x3f]
        %v395 = vld [vmem:[%s1 + $0x38] sm:$0x3f]
        %s396 = scalar_lea.vmem %s1, 64
        %v397 = vld [vmem:[%s396] sm:$0xff]
        %v398 = vld [vmem:[%s396 + $0x8] sm:$0xff]
        %v399 = vld [vmem:[%s396 + $0x10] sm:$0xff]
        %v400 = vld [vmem:[%s396 + $0x18] sm:$0xff]
        %v401 = vld [vmem:[%s396 + $0x20] sm:$0xff]
        %v402 = vld [vmem:[%s396 + $0x28] sm:$0xff]
        %v403 = vld [vmem:[%s396 + $0x30] sm:$0x3f]
        %v404 = vld [vmem:[%s396 + $0x38] sm:$0x3f]
        %vm409 = vcmask 1046528
        %v410 = vrot.slane %v384, 1
        %v411 = vrot.slane %v385, 1
        %v412 = vsel %vm409, %v410, %v411
        %v413 = vrot.slane %v386, 1
        %v414 = vsel %vm409, %v411, %v413
        %v415 = vrot.slane %v387, 1
        %v416 = vsel %vm409, %v413, %v415
        %vm417 = vcmask 244736
        %v418 = vsel %vm417, %v412, 0
        %v420 = vsel %vm417, %v414, 0
        %v422 = vsel %vm417, %v416, 0
        %v424 = vsel %vm417, %v415, 0
        %vm426 = vcmask 1045504
        %v428 = vsel %vm426, %v403, 0
        %v431 = vsel %vm426, %v404, 0
        %433 = vmatprep.subr.mxu0 0.0
        %434 = vmatpush1.msra.mxu0 0.0
        %435 = vmatprep.subr.mxu0 0.0
        %436 = vmatpush1.msra.mxu0 0.0
        %437 = vmatprep.subr.mxu0 0.0
        %438 = vmatpush1.msra.mxu0 0.0
        %439 = vmatprep.subr.mxu0 0.0
        %440 = vmatpush1.msra.mxu0 0.0
        %441 = vmatprep.subr.mxu0 0.0
        %442 = vmatpush1.msra.mxu0 0.0
        %443 = vmatprep.subr.mxu0 0.0
        %444 = vmatpush1.msra.mxu0 0.0
        %445 = vmatprep.subr.mxu0 0.0
        %446 = vmatpush1.msra.mxu0 0.0
        %447 = vmatprep.subr.mxu0 0.0
        %448 = vmatpush1.msra.mxu0 0.0
        %449 = vmatprep.subr.mxu0 0.0
        %450 = vmatpush1.msra.mxu0 0.0
        %451 = vmatprep.subr.mxu0 0.0
        %452 = vmatpush1.msra.mxu0 0.0
        %453 = vmatprep.subr.mxu0 0.0
        %454 = vmatpush1.msra.mxu0 0.0
        %455 = vmatprep.subr.mxu0 0.0
        %456 = vmatpush1.msra.mxu0 0.0
        %457 = vmatprep.subr.mxu0 %v431
        %458 = vmatpush1.msra.mxu0 %v428
        %459 = vmatprep.subr.mxu0 %v402
        %460 = vmatpush1.msra.mxu0 %v401
        %461 = vmatprep.subr.mxu0 %v400
        %462 = vmatpush1.msra.mxu0 %v399
        %463 = vmatprep.subr.mxu0 %v398
        %464 = vmatpush1.msra.mxu0 %v397
        %465 = vmatprep.subr.mxu0 0.0
        %466 = vmatpush2.msra.mxu0 0.0
        %467 = vmatprep.subr.mxu0 0.0
        %468 = vmatpush2.msra.mxu0 0.0
        %469 = vmatprep.subr.mxu0 0.0
        %470 = vmatpush2.msra.mxu0 0.0
        %471 = vmatprep.subr.mxu0 0.0
        %472 = vmatpush2.msra.mxu0 0.0
        %473 = vmatprep.subr.mxu0 0.0
        %474 = vmatpush2.msra.mxu0 0.0
        %475 = vmatprep.subr.mxu0 0.0
        %476 = vmatpush2.msra.mxu0 0.0
        %477 = vmatprep.subr.mxu0 0.0
        %478 = vmatpush2.msra.mxu0 0.0
        %479 = vmatprep.subr.mxu0 0.0
        %480 = vmatpush2.msra.mxu0 0.0
        %481 = vmatprep.subr.mxu0 0.0
        %482 = vmatpush2.msra.mxu0 0.0
        %483 = vmatprep.subr.mxu0 0.0
        %484 = vmatpush2.msra.mxu0 0.0
        %485 = vmatprep.subr.mxu0 0.0
        %486 = vmatpush2.msra.mxu0 0.0
        %487 = vmatprep.subr.mxu0 0.0
        %488 = vmatpush2.msra.mxu0 0.0
        %489 = vmatprep.subr.mxu0 0.0
        %490 = vmatpush2.msra.mxu0 0.0
        %491 = vmatprep.subr.mxu0 0.0
        %492 = vmatpush2.msra.mxu0 0.0
        %493 = vmatprep.subr.mxu0 0.0
        %494 = vmatpush2.msra.mxu0 0.0
        %495 = vmatprep.subr.mxu0 0.0
        %496 = vmatpush2.msra.mxu0 0.0
        %497 = vmatprep.mubr.f32.mxu0 0.0
        %498 = vmatmul.mubr.f32.gmra.mxu0 %v418
        %v499 = vpop.f32.mrf.mxu0
        %v500 = vadd.f32 0.0, %v499
        %v501 = vpop.f32.mrf.mxu0
        %v502 = vadd.f32 0.0, %v501
        %503 = vmatprep.mubr.f32.mxu0 0.0
        %504 = vmatmul.mubr.f32.gmra.mxu0 %v420
        %v505 = vpop.f32.mrf.mxu0
        %v506 = vadd.f32 0.0, %v505
        %v507 = vpop.f32.mrf.mxu0
        %v508 = vadd.f32 0.0, %v507
        %509 = vmatprep.mubr.f32.mxu0 0.0
        %510 = vmatmul.mubr.f32.gmra.mxu0 %v422
        %v511 = vpop.f32.mrf.mxu0
        %v512 = vadd.f32 0.0, %v511
        %v513 = vpop.f32.mrf.mxu0
        %v514 = vadd.f32 0.0, %v513
        %515 = vmatprep.mubr.f32.mxu0 0.0
        %516 = vmatmul.mubr.f32.gmra.mxu0 %v424
        %v517 = vpop.f32.mrf.mxu0
        %v518 = vadd.f32 0.0, %v517
        %v519 = vpop.f32.mrf.mxu0
        %v520 = vadd.f32 0.0, %v519
        %521 = vdwg.mxu0
        %v522 = vsel %vm417, %v384, 0
        %v524 = vsel %vm417, %v385, 0
        %v526 = vsel %vm417, %v386, 0
        %v528 = vsel %vm417, %v387, 0
        %v531 = vsel %vm426, %v394, 0
        %v534 = vsel %vm426, %v395, 0
        %536 = vmatprep.subr.mxu0 0.0
        %537 = vmatpush1.msra.mxu0 0.0
        %538 = vmatprep.subr.mxu0 0.0
        %539 = vmatpush1.msra.mxu0 0.0
        %540 = vmatprep.subr.mxu0 0.0
        %541 = vmatpush1.msra.mxu0 0.0
        %542 = vmatprep.subr.mxu0 0.0
        %543 = vmatpush1.msra.mxu0 0.0
        %544 = vmatprep.subr.mxu0 0.0
        %545 = vmatpush1.msra.mxu0 0.0
        %546 = vmatprep.subr.mxu0 0.0
        %547 = vmatpush1.msra.mxu0 0.0
        %548 = vmatprep.subr.mxu0 0.0
        %549 = vmatpush1.msra.mxu0 0.0
        %550 = vmatprep.subr.mxu0 0.0
        %551 = vmatpush1.msra.mxu0 0.0
        %552 = vmatprep.subr.mxu0 0.0
        %553 = vmatpush1.msra.mxu0 0.0
        %554 = vmatprep.subr.mxu0 0.0
        %555 = vmatpush1.msra.mxu0 0.0
        %556 = vmatprep.subr.mxu0 0.0
        %557 = vmatpush1.msra.mxu0 0.0
        %558 = vmatprep.subr.mxu0 0.0
        %559 = vmatpush1.msra.mxu0 0.0
        %560 = vmatprep.subr.mxu0 %v534
        %561 = vmatpush1.msra.mxu0 %v531
        %562 = vmatprep.subr.mxu0 %v393
        %563 = vmatpush1.msra.mxu0 %v392
        %564 = vmatprep.subr.mxu0 %v391
        %565 = vmatpush1.msra.mxu0 %v390
        %566 = vmatprep.subr.mxu0 %v389
        %567 = vmatpush1.msra.mxu0 %v388
        %568 = vmatprep.subr.mxu0 0.0
        %569 = vmatpush2.msra.mxu0 0.0
        %570 = vmatprep.subr.mxu0 0.0
        %571 = vmatpush2.msra.mxu0 0.0
        %572 = vmatprep.subr.mxu0 0.0
        %573 = vmatpush2.msra.mxu0 0.0
        %574 = vmatprep.subr.mxu0 0.0
        %575 = vmatpush2.msra.mxu0 0.0
        %576 = vmatprep.subr.mxu0 0.0
        %577 = vmatpush2.msra.mxu0 0.0
        %578 = vmatprep.subr.mxu0 0.0
        %579 = vmatpush2.msra.mxu0 0.0
        %580 = vmatprep.subr.mxu0 0.0
        %581 = vmatpush2.msra.mxu0 0.0
        %582 = vmatprep.subr.mxu0 0.0
        %583 = vmatpush2.msra.mxu0 0.0
        %584 = vmatprep.subr.mxu0 0.0
        %585 = vmatpush2.msra.mxu0 0.0
        %586 = vmatprep.subr.mxu0 0.0
        %587 = vmatpush2.msra.mxu0 0.0
        %588 = vmatprep.subr.mxu0 0.0
        %589 = vmatpush2.msra.mxu0 0.0
        %590 = vmatprep.subr.mxu0 0.0
        %591 = vmatpush2.msra.mxu0 0.0
        %592 = vmatprep.subr.mxu0 0.0
        %593 = vmatpush2.msra.mxu0 0.0
        %594 = vmatprep.subr.mxu0 0.0
        %595 = vmatpush2.msra.mxu0 0.0
        %596 = vmatprep.subr.mxu0 0.0
        %597 = vmatpush2.msra.mxu0 0.0
        %598 = vmatprep.subr.mxu0 0.0
        %599 = vmatpush2.msra.mxu0 0.0
        %600 = vmatprep.mubr.f32.mxu0 0.0
        %601 = vmatmul.mubr.f32.gmra.mxu0 %v522
        %v602 = vpop.f32.mrf.mxu0
        %v603 = vadd.f32 %v500, %v602
        %v604 = vpop.f32.mrf.mxu0
        %v605 = vadd.f32 %v502, %v604
        %606 = vmatprep.mubr.f32.mxu0 0.0
        %607 = vmatmul.mubr.f32.gmra.mxu0 %v524
        %v608 = vpop.f32.mrf.mxu0
        %v609 = vadd.f32 %v506, %v608
        %v610 = vpop.f32.mrf.mxu0
        %v611 = vadd.f32 %v508, %v610
        %612 = vmatprep.mubr.f32.mxu0 0.0
        %613 = vmatmul.mubr.f32.gmra.mxu0 %v526
        %v614 = vpop.f32.mrf.mxu0
        %v615 = vadd.f32 %v512, %v614
        %v616 = vpop.f32.mrf.mxu0
        %v617 = vadd.f32 %v514, %v616
        %618 = vmatprep.mubr.f32.mxu0 0.0
        %619 = vmatmul.mubr.f32.gmra.mxu0 %v528
        %v620 = vpop.f32.mrf.mxu0
        %v621 = vadd.f32 %v518, %v620
        %v622 = vpop.f32.mrf.mxu0
        %v623 = vadd.f32 %v520, %v622
        %624 = vdwg.mxu0
        %s625 = scalar_lea.vmem %s1, 128
        %v626 = vld [vmem:[%s625] sm:$0xff]
        %v627 = vld [vmem:[%s625 + $0x8] sm:$0xff]
        %v628 = vld [vmem:[%s625 + $0x10] sm:$0xff]
        %v629 = vld [vmem:[%s625 + $0x18] sm:$0xff]
        %v630 = vld [vmem:[%s625 + $0x20] sm:$0xff]
        %v631 = vld [vmem:[%s625 + $0x28] sm:$0xff]
        %v632 = vld [vmem:[%s625 + $0x30] sm:$0x3f]
        %v633 = vld [vmem:[%s625 + $0x38] sm:$0x3f]
        %v634 = vrot.slane %v384, 2
        %v635 = vrot.slane %v385, 2
        %v636 = vsel %vm426, %v634, %v635
        %v637 = vrot.slane %v386, 2
        %v638 = vsel %vm426, %v635, %v637
        %v639 = vrot.slane %v387, 2
        %v640 = vsel %vm426, %v637, %v639
        %v641 = vsel %vm417, %v636, 0
        %v643 = vsel %vm417, %v638, 0
        %v645 = vsel %vm417, %v640, 0
        %v647 = vsel %vm417, %v639, 0
        %v650 = vsel %vm426, %v632, 0
        %v653 = vsel %vm426, %v633, 0
        %655 = vmatprep.subr.mxu0 0.0
        %656 = vmatpush1.msra.mxu0 0.0
        %657 = vmatprep.subr.mxu0 0.0
        %658 = vmatpush1.msra.mxu0 0.0
        %659 = vmatprep.subr.mxu0 0.0
        %660 = vmatpush1.msra.mxu0 0.0
        %661 = vmatprep.subr.mxu0 0.0
        %662 = vmatpush1.msra.mxu0 0.0
        %663 = vmatprep.subr.mxu0 0.0
        %664 = vmatpush1.msra.mxu0 0.0
        %665 = vmatprep.subr.mxu0 0.0
        %666 = vmatpush1.msra.mxu0 0.0
        %667 = vmatprep.subr.mxu0 0.0
        %668 = vmatpush1.msra.mxu0 0.0
        %669 = vmatprep.subr.mxu0 0.0
        %670 = vmatpush1.msra.mxu0 0.0
        %671 = vmatprep.subr.mxu0 0.0
        %672 = vmatpush1.msra.mxu0 0.0
        %673 = vmatprep.subr.mxu0 0.0
        %674 = vmatpush1.msra.mxu0 0.0
        %675 = vmatprep.subr.mxu0 0.0
        %676 = vmatpush1.msra.mxu0 0.0
        %677 = vmatprep.subr.mxu0 0.0
        %678 = vmatpush1.msra.mxu0 0.0
        %679 = vmatprep.subr.mxu0 %v653
        %680 = vmatpush1.msra.mxu0 %v650
        %681 = vmatprep.subr.mxu0 %v631
        %682 = vmatpush1.msra.mxu0 %v630
        %683 = vmatprep.subr.mxu0 %v629
        %684 = vmatpush1.msra.mxu0 %v628
        %685 = vmatprep.subr.mxu0 %v627
        %686 = vmatpush1.msra.mxu0 %v626
        %687 = vmatprep.subr.mxu0 0.0
        %688 = vmatpush2.msra.mxu0 0.0
        %689 = vmatprep.subr.mxu0 0.0
        %690 = vmatpush2.msra.mxu0 0.0
        %691 = vmatprep.subr.mxu0 0.0
        %692 = vmatpush2.msra.mxu0 0.0
        %693 = vmatprep.subr.mxu0 0.0
        %694 = vmatpush2.msra.mxu0 0.0
        %695 = vmatprep.subr.mxu0 0.0
        %696 = vmatpush2.msra.mxu0 0.0
        %697 = vmatprep.subr.mxu0 0.0
        %698 = vmatpush2.msra.mxu0 0.0
        %699 = vmatprep.subr.mxu0 0.0
        %700 = vmatpush2.msra.mxu0 0.0
        %701 = vmatprep.subr.mxu0 0.0
        %702 = vmatpush2.msra.mxu0 0.0
        %703 = vmatprep.subr.mxu0 0.0
        %704 = vmatpush2.msra.mxu0 0.0
        %705 = vmatprep.subr.mxu0 0.0
        %706 = vmatpush2.msra.mxu0 0.0
        %707 = vmatprep.subr.mxu0 0.0
        %708 = vmatpush2.msra.mxu0 0.0
        %709 = vmatprep.subr.mxu0 0.0
        %710 = vmatpush2.msra.mxu0 0.0
        %711 = vmatprep.subr.mxu0 0.0
        %712 = vmatpush2.msra.mxu0 0.0
        %713 = vmatprep.subr.mxu0 0.0
        %714 = vmatpush2.msra.mxu0 0.0
        %715 = vmatprep.subr.mxu0 0.0
        %716 = vmatpush2.msra.mxu0 0.0
        %717 = vmatprep.subr.mxu0 0.0
        %718 = vmatpush2.msra.mxu0 0.0
        %719 = vmatprep.mubr.f32.mxu0 0.0
        %720 = vmatmul.mubr.f32.gmra.mxu0 %v641
        %v721 = vpop.f32.mrf.mxu0
        %v722 = vadd.f32 0.0, %v721
        %v723 = vpop.f32.mrf.mxu0
        %v724 = vadd.f32 0.0, %v723
        %725 = vmatprep.mubr.f32.mxu0 0.0
        %726 = vmatmul.mubr.f32.gmra.mxu0 %v643
        %v727 = vpop.f32.mrf.mxu0
        %v728 = vadd.f32 0.0, %v727
        %v729 = vpop.f32.mrf.mxu0
        %v730 = vadd.f32 0.0, %v729
        %731 = vmatprep.mubr.f32.mxu0 0.0
        %732 = vmatmul.mubr.f32.gmra.mxu0 %v645
        %v733 = vpop.f32.mrf.mxu0
        %v734 = vadd.f32 0.0, %v733
        %v735 = vpop.f32.mrf.mxu0
        %v736 = vadd.f32 0.0, %v735
        %737 = vmatprep.mubr.f32.mxu0 0.0
        %738 = vmatmul.mubr.f32.gmra.mxu0 %v647
        %v739 = vpop.f32.mrf.mxu0
        %v740 = vadd.f32 0.0, %v739
        %v741 = vpop.f32.mrf.mxu0
        %v742 = vadd.f32 0.0, %v741
        %743 = vdwg.mxu0
        %v744 = vadd.f32 %v603, %v722
        %v745 = vadd.f32 %v605, %v724
        %v746 = vadd.f32 %v609, %v728
        %v747 = vadd.f32 %v611, %v730
        %v748 = vadd.f32 %v615, %v734
        %v749 = vadd.f32 %v617, %v736
        %v750 = vadd.f32 %v621, %v740
        %v751 = vadd.f32 %v623, %v742
        %v752 = vld [vmem:[%s2] sm:$0x3]
        %v754 = vlaneseq
        %v755 = vshrl.u32 %v754, 7
        %v756 = vsub.s32 0, %v755
        %v757 = vrot.slane %v752, %v756
        %v758 = vlaneseq
        %v759 = vshrl.u32 %v758, 7
        %v760 = vsub.s32 1, %v759
        %v761 = vrot.slane %v752, %v760
        %v764 = vadd.f32 %v744, %v757
        %v765 = vadd.f32 %v745, %v761
        %v766 = vadd.f32 %v746, %v757
        %v767 = vadd.f32 %v747, %v761
        %v768 = vadd.f32 %v748, %v757
        %v769 = vadd.f32 %v749, %v761
        %v770 = vadd.f32 %v750, %v757
        %v771 = vadd.f32 %v751, %v761
        %v772 = vlaneseq
        %v773 = vshrl.u32 %v772, 7
        %v774 = vadd.s32 %v773, 8
        %v775 = vlaneseq
        %v776 = vand.u32 %v775, 127
        %v777 = vmul.u32 %v773, 2
        %v778 = vmul.u32 %v774, 2
        %vm779 = vcmp.eq.s32.totalorder %v776, %v777
        %vm780 = vcmp.eq.s32.totalorder %v776, %v778
        %v781 = vsel %vm779, 1.0, 0.0
        %v782 = vsel %vm780, 1.0, 0.0
        %v783 = vadd.s32 %v777, 1
        %v784 = vadd.s32 %v778, 1
        %vm785 = vcmp.eq.s32.totalorder %v776, %v783
        %vm786 = vcmp.eq.s32.totalorder %v776, %v784
        %v787 = vsel %vm785, 1.0, 0.0
        %v788 = vsel %vm786, 1.0, 0.0
        %vm789 = vcmask 228352
        %v791 = vsel %vm789, %v781, 0
        %v794 = vsel %vm789, %v782, 0
        %vm796 = vcmask 1043456
        %v798 = vsel %vm796, %v770, 0
        %v801 = vsel %vm796, %v771, 0
        %803 = vmatprep.subr.mxu0 0.0
        %804 = vmatpush1.msra.mxu0 0.0
        %805 = vmatprep.subr.mxu0 0.0
        %806 = vmatpush1.msra.mxu0 0.0
        %807 = vmatprep.subr.mxu0 0.0
        %808 = vmatpush1.msra.mxu0 0.0
        %809 = vmatprep.subr.mxu0 0.0
        %810 = vmatpush1.msra.mxu0 0.0
        %811 = vmatprep.subr.mxu0 0.0
        %812 = vmatpush1.msra.mxu0 0.0
        %813 = vmatprep.subr.mxu0 0.0
        %814 = vmatpush1.msra.mxu0 0.0
        %815 = vmatprep.subr.mxu0 0.0
        %816 = vmatpush1.msra.mxu0 0.0
        %817 = vmatprep.subr.mxu0 0.0
        %818 = vmatpush1.msra.mxu0 0.0
        %819 = vmatprep.subr.mxu0 0.0
        %820 = vmatpush1.msra.mxu0 0.0
        %821 = vmatprep.subr.mxu0 0.0
        %822 = vmatpush1.msra.mxu0 0.0
        %823 = vmatprep.subr.mxu0 0.0
        %824 = vmatpush1.msra.mxu0 0.0
        %825 = vmatprep.subr.mxu0 0.0
        %826 = vmatpush1.msra.mxu0 0.0
        %827 = vmatprep.subr.mxu0 %v801
        %828 = vmatpush1.msra.mxu0 %v798
        %829 = vmatprep.subr.mxu0 %v769
        %830 = vmatpush1.msra.mxu0 %v768
        %831 = vmatprep.subr.mxu0 %v767
        %832 = vmatpush1.msra.mxu0 %v766
        %833 = vmatprep.subr.mxu0 %v765
        %834 = vmatpush1.msra.mxu0 %v764
        %835 = vmatprep.subr.mxu0 0.0
        %836 = vmatpush2.msra.mxu0 0.0
        %837 = vmatprep.subr.mxu0 0.0
        %838 = vmatpush2.msra.mxu0 0.0
        %839 = vmatprep.subr.mxu0 0.0
        %840 = vmatpush2.msra.mxu0 0.0
        %841 = vmatprep.subr.mxu0 0.0
        %842 = vmatpush2.msra.mxu0 0.0
        %843 = vmatprep.subr.mxu0 0.0
        %844 = vmatpush2.msra.mxu0 0.0
        %845 = vmatprep.subr.mxu0 0.0
        %846 = vmatpush2.msra.mxu0 0.0
        %847 = vmatprep.subr.mxu0 0.0
        %848 = vmatpush2.msra.mxu0 0.0
        %849 = vmatprep.subr.mxu0 0.0
        %850 = vmatpush2.msra.mxu0 0.0
        %851 = vmatprep.subr.mxu0 0.0
        %852 = vmatpush2.msra.mxu0 0.0
        %853 = vmatprep.subr.mxu0 0.0
        %854 = vmatpush2.msra.mxu0 0.0
        %855 = vmatprep.subr.mxu0 0.0
        %856 = vmatpush2.msra.mxu0 0.0
        %857 = vmatprep.subr.mxu0 0.0
        %858 = vmatpush2.msra.mxu0 0.0
        %859 = vmatprep.subr.mxu0 0.0
        %860 = vmatpush2.msra.mxu0 0.0
        %861 = vmatprep.subr.mxu0 0.0
        %862 = vmatpush2.msra.mxu0 0.0
        %863 = vmatprep.subr.mxu0 0.0
        %864 = vmatpush2.msra.mxu0 0.0
        %865 = vmatprep.subr.mxu0 0.0
        %866 = vmatpush2.msra.mxu0 0.0
        %867 = vmatprep.mubr.f32.mxu0 0.0
        %868 = vmatmul.mubr.f32.gmra.mxu0 %v791
        %v869 = vpop.f32.mrf.mxu0
        %v870 = vadd.f32 0.0, %v869
        %v871 = vpop.f32.mrf.mxu0
        %v872 = vadd.f32 0.0, %v871
        %873 = vmatprep.mubr.f32.mxu0 0.0
        %874 = vmatmul.mubr.f32.gmra.mxu0 %v794
        %v875 = vpop.f32.mrf.mxu0
        %v876 = vadd.f32 0.0, %v875
        %v877 = vpop.f32.mrf.mxu0
        %v878 = vadd.f32 0.0, %v877
        %879 = vdwg.mxu0
        %v881 = vsel %vm789, %v787, 0
        %v884 = vsel %vm789, %v788, 0
        %886 = vmatprep.subr.mxu0 0.0
        %887 = vmatpush1.msra.mxu0 0.0
        %888 = vmatprep.subr.mxu0 0.0
        %889 = vmatpush1.msra.mxu0 0.0
        %890 = vmatprep.subr.mxu0 0.0
        %891 = vmatpush1.msra.mxu0 0.0
        %892 = vmatprep.subr.mxu0 0.0
        %893 = vmatpush1.msra.mxu0 0.0
        %894 = vmatprep.subr.mxu0 0.0
        %895 = vmatpush1.msra.mxu0 0.0
        %896 = vmatprep.subr.mxu0 0.0
        %897 = vmatpush1.msra.mxu0 0.0
        %898 = vmatprep.subr.mxu0 0.0
        %899 = vmatpush1.msra.mxu0 0.0
        %900 = vmatprep.subr.mxu0 0.0
        %901 = vmatpush1.msra.mxu0 0.0
        %902 = vmatprep.subr.mxu0 0.0
        %903 = vmatpush1.msra.mxu0 0.0
        %904 = vmatprep.subr.mxu0 0.0
        %905 = vmatpush1.msra.mxu0 0.0
        %906 = vmatprep.subr.mxu0 0.0
        %907 = vmatpush1.msra.mxu0 0.0
        %908 = vmatprep.subr.mxu0 0.0
        %909 = vmatpush1.msra.mxu0 0.0
        %910 = vmatprep.subr.mxu0 %v801
        %911 = vmatpush1.msra.mxu0 %v798
        %912 = vmatprep.subr.mxu0 %v769
        %913 = vmatpush1.msra.mxu0 %v768
        %914 = vmatprep.subr.mxu0 %v767
        %915 = vmatpush1.msra.mxu0 %v766
        %916 = vmatprep.subr.mxu0 %v765
        %917 = vmatpush1.msra.mxu0 %v764
        %918 = vmatprep.subr.mxu0 0.0
        %919 = vmatpush2.msra.mxu0 0.0
        %920 = vmatprep.subr.mxu0 0.0
        %921 = vmatpush2.msra.mxu0 0.0
        %922 = vmatprep.subr.mxu0 0.0
        %923 = vmatpush2.msra.mxu0 0.0
        %924 = vmatprep.subr.mxu0 0.0
        %925 = vmatpush2.msra.mxu0 0.0
        %926 = vmatprep.subr.mxu0 0.0
        %927 = vmatpush2.msra.mxu0 0.0
        %928 = vmatprep.subr.mxu0 0.0
        %929 = vmatpush2.msra.mxu0 0.0
        %930 = vmatprep.subr.mxu0 0.0
        %931 = vmatpush2.msra.mxu0 0.0
        %932 = vmatprep.subr.mxu0 0.0
        %933 = vmatpush2.msra.mxu0 0.0
        %934 = vmatprep.subr.mxu0 0.0
        %935 = vmatpush2.msra.mxu0 0.0
        %936 = vmatprep.subr.mxu0 0.0
        %937 = vmatpush2.msra.mxu0 0.0
        %938 = vmatprep.subr.mxu0 0.0
        %939 = vmatpush2.msra.mxu0 0.0
        %940 = vmatprep.subr.mxu0 0.0
        %941 = vmatpush2.msra.mxu0 0.0
        %942 = vmatprep.subr.mxu0 0.0
        %943 = vmatpush2.msra.mxu0 0.0
        %944 = vmatprep.subr.mxu0 0.0
        %945 = vmatpush2.msra.mxu0 0.0
        %946 = vmatprep.subr.mxu0 0.0
        %947 = vmatpush2.msra.mxu0 0.0
        %948 = vmatprep.subr.mxu0 0.0
        %949 = vmatpush2.msra.mxu0 0.0
        %950 = vmatprep.mubr.f32.mxu0 0.0
        %951 = vmatmul.mubr.f32.gmra.mxu0 %v881
        %v952 = vpop.f32.mrf.mxu0
        %v953 = vadd.f32 0.0, %v952
        %v954 = vpop.f32.mrf.mxu0
        %v955 = vadd.f32 0.0, %v954
        %956 = vmatprep.mubr.f32.mxu0 0.0
        %957 = vmatmul.mubr.f32.gmra.mxu0 %v884
        %v958 = vpop.f32.mrf.mxu0
        %v959 = vadd.f32 0.0, %v958
        %v960 = vpop.f32.mrf.mxu0
        %v961 = vadd.f32 0.0, %v960
        %962 = vdwg.mxu0
        %v963 = vmax.f32 %v870, %v953
        %v964 = vmax.f32 %v872, %v955
        %v965 = vmax.f32 %v876, %v959
        %v966 = vmax.f32 %v878, %v961
        %v967 = vadd.s32 %v773, 16
        %v968 = vadd.s32 %v773, 24
        %v969 = vadd.s32 %v773, 32
        %v970 = vadd.s32 %v773, 40
        %v971 = vadd.s32 %v773, 48
        %v972 = vadd.s32 %v773, 56
        %v973 = vadd.s32 %v773, 64
        %v974 = vadd.s32 %v773, 72
        %v975 = vadd.s32 %v773, 80
        %v976 = vadd.s32 %v773, 88
        %v977 = vadd.s32 %v773, 96
        %v978 = vadd.s32 %v773, 104
        %v979 = vadd.s32 %v773, 112
        %v980 = vadd.s32 %v773, 120
        %v981 = vadd.s32 %v773, 128
        %v982 = vadd.s32 %v773, 136
        %v983 = vadd.s32 %v773, 144
        %v984 = vadd.s32 %v773, 152
        %v985 = vadd.s32 %v773, 160
        %v986 = vmul.u32 %v776, 2
        %vm987 = vcmp.eq.s32.totalorder %v773, %v986
        %vm988 = vcmp.eq.s32.totalorder %v774, %v986
        %vm989 = vcmp.eq.s32.totalorder %v967, %v986
        %vm990 = vcmp.eq.s32.totalorder %v968, %v986
        %vm991 = vcmp.eq.s32.totalorder %v969, %v986
        %vm992 = vcmp.eq.s32.totalorder %v970, %v986
        %vm993 = vcmp.eq.s32.totalorder %v971, %v986
        %vm994 = vcmp.eq.s32.totalorder %v972, %v986
        %vm995 = vcmp.eq.s32.totalorder %v973, %v986
        %vm996 = vcmp.eq.s32.totalorder %v974, %v986
        %vm997 = vcmp.eq.s32.totalorder %v975, %v986
        %vm998 = vcmp.eq.s32.totalorder %v976, %v986
        %vm999 = vcmp.eq.s32.totalorder %v977, %v986
        %vm1000 = vcmp.eq.s32.totalorder %v978, %v986
        %vm1001 = vcmp.eq.s32.totalorder %v979, %v986
        %vm1002 = vcmp.eq.s32.totalorder %v980, %v986
        %vm1003 = vcmp.eq.s32.totalorder %v981, %v986
        %vm1004 = vcmp.eq.s32.totalorder %v982, %v986
        %vm1005 = vcmp.eq.s32.totalorder %v983, %v986
        %vm1006 = vcmp.eq.s32.totalorder %v984, %v986
        %vm1007 = vcmp.eq.s32.totalorder %v985, %v986
        %v1008 = vsel %vm987, 1.0, 0.0
        %v1009 = vsel %vm988, 1.0, 0.0
        %v1010 = vsel %vm989, 1.0, 0.0
        %v1011 = vsel %vm990, 1.0, 0.0
        %v1012 = vsel %vm991, 1.0, 0.0
        %v1013 = vsel %vm992, 1.0, 0.0
        %v1014 = vsel %vm993, 1.0, 0.0
        %v1015 = vsel %vm994, 1.0, 0.0
        %v1016 = vsel %vm995, 1.0, 0.0
        %v1017 = vsel %vm996, 1.0, 0.0
        %v1018 = vsel %vm997, 1.0, 0.0
        %v1019 = vsel %vm998, 1.0, 0.0
        %v1020 = vsel %vm999, 1.0, 0.0
        %v1021 = vsel %vm1000, 1.0, 0.0
        %v1022 = vsel %vm1001, 1.0, 0.0
        %v1023 = vsel %vm1002, 1.0, 0.0
        %v1024 = vsel %vm1003, 1.0, 0.0
        %v1025 = vsel %vm1004, 1.0, 0.0
        %v1026 = vsel %vm1005, 1.0, 0.0
        %v1027 = vsel %vm1006, 1.0, 0.0
        %v1028 = vsel %vm1007, 1.0, 0.0
        %v1029 = vadd.s32 %v986, 1
        %vm1030 = vcmp.eq.s32.totalorder %v773, %v1029
        %vm1031 = vcmp.eq.s32.totalorder %v774, %v1029
        %vm1032 = vcmp.eq.s32.totalorder %v967, %v1029
        %vm1033 = vcmp.eq.s32.totalorder %v968, %v1029
        %vm1034 = vcmp.eq.s32.totalorder %v969, %v1029
        %vm1035 = vcmp.eq.s32.totalorder %v970, %v1029
        %vm1036 = vcmp.eq.s32.totalorder %v971, %v1029
        %vm1037 = vcmp.eq.s32.totalorder %v972, %v1029
        %vm1038 = vcmp.eq.s32.totalorder %v973, %v1029
        %vm1039 = vcmp.eq.s32.totalorder %v974, %v1029
        %vm1040 = vcmp.eq.s32.totalorder %v975, %v1029
        %vm1041 = vcmp.eq.s32.totalorder %v976, %v1029
        %vm1042 = vcmp.eq.s32.totalorder %v977, %v1029
        %vm1043 = vcmp.eq.s32.totalorder %v978, %v1029
        %vm1044 = vcmp.eq.s32.totalorder %v979, %v1029
        %vm1045 = vcmp.eq.s32.totalorder %v980, %v1029
        %vm1046 = vcmp.eq.s32.totalorder %v981, %v1029
        %vm1047 = vcmp.eq.s32.totalorder %v982, %v1029
        %vm1048 = vcmp.eq.s32.totalorder %v983, %v1029
        %vm1049 = vcmp.eq.s32.totalorder %v984, %v1029
        %vm1050 = vcmp.eq.s32.totalorder %v985, %v1029
        %v1051 = vsel %vm1030, 1.0, 0.0
        %v1052 = vsel %vm1031, 1.0, 0.0
        %v1053 = vsel %vm1032, 1.0, 0.0
        %v1054 = vsel %vm1033, 1.0, 0.0
        %v1055 = vsel %vm1034, 1.0, 0.0
        %v1056 = vsel %vm1035, 1.0, 0.0
        %v1057 = vsel %vm1036, 1.0, 0.0
        %v1058 = vsel %vm1037, 1.0, 0.0
        %v1059 = vsel %vm1038, 1.0, 0.0
        %v1060 = vsel %vm1039, 1.0, 0.0
        %v1061 = vsel %vm1040, 1.0, 0.0
        %v1062 = vsel %vm1041, 1.0, 0.0
        %v1063 = vsel %vm1042, 1.0, 0.0
        %v1064 = vsel %vm1043, 1.0, 0.0
        %v1065 = vsel %vm1044, 1.0, 0.0
        %v1066 = vsel %vm1045, 1.0, 0.0
        %v1067 = vsel %vm1046, 1.0, 0.0
        %v1068 = vsel %vm1047, 1.0, 0.0
        %v1069 = vsel %vm1048, 1.0, 0.0
        %v1070 = vsel %vm1049, 1.0, 0.0
        %v1071 = vsel %vm1050, 1.0, 0.0
        %vm1072 = vcmask 326656
        %v1074 = vsel %vm1072, %v964, 0
        %v1077 = vsel %vm1072, %v966, 0
        %1079 = vmatprep.subr.mxu0 0.0
        %1080 = vmatpush1.msra.mxu0 %v1023
        %1081 = vmatprep.subr.mxu0 0.0
        %1082 = vmatpush1.msra.mxu0 %v1022
        %1083 = vmatprep.subr.mxu0 0.0
        %1084 = vmatpush1.msra.mxu0 %v1021
        %1085 = vmatprep.subr.mxu0 0.0
        %1086 = vmatpush1.msra.mxu0 %v1020
        %1087 = vmatprep.subr.mxu0 0.0
        %1088 = vmatpush1.msra.mxu0 %v1019
        %1089 = vmatprep.subr.mxu0 0.0
        %1090 = vmatpush1.msra.mxu0 %v1018
        %1091 = vmatprep.subr.mxu0 0.0
        %1092 = vmatpush1.msra.mxu0 %v1017
        %1093 = vmatprep.subr.mxu0 0.0
        %1094 = vmatpush1.msra.mxu0 %v1016
        %1095 = vmatprep.subr.mxu0 0.0
        %1096 = vmatpush1.msra.mxu0 %v1015
        %1097 = vmatprep.subr.mxu0 0.0
        %1098 = vmatpush1.msra.mxu0 %v1014
        %1099 = vmatprep.subr.mxu0 0.0
        %1100 = vmatpush1.msra.mxu0 %v1013
        %1101 = vmatprep.subr.mxu0 0.0
        %1102 = vmatpush1.msra.mxu0 %v1012
        %1103 = vmatprep.subr.mxu0 0.0
        %1104 = vmatpush1.msra.mxu0 %v1011
        %1105 = vmatprep.subr.mxu0 0.0
        %1106 = vmatpush1.msra.mxu0 %v1010
        %1107 = vmatprep.subr.mxu0 0.0
        %1108 = vmatpush1.msra.mxu0 %v1009
        %1109 = vmatprep.subr.mxu0 0.0
        %1110 = vmatpush1.msra.mxu0 %v1008
        %1111 = vmatprep.subr.mxu0 0.0
        %1112 = vmatpush2.msra.mxu0 0.0
        %1113 = vmatprep.subr.mxu0 0.0
        %1114 = vmatpush2.msra.mxu0 0.0
        %1115 = vmatprep.subr.mxu0 0.0
        %1116 = vmatpush2.msra.mxu0 0.0
        %1117 = vmatprep.subr.mxu0 0.0
        %1118 = vmatpush2.msra.mxu0 0.0
        %1119 = vmatprep.subr.mxu0 0.0
        %1120 = vmatpush2.msra.mxu0 0.0
        %1121 = vmatprep.subr.mxu0 0.0
        %1122 = vmatpush2.msra.mxu0 0.0
        %1123 = vmatprep.subr.mxu0 0.0
        %1124 = vmatpush2.msra.mxu0 0.0
        %1125 = vmatprep.subr.mxu0 0.0
        %1126 = vmatpush2.msra.mxu0 0.0
        %1127 = vmatprep.subr.mxu0 0.0
        %1128 = vmatpush2.msra.mxu0 0.0
        %1129 = vmatprep.subr.mxu0 0.0
        %1130 = vmatpush2.msra.mxu0 0.0
        %1131 = vmatprep.subr.mxu0 0.0
        %1132 = vmatpush2.msra.mxu0 0.0
        %1133 = vmatprep.subr.mxu0 0.0
        %1134 = vmatpush2.msra.mxu0 %v1028
        %1135 = vmatprep.subr.mxu0 0.0
        %1136 = vmatpush2.msra.mxu0 %v1027
        %1137 = vmatprep.subr.mxu0 0.0
        %1138 = vmatpush2.msra.mxu0 %v1026
        %1139 = vmatprep.subr.mxu0 0.0
        %1140 = vmatpush2.msra.mxu0 %v1025
        %1141 = vmatprep.subr.mxu0 0.0
        %1142 = vmatpush2.msra.mxu0 %v1024
        %1143 = vmatprep.mubr.f32.mxu0 %v1074
        %1144 = vmatmul.mubr.f32.gmra.mxu0 %v963
        %v1145 = vpop.f32.mrf.mxu0
        %v1146 = vadd.f32 0.0, %v1145
        %v1147 = vpop.f32.mrf.mxu0
        %1148 = vmatprep.mubr.f32.mxu0 %v1077
        %1149 = vmatmul.mubr.f32.gmra.mxu0 %v965
        %v1150 = vpop.f32.mrf.mxu0
        %v1151 = vadd.f32 0.0, %v1150
        %v1152 = vpop.f32.mrf.mxu0
        %1153 = vdwg.mxu0
        %1154 = vmatprep.subr.mxu0 0.0
        %1155 = vmatpush1.msra.mxu0 %v1066
        %1156 = vmatprep.subr.mxu0 0.0
        %1157 = vmatpush1.msra.mxu0 %v1065
        %1158 = vmatprep.subr.mxu0 0.0
        %1159 = vmatpush1.msra.mxu0 %v1064
        %1160 = vmatprep.subr.mxu0 0.0
        %1161 = vmatpush1.msra.mxu0 %v1063
        %1162 = vmatprep.subr.mxu0 0.0
        %1163 = vmatpush1.msra.mxu0 %v1062
        %1164 = vmatprep.subr.mxu0 0.0
        %1165 = vmatpush1.msra.mxu0 %v1061
        %1166 = vmatprep.subr.mxu0 0.0
        %1167 = vmatpush1.msra.mxu0 %v1060
        %1168 = vmatprep.subr.mxu0 0.0
        %1169 = vmatpush1.msra.mxu0 %v1059
        %1170 = vmatprep.subr.mxu0 0.0
        %1171 = vmatpush1.msra.mxu0 %v1058
        %1172 = vmatprep.subr.mxu0 0.0
        %1173 = vmatpush1.msra.mxu0 %v1057
        %1174 = vmatprep.subr.mxu0 0.0
        %1175 = vmatpush1.msra.mxu0 %v1056
        %1176 = vmatprep.subr.mxu0 0.0
        %1177 = vmatpush1.msra.mxu0 %v1055
        %1178 = vmatprep.subr.mxu0 0.0
        %1179 = vmatpush1.msra.mxu0 %v1054
        %1180 = vmatprep.subr.mxu0 0.0
        %1181 = vmatpush1.msra.mxu0 %v1053
        %1182 = vmatprep.subr.mxu0 0.0
        %1183 = vmatpush1.msra.mxu0 %v1052
        %1184 = vmatprep.subr.mxu0 0.0
        %1185 = vmatpush1.msra.mxu0 %v1051
        %1186 = vmatprep.subr.mxu0 0.0
        %1187 = vmatpush2.msra.mxu0 0.0
        %1188 = vmatprep.subr.mxu0 0.0
        %1189 = vmatpush2.msra.mxu0 0.0
        %1190 = vmatprep.subr.mxu0 0.0
        %1191 = vmatpush2.msra.mxu0 0.0
        %1192 = vmatprep.subr.mxu0 0.0
        %1193 = vmatpush2.msra.mxu0 0.0
        %1194 = vmatprep.subr.mxu0 0.0
        %1195 = vmatpush2.msra.mxu0 0.0
        %1196 = vmatprep.subr.mxu0 0.0
        %1197 = vmatpush2.msra.mxu0 0.0
        %1198 = vmatprep.subr.mxu0 0.0
        %1199 = vmatpush2.msra.mxu0 0.0
        %1200 = vmatprep.subr.mxu0 0.0
        %1201 = vmatpush2.msra.mxu0 0.0
        %1202 = vmatprep.subr.mxu0 0.0
        %1203 = vmatpush2.msra.mxu0 0.0
        %1204 = vmatprep.subr.mxu0 0.0
        %1205 = vmatpush2.msra.mxu0 0.0
        %1206 = vmatprep.subr.mxu0 0.0
        %1207 = vmatpush2.msra.mxu0 0.0
        %1208 = vmatprep.subr.mxu0 0.0
        %1209 = vmatpush2.msra.mxu0 %v1071
        %1210 = vmatprep.subr.mxu0 0.0
        %1211 = vmatpush2.msra.mxu0 %v1070
        %1212 = vmatprep.subr.mxu0 0.0
        %1213 = vmatpush2.msra.mxu0 %v1069
        %1214 = vmatprep.subr.mxu0 0.0
        %1215 = vmatpush2.msra.mxu0 %v1068
        %1216 = vmatprep.subr.mxu0 0.0
        %1217 = vmatpush2.msra.mxu0 %v1067
        %1218 = vmatprep.mubr.f32.mxu0 %v1074
        %1219 = vmatmul.mubr.f32.gmra.mxu0 %v963
        %v1220 = vpop.f32.mrf.mxu0
        %v1221 = vadd.f32 0.0, %v1220
        %v1222 = vpop.f32.mrf.mxu0
        %1223 = vmatprep.mubr.f32.mxu0 %v1077
        %1224 = vmatmul.mubr.f32.gmra.mxu0 %v965
        %v1225 = vpop.f32.mrf.mxu0
        %v1226 = vadd.f32 0.0, %v1225
        %v1227 = vpop.f32.mrf.mxu0
        %1228 = vdwg.mxu0
        %v1229 = vmax.f32 %v1146, %v1221
        %v1230 = vmax.f32 %v1151, %v1226
        %v1231 = vld [vmem:[%s3] sm:$0xff]
        %v1232 = vld [vmem:[%s3 + $0x8] sm:$0xff]
        %v1233 = vld [vmem:[%s3 + $0x10] sm:$0xff]
        %v1234 = vld [vmem:[%s3 + $0x18] sm:$0xff]
        %v1235 = vld [vmem:[%s3 + $0x20] sm:$0xff]
        %v1236 = vld [vmem:[%s3 + $0x28] sm:$0xff]
        %v1237 = vld [vmem:[%s3 + $0x30] sm:$0xff]
        %v1238 = vld [vmem:[%s3 + $0x38] sm:$0xff]
        %v1239 = vld [vmem:[%s3 + $0x40] sm:$0xff]
        %v1240 = vld [vmem:[%s3 + $0x48] sm:$0xff]
        %v1241 = vld [vmem:[%s3 + $0x50] sm:$0xff]
        %v1242 = vld [vmem:[%s3 + $0x58] sm:$0xff]
        %v1243 = vld [vmem:[%s3 + $0x60] sm:$0xff]
        %v1244 = vld [vmem:[%s3 + $0x68] sm:$0xff]
        %v1245 = vld [vmem:[%s3 + $0x70] sm:$0xff]
        %v1246 = vld [vmem:[%s3 + $0x78] sm:$0xff]
        %v1247 = vld [vmem:[%s3 + $0x80] sm:$0xff]
        %v1248 = vld [vmem:[%s3 + $0x88] sm:$0xff]
        %v1249 = vld [vmem:[%s3 + $0x90] sm:$0xff]
        %v1250 = vld [vmem:[%s3 + $0x98] sm:$0xff]
        %v1251 = vld [vmem:[%s3 + $0xa0] sm:$0xf]
        %v1252 = vld [vmem:[%s3 + $0xa8] sm:$0xf]
        %s1253 = scalar_lea.vmem %s3, 176
        %v1254 = vld [vmem:[%s1253] sm:$0xff]
        %v1255 = vld [vmem:[%s1253 + $0x8] sm:$0xff]
        %v1256 = vld [vmem:[%s1253 + $0x10] sm:$0xff]
        %v1257 = vld [vmem:[%s1253 + $0x18] sm:$0xff]
        %v1258 = vld [vmem:[%s1253 + $0x20] sm:$0xff]
        %v1259 = vld [vmem:[%s1253 + $0x28] sm:$0xff]
        %v1260 = vld [vmem:[%s1253 + $0x30] sm:$0xff]
        %v1261 = vld [vmem:[%s1253 + $0x38] sm:$0xff]
        %v1262 = vld [vmem:[%s1253 + $0x40] sm:$0xff]
        %v1263 = vld [vmem:[%s1253 + $0x48] sm:$0xff]
        %v1264 = vld [vmem:[%s1253 + $0x50] sm:$0xff]
        %v1265 = vld [vmem:[%s1253 + $0x58] sm:$0xff]
        %v1266 = vld [vmem:[%s1253 + $0x60] sm:$0xff]
        %v1267 = vld [vmem:[%s1253 + $0x68] sm:$0xff]
        %v1268 = vld [vmem:[%s1253 + $0x70] sm:$0xff]
        %v1269 = vld [vmem:[%s1253 + $0x78] sm:$0xff]
        %v1270 = vld [vmem:[%s1253 + $0x80] sm:$0xff]
        %v1271 = vld [vmem:[%s1253 + $0x88] sm:$0xff]
        %v1272 = vld [vmem:[%s1253 + $0x90] sm:$0xff]
        %v1273 = vld [vmem:[%s1253 + $0x98] sm:$0xff]
        %v1274 = vld [vmem:[%s1253 + $0xa0] sm:$0xf]
        %v1275 = vld [vmem:[%s1253 + $0xa8] sm:$0xf]
        %v1278 = vrot.slane %v1229, 1
        %v1279 = vrot.slane %v1230, 1
        %v1280 = vsel %vm409, %v1278, %v1279
        %vm1281 = vcmask 687104
        %v1282 = vsel %vm1281, %v1280, 0
        %v1284 = vsel %vm1281, %v1279, 0
        %v1287 = vsel %vm796, %v1274, 0
        %v1290 = vsel %vm796, %v1275, 0
        %1292 = vmatprep.subr.mxu0 0.0
        %1293 = vmatpush1.msra.mxu0 0.0
        %1294 = vmatprep.subr.mxu0 0.0
        %1295 = vmatpush1.msra.mxu0 0.0
        %1296 = vmatprep.subr.mxu0 0.0
        %1297 = vmatpush1.msra.mxu0 0.0
        %1298 = vmatprep.subr.mxu0 0.0
        %1299 = vmatpush1.msra.mxu0 0.0
        %1300 = vmatprep.subr.mxu0 0.0
        %1301 = vmatpush1.msra.mxu0 0.0
        %1302 = vmatprep.subr.mxu0 %v1290
        %1303 = vmatpush1.msra.mxu0 %v1287
        %1304 = vmatprep.subr.mxu0 %v1273
        %1305 = vmatpush1.msra.mxu0 %v1272
        %1306 = vmatprep.subr.mxu0 %v1271
        %1307 = vmatpush1.msra.mxu0 %v1270
        %1308 = vmatprep.subr.mxu0 %v1269
        %1309 = vmatpush1.msra.mxu0 %v1268
        %1310 = vmatprep.subr.mxu0 %v1267
        %1311 = vmatpush1.msra.mxu0 %v1266
        %1312 = vmatprep.subr.mxu0 %v1265
        %1313 = vmatpush1.msra.mxu0 %v1264
        %1314 = vmatprep.subr.mxu0 %v1263
        %1315 = vmatpush1.msra.mxu0 %v1262
        %1316 = vmatprep.subr.mxu0 %v1261
        %1317 = vmatpush1.msra.mxu0 %v1260
        %1318 = vmatprep.subr.mxu0 %v1259
        %1319 = vmatpush1.msra.mxu0 %v1258
        %1320 = vmatprep.subr.mxu0 %v1257
        %1321 = vmatpush1.msra.mxu0 %v1256
        %1322 = vmatprep.subr.mxu0 %v1255
        %1323 = vmatpush1.msra.mxu0 %v1254
        %1324 = vmatprep.subr.mxu0 0.0
        %1325 = vmatpush2.msra.mxu0 0.0
        %1326 = vmatprep.subr.mxu0 0.0
        %1327 = vmatpush2.msra.mxu0 0.0
        %1328 = vmatprep.subr.mxu0 0.0
        %1329 = vmatpush2.msra.mxu0 0.0
        %1330 = vmatprep.subr.mxu0 0.0
        %1331 = vmatpush2.msra.mxu0 0.0
        %1332 = vmatprep.subr.mxu0 0.0
        %1333 = vmatpush2.msra.mxu0 0.0
        %1334 = vmatprep.subr.mxu0 0.0
        %1335 = vmatpush2.msra.mxu0 0.0
        %1336 = vmatprep.subr.mxu0 0.0
        %1337 = vmatpush2.msra.mxu0 0.0
        %1338 = vmatprep.subr.mxu0 0.0
        %1339 = vmatpush2.msra.mxu0 0.0
        %1340 = vmatprep.subr.mxu0 0.0
        %1341 = vmatpush2.msra.mxu0 0.0
        %1342 = vmatprep.subr.mxu0 0.0
        %1343 = vmatpush2.msra.mxu0 0.0
        %1344 = vmatprep.subr.mxu0 0.0
        %1345 = vmatpush2.msra.mxu0 0.0
        %1346 = vmatprep.subr.mxu0 0.0
        %1347 = vmatpush2.msra.mxu0 0.0
        %1348 = vmatprep.subr.mxu0 0.0
        %1349 = vmatpush2.msra.mxu0 0.0
        %1350 = vmatprep.subr.mxu0 0.0
        %1351 = vmatpush2.msra.mxu0 0.0
        %1352 = vmatprep.subr.mxu0 0.0
        %1353 = vmatpush2.msra.mxu0 0.0
        %1354 = vmatprep.subr.mxu0 0.0
        %1355 = vmatpush2.msra.mxu0 0.0
        %1356 = vmatprep.mubr.f32.mxu0 0.0
        %1357 = vmatmul.mubr.f32.gmra.mxu0 %v1282
        %v1358 = vpop.f32.mrf.mxu0
        %v1359 = vadd.f32 0.0, %v1358
        %v1360 = vpop.f32.mrf.mxu0
        %v1361 = vadd.f32 0.0, %v1360
        %1362 = vmatprep.mubr.f32.mxu0 0.0
        %1363 = vmatmul.mubr.f32.gmra.mxu0 %v1284
        %v1364 = vpop.f32.mrf.mxu0
        %v1365 = vadd.f32 0.0, %v1364
        %v1366 = vpop.f32.mrf.mxu0
        %v1367 = vadd.f32 0.0, %v1366
        %1368 = vdwg.mxu0
        %v1369 = vsel %vm1281, %v1229, 0
        %v1371 = vsel %vm1281, %v1230, 0
        %v1374 = vsel %vm796, %v1251, 0
        %v1377 = vsel %vm796, %v1252, 0
        %1379 = vmatprep.subr.mxu0 0.0
        %1380 = vmatpush1.msra.mxu0 0.0
        %1381 = vmatprep.subr.mxu0 0.0
        %1382 = vmatpush1.msra.mxu0 0.0
        %1383 = vmatprep.subr.mxu0 0.0
        %1384 = vmatpush1.msra.mxu0 0.0
        %1385 = vmatprep.subr.mxu0 0.0
        %1386 = vmatpush1.msra.mxu0 0.0
        %1387 = vmatprep.subr.mxu0 0.0
        %1388 = vmatpush1.msra.mxu0 0.0
        %1389 = vmatprep.subr.mxu0 %v1377
        %1390 = vmatpush1.msra.mxu0 %v1374
        %1391 = vmatprep.subr.mxu0 %v1250
        %1392 = vmatpush1.msra.mxu0 %v1249
        %1393 = vmatprep.subr.mxu0 %v1248
        %1394 = vmatpush1.msra.mxu0 %v1247
        %1395 = vmatprep.subr.mxu0 %v1246
        %1396 = vmatpush1.msra.mxu0 %v1245
        %1397 = vmatprep.subr.mxu0 %v1244
        %1398 = vmatpush1.msra.mxu0 %v1243
        %1399 = vmatprep.subr.mxu0 %v1242
        %1400 = vmatpush1.msra.mxu0 %v1241
        %1401 = vmatprep.subr.mxu0 %v1240
        %1402 = vmatpush1.msra.mxu0 %v1239
        %1403 = vmatprep.subr.mxu0 %v1238
        %1404 = vmatpush1.msra.mxu0 %v1237
        %1405 = vmatprep.subr.mxu0 %v1236
        %1406 = vmatpush1.msra.mxu0 %v1235
        %1407 = vmatprep.subr.mxu0 %v1234
        %1408 = vmatpush1.msra.mxu0 %v1233
        %1409 = vmatprep.subr.mxu0 %v1232
        %1410 = vmatpush1.msra.mxu0 %v1231
        %1411 = vmatprep.subr.mxu0 0.0
        %1412 = vmatpush2.msra.mxu0 0.0
        %1413 = vmatprep.subr.mxu0 0.0
        %1414 = vmatpush2.msra.mxu0 0.0
        %1415 = vmatprep.subr.mxu0 0.0
        %1416 = vmatpush2.msra.mxu0 0.0
        %1417 = vmatprep.subr.mxu0 0.0
        %1418 = vmatpush2.msra.mxu0 0.0
        %1419 = vmatprep.subr.mxu0 0.0
        %1420 = vmatpush2.msra.mxu0 0.0
        %1421 = vmatprep.subr.mxu0 0.0
        %1422 = vmatpush2.msra.mxu0 0.0
        %1423 = vmatprep.subr.mxu0 0.0
        %1424 = vmatpush2.msra.mxu0 0.0
        %1425 = vmatprep.subr.mxu0 0.0
        %1426 = vmatpush2.msra.mxu0 0.0
        %1427 = vmatprep.subr.mxu0 0.0
        %1428 = vmatpush2.msra.mxu0 0.0
        %1429 = vmatprep.subr.mxu0 0.0
        %1430 = vmatpush2.msra.mxu0 0.0
        %1431 = vmatprep.subr.mxu0 0.0
        %1432 = vmatpush2.msra.mxu0 0.0
        %1433 = vmatprep.subr.mxu0 0.0
        %1434 = vmatpush2.msra.mxu0 0.0
        %1435 = vmatprep.subr.mxu0 0.0
        %1436 = vmatpush2.msra.mxu0 0.0
        %1437 = vmatprep.subr.mxu0 0.0
        %1438 = vmatpush2.msra.mxu0 0.0
        %1439 = vmatprep.subr.mxu0 0.0
        %1440 = vmatpush2.msra.mxu0 0.0
        %1441 = vmatprep.subr.mxu0 0.0
        %1442 = vmatpush2.msra.mxu0 0.0
        %1443 = vmatprep.mubr.f32.mxu0 0.0
        %1444 = vmatmul.mubr.f32.gmra.mxu0 %v1369
        %v1445 = vpop.f32.mrf.mxu0
        %v1446 = vadd.f32 %v1359, %v1445
        %v1447 = vpop.f32.mrf.mxu0
        %v1448 = vadd.f32 %v1361, %v1447
        %1449 = vmatprep.mubr.f32.mxu0 0.0
        %1450 = vmatmul.mubr.f32.gmra.mxu0 %v1371
        %v1451 = vpop.f32.mrf.mxu0
        %v1452 = vadd.f32 %v1365, %v1451
        %v1453 = vpop.f32.mrf.mxu0
        %v1454 = vadd.f32 %v1367, %v1453
        %1455 = vdwg.mxu0
        %s1456 = scalar_lea.vmem %s3, 352
        %v1457 = vld [vmem:[%s1456] sm:$0xff]
        %v1458 = vld [vmem:[%s1456 + $0x8] sm:$0xff]
        %v1459 = vld [vmem:[%s1456 + $0x10] sm:$0xff]
        %v1460 = vld [vmem:[%s1456 + $0x18] sm:$0xff]
        %v1461 = vld [vmem:[%s1456 + $0x20] sm:$0xff]
        %v1462 = vld [vmem:[%s1456 + $0x28] sm:$0xff]
        %v1463 = vld [vmem:[%s1456 + $0x30] sm:$0xff]
        %v1464 = vld [vmem:[%s1456 + $0x38] sm:$0xff]
        %v1465 = vld [vmem:[%s1456 + $0x40] sm:$0xff]
        %v1466 = vld [vmem:[%s1456 + $0x48] sm:$0xff]
        %v1467 = vld [vmem:[%s1456 + $0x50] sm:$0xff]
        %v1468 = vld [vmem:[%s1456 + $0x58] sm:$0xff]
        %v1469 = vld [vmem:[%s1456 + $0x60] sm:$0xff]
        %v1470 = vld [vmem:[%s1456 + $0x68] sm:$0xff]
        %v1471 = vld [vmem:[%s1456 + $0x70] sm:$0xff]
        %v1472 = vld [vmem:[%s1456 + $0x78] sm:$0xff]
        %v1473 = vld [vmem:[%s1456 + $0x80] sm:$0xff]
        %v1474 = vld [vmem:[%s1456 + $0x88] sm:$0xff]
        %v1475 = vld [vmem:[%s1456 + $0x90] sm:$0xff]
        %v1476 = vld [vmem:[%s1456 + $0x98] sm:$0xff]
        %v1477 = vld [vmem:[%s1456 + $0xa0] sm:$0xf]
        %v1478 = vld [vmem:[%s1456 + $0xa8] sm:$0xf]
        %v1479 = vrot.slane %v1229, 2
        %v1480 = vrot.slane %v1230, 2
        %v1481 = vsel %vm426, %v1479, %v1480
        %v1482 = vsel %vm1281, %v1481, 0
        %v1484 = vsel %vm1281, %v1480, 0
        %v1487 = vsel %vm796, %v1477, 0
        %v1490 = vsel %vm796, %v1478, 0
        %1492 = vmatprep.subr.mxu0 0.0
        %1493 = vmatpush1.msra.mxu0 0.0
        %1494 = vmatprep.subr.mxu0 0.0
        %1495 = vmatpush1.msra.mxu0 0.0
        %1496 = vmatprep.subr.mxu0 0.0
        %1497 = vmatpush1.msra.mxu0 0.0
        %1498 = vmatprep.subr.mxu0 0.0
        %1499 = vmatpush1.msra.mxu0 0.0
        %1500 = vmatprep.subr.mxu0 0.0
        %1501 = vmatpush1.msra.mxu0 0.0
        %1502 = vmatprep.subr.mxu0 %v1490
        %1503 = vmatpush1.msra.mxu0 %v1487
        %1504 = vmatprep.subr.mxu0 %v1476
        %1505 = vmatpush1.msra.mxu0 %v1475
        %1506 = vmatprep.subr.mxu0 %v1474
        %1507 = vmatpush1.msra.mxu0 %v1473
        %1508 = vmatprep.subr.mxu0 %v1472
        %1509 = vmatpush1.msra.mxu0 %v1471
        %1510 = vmatprep.subr.mxu0 %v1470
        %1511 = vmatpush1.msra.mxu0 %v1469
        %1512 = vmatprep.subr.mxu0 %v1468
        %1513 = vmatpush1.msra.mxu0 %v1467
        %1514 = vmatprep.subr.mxu0 %v1466
        %1515 = vmatpush1.msra.mxu0 %v1465
        %1516 = vmatprep.subr.mxu0 %v1464
        %1517 = vmatpush1.msra.mxu0 %v1463
        %1518 = vmatprep.subr.mxu0 %v1462
        %1519 = vmatpush1.msra.mxu0 %v1461
        %1520 = vmatprep.subr.mxu0 %v1460
        %1521 = vmatpush1.msra.mxu0 %v1459
        %1522 = vmatprep.subr.mxu0 %v1458
        %1523 = vmatpush1.msra.mxu0 %v1457
        %1524 = vmatprep.subr.mxu0 0.0
        %1525 = vmatpush2.msra.mxu0 0.0
        %1526 = vmatprep.subr.mxu0 0.0
        %1527 = vmatpush2.msra.mxu0 0.0
        %1528 = vmatprep.subr.mxu0 0.0
        %1529 = vmatpush2.msra.mxu0 0.0
        %1530 = vmatprep.subr.mxu0 0.0
        %1531 = vmatpush2.msra.mxu0 0.0
        %1532 = vmatprep.subr.mxu0 0.0
        %1533 = vmatpush2.msra.mxu0 0.0
        %1534 = vmatprep.subr.mxu0 0.0
        %1535 = vmatpush2.msra.mxu0 0.0
        %1536 = vmatprep.subr.mxu0 0.0
        %1537 = vmatpush2.msra.mxu0 0.0
        %1538 = vmatprep.subr.mxu0 0.0
        %1539 = vmatpush2.msra.mxu0 0.0
        %1540 = vmatprep.subr.mxu0 0.0
        %1541 = vmatpush2.msra.mxu0 0.0
        %1542 = vmatprep.subr.mxu0 0.0
        %1543 = vmatpush2.msra.mxu0 0.0
        %1544 = vmatprep.subr.mxu0 0.0
        %1545 = vmatpush2.msra.mxu0 0.0
        %1546 = vmatprep.subr.mxu0 0.0
        %1547 = vmatpush2.msra.mxu0 0.0
        %1548 = vmatprep.subr.mxu0 0.0
        %1549 = vmatpush2.msra.mxu0 0.0
        %1550 = vmatprep.subr.mxu0 0.0
        %1551 = vmatpush2.msra.mxu0 0.0
        %1552 = vmatprep.subr.mxu0 0.0
        %1553 = vmatpush2.msra.mxu0 0.0
        %1554 = vmatprep.subr.mxu0 0.0
        %1555 = vmatpush2.msra.mxu0 0.0
        %1556 = vmatprep.mubr.f32.mxu0 0.0
        %1557 = vmatmul.mubr.f32.gmra.mxu0 %v1482
        %v1558 = vpop.f32.mrf.mxu0
        %v1559 = vadd.f32 0.0, %v1558
        %v1560 = vpop.f32.mrf.mxu0
        %v1561 = vadd.f32 0.0, %v1560
        %1562 = vmatprep.mubr.f32.mxu0 0.0
        %1563 = vmatmul.mubr.f32.gmra.mxu0 %v1484
        %v1564 = vpop.f32.mrf.mxu0
        %v1565 = vadd.f32 0.0, %v1564
        %v1566 = vpop.f32.mrf.mxu0
        %v1567 = vadd.f32 0.0, %v1566
        %1568 = vdwg.mxu0
        %v1569 = vadd.f32 %v1446, %v1559
        %v1570 = vadd.f32 %v1448, %v1561
        %v1571 = vadd.f32 %v1452, %v1565
        %v1572 = vadd.f32 %v1454, %v1567
        %s1573 = scalar_lea.vmem %s3, 528
        %v1574 = vld [vmem:[%s1573] sm:$0xff]
        %v1575 = vld [vmem:[%s1573 + $0x8] sm:$0xff]
        %v1576 = vld [vmem:[%s1573 + $0x10] sm:$0xff]
        %v1577 = vld [vmem:[%s1573 + $0x18] sm:$0xff]
        %v1578 = vld [vmem:[%s1573 + $0x20] sm:$0xff]
        %v1579 = vld [vmem:[%s1573 + $0x28] sm:$0xff]
        %v1580 = vld [vmem:[%s1573 + $0x30] sm:$0xff]
        %v1581 = vld [vmem:[%s1573 + $0x38] sm:$0xff]
        %v1582 = vld [vmem:[%s1573 + $0x40] sm:$0xff]
        %v1583 = vld [vmem:[%s1573 + $0x48] sm:$0xff]
        %v1584 = vld [vmem:[%s1573 + $0x50] sm:$0xff]
        %v1585 = vld [vmem:[%s1573 + $0x58] sm:$0xff]
        %v1586 = vld [vmem:[%s1573 + $0x60] sm:$0xff]
        %v1587 = vld [vmem:[%s1573 + $0x68] sm:$0xff]
        %v1588 = vld [vmem:[%s1573 + $0x70] sm:$0xff]
        %v1589 = vld [vmem:[%s1573 + $0x78] sm:$0xff]
        %v1590 = vld [vmem:[%s1573 + $0x80] sm:$0xff]
        %v1591 = vld [vmem:[%s1573 + $0x88] sm:$0xff]
        %v1592 = vld [vmem:[%s1573 + $0x90] sm:$0xff]
        %v1593 = vld [vmem:[%s1573 + $0x98] sm:$0xff]
        %v1594 = vld [vmem:[%s1573 + $0xa0] sm:$0xf]
        %v1595 = vld [vmem:[%s1573 + $0xa8] sm:$0xf]
        %vm1596 = vcmask 1044480
        %v1597 = vrot.slane %v1229, 3
        %v1598 = vrot.slane %v1230, 3
        %v1599 = vsel %vm1596, %v1597, %v1598
        %v1600 = vsel %vm1281, %v1599, 0
        %v1602 = vsel %vm1281, %v1598, 0
        %v1605 = vsel %vm796, %v1594, 0
        %v1608 = vsel %vm796, %v1595, 0
        %1610 = vmatprep.subr.mxu0 0.0
        %1611 = vmatpush1.msra.mxu0 0.0
        %1612 = vmatprep.subr.mxu0 0.0
        %1613 = vmatpush1.msra.mxu0 0.0
        %1614 = vmatprep.subr.mxu0 0.0
        %1615 = vmatpush1.msra.mxu0 0.0
        %1616 = vmatprep.subr.mxu0 0.0
        %1617 = vmatpush1.msra.mxu0 0.0
        %1618 = vmatprep.subr.mxu0 0.0
        %1619 = vmatpush1.msra.mxu0 0.0
        %1620 = vmatprep.subr.mxu0 %v1608
        %1621 = vmatpush1.msra.mxu0 %v1605
        %1622 = vmatprep.subr.mxu0 %v1593
        %1623 = vmatpush1.msra.mxu0 %v1592
        %1624 = vmatprep.subr.mxu0 %v1591
        %1625 = vmatpush1.msra.mxu0 %v1590
        %1626 = vmatprep.subr.mxu0 %v1589
        %1627 = vmatpush1.msra.mxu0 %v1588
        %1628 = vmatprep.subr.mxu0 %v1587
        %1629 = vmatpush1.msra.mxu0 %v1586
        %1630 = vmatprep.subr.mxu0 %v1585
        %1631 = vmatpush1.msra.mxu0 %v1584
        %1632 = vmatprep.subr.mxu0 %v1583
        %1633 = vmatpush1.msra.mxu0 %v1582
        %1634 = vmatprep.subr.mxu0 %v1581
        %1635 = vmatpush1.msra.mxu0 %v1580
        %1636 = vmatprep.subr.mxu0 %v1579
        %1637 = vmatpush1.msra.mxu0 %v1578
        %1638 = vmatprep.subr.mxu0 %v1577
        %1639 = vmatpush1.msra.mxu0 %v1576
        %1640 = vmatprep.subr.mxu0 %v1575
        %1641 = vmatpush1.msra.mxu0 %v1574
        %1642 = vmatprep.subr.mxu0 0.0
        %1643 = vmatpush2.msra.mxu0 0.0
        %1644 = vmatprep.subr.mxu0 0.0
        %1645 = vmatpush2.msra.mxu0 0.0
        %1646 = vmatprep.subr.mxu0 0.0
        %1647 = vmatpush2.msra.mxu0 0.0
        %1648 = vmatprep.subr.mxu0 0.0
        %1649 = vmatpush2.msra.mxu0 0.0
        %1650 = vmatprep.subr.mxu0 0.0
        %1651 = vmatpush2.msra.mxu0 0.0
        %1652 = vmatprep.subr.mxu0 0.0
        %1653 = vmatpush2.msra.mxu0 0.0
        %1654 = vmatprep.subr.mxu0 0.0
        %1655 = vmatpush2.msra.mxu0 0.0
        %1656 = vmatprep.subr.mxu0 0.0
        %1657 = vmatpush2.msra.mxu0 0.0
        %1658 = vmatprep.subr.mxu0 0.0
        %1659 = vmatpush2.msra.mxu0 0.0
        %1660 = vmatprep.subr.mxu0 0.0
        %1661 = vmatpush2.msra.mxu0 0.0
        %1662 = vmatprep.subr.mxu0 0.0
        %1663 = vmatpush2.msra.mxu0 0.0
        %1664 = vmatprep.subr.mxu0 0.0
        %1665 = vmatpush2.msra.mxu0 0.0
        %1666 = vmatprep.subr.mxu0 0.0
        %1667 = vmatpush2.msra.mxu0 0.0
        %1668 = vmatprep.subr.mxu0 0.0
        %1669 = vmatpush2.msra.mxu0 0.0
        %1670 = vmatprep.subr.mxu0 0.0
        %1671 = vmatpush2.msra.mxu0 0.0
        %1672 = vmatprep.subr.mxu0 0.0
        %1673 = vmatpush2.msra.mxu0 0.0
        %1674 = vmatprep.mubr.f32.mxu0 0.0
        %1675 = vmatmul.mubr.f32.gmra.mxu0 %v1600
        %v1676 = vpop.f32.mrf.mxu0
        %v1677 = vadd.f32 0.0, %v1676
        %v1678 = vpop.f32.mrf.mxu0
        %v1679 = vadd.f32 0.0, %v1678
        %1680 = vmatprep.mubr.f32.mxu0 0.0
        %1681 = vmatmul.mubr.f32.gmra.mxu0 %v1602
        %v1682 = vpop.f32.mrf.mxu0
        %v1683 = vadd.f32 0.0, %v1682
        %v1684 = vpop.f32.mrf.mxu0
        %v1685 = vadd.f32 0.0, %v1684
        %1686 = vdwg.mxu0
        %v1687 = vadd.f32 %v1569, %v1677
        %v1688 = vadd.f32 %v1570, %v1679
        %v1689 = vadd.f32 %v1571, %v1683
        %v1690 = vadd.f32 %v1572, %v1685
        %s1691 = scalar_lea.vmem %s3, 704
        %v1692 = vld [vmem:[%s1691] sm:$0xff]
        %v1693 = vld [vmem:[%s1691 + $0x8] sm:$0xff]
        %v1694 = vld [vmem:[%s1691 + $0x10] sm:$0xff]
        %v1695 = vld [vmem:[%s1691 + $0x18] sm:$0xff]
        %v1696 = vld [vmem:[%s1691 + $0x20] sm:$0xff]
        %v1697 = vld [vmem:[%s1691 + $0x28] sm:$0xff]
        %v1698 = vld [vmem:[%s1691 + $0x30] sm:$0xff]
        %v1699 = vld [vmem:[%s1691 + $0x38] sm:$0xff]
        %v1700 = vld [vmem:[%s1691 + $0x40] sm:$0xff]
        %v1701 = vld [vmem:[%s1691 + $0x48] sm:$0xff]
        %v1702 = vld [vmem:[%s1691 + $0x50] sm:$0xff]
        %v1703 = vld [vmem:[%s1691 + $0x58] sm:$0xff]
        %v1704 = vld [vmem:[%s1691 + $0x60] sm:$0xff]
        %v1705 = vld [vmem:[%s1691 + $0x68] sm:$0xff]
        %v1706 = vld [vmem:[%s1691 + $0x70] sm:$0xff]
        %v1707 = vld [vmem:[%s1691 + $0x78] sm:$0xff]
        %v1708 = vld [vmem:[%s1691 + $0x80] sm:$0xff]
        %v1709 = vld [vmem:[%s1691 + $0x88] sm:$0xff]
        %v1710 = vld [vmem:[%s1691 + $0x90] sm:$0xff]
        %v1711 = vld [vmem:[%s1691 + $0x98] sm:$0xff]
        %v1712 = vld [vmem:[%s1691 + $0xa0] sm:$0xf]
        %v1713 = vld [vmem:[%s1691 + $0xa8] sm:$0xf]
        %v1714 = vrot.slane %v1229, 4
        %v1715 = vrot.slane %v1230, 4
        %v1716 = vsel %vm796, %v1714, %v1715
        %v1717 = vsel %vm1281, %v1716, 0
        %v1719 = vsel %vm1281, %v1715, 0
        %v1722 = vsel %vm796, %v1712, 0
        %v1725 = vsel %vm796, %v1713, 0
        %1727 = vmatprep.subr.mxu0 0.0
        %1728 = vmatpush1.msra.mxu0 0.0
        %1729 = vmatprep.subr.mxu0 0.0
        %1730 = vmatpush1.msra.mxu0 0.0
        %1731 = vmatprep.subr.mxu0 0.0
        %1732 = vmatpush1.msra.mxu0 0.0
        %1733 = vmatprep.subr.mxu0 0.0
        %1734 = vmatpush1.msra.mxu0 0.0
        %1735 = vmatprep.subr.mxu0 0.0
        %1736 = vmatpush1.msra.mxu0 0.0
        %1737 = vmatprep.subr.mxu0 %v1725
        %1738 = vmatpush1.msra.mxu0 %v1722
        %1739 = vmatprep.subr.mxu0 %v1711
        %1740 = vmatpush1.msra.mxu0 %v1710
        %1741 = vmatprep.subr.mxu0 %v1709
        %1742 = vmatpush1.msra.mxu0 %v1708
        %1743 = vmatprep.subr.mxu0 %v1707
        %1744 = vmatpush1.msra.mxu0 %v1706
        %1745 = vmatprep.subr.mxu0 %v1705
        %1746 = vmatpush1.msra.mxu0 %v1704
        %1747 = vmatprep.subr.mxu0 %v1703
        %1748 = vmatpush1.msra.mxu0 %v1702
        %1749 = vmatprep.subr.mxu0 %v1701
        %1750 = vmatpush1.msra.mxu0 %v1700
        %1751 = vmatprep.subr.mxu0 %v1699
        %1752 = vmatpush1.msra.mxu0 %v1698
        %1753 = vmatprep.subr.mxu0 %v1697
        %1754 = vmatpush1.msra.mxu0 %v1696
        %1755 = vmatprep.subr.mxu0 %v1695
        %1756 = vmatpush1.msra.mxu0 %v1694
        %1757 = vmatprep.subr.mxu0 %v1693
        %1758 = vmatpush1.msra.mxu0 %v1692
        %1759 = vmatprep.subr.mxu0 0.0
        %1760 = vmatpush2.msra.mxu0 0.0
        %1761 = vmatprep.subr.mxu0 0.0
        %1762 = vmatpush2.msra.mxu0 0.0
        %1763 = vmatprep.subr.mxu0 0.0
        %1764 = vmatpush2.msra.mxu0 0.0
        %1765 = vmatprep.subr.mxu0 0.0
        %1766 = vmatpush2.msra.mxu0 0.0
        %1767 = vmatprep.subr.mxu0 0.0
        %1768 = vmatpush2.msra.mxu0 0.0
        %1769 = vmatprep.subr.mxu0 0.0
        %1770 = vmatpush2.msra.mxu0 0.0
        %1771 = vmatprep.subr.mxu0 0.0
        %1772 = vmatpush2.msra.mxu0 0.0
        %1773 = vmatprep.subr.mxu0 0.0
        %1774 = vmatpush2.msra.mxu0 0.0
        %1775 = vmatprep.subr.mxu0 0.0
        %1776 = vmatpush2.msra.mxu0 0.0
        %1777 = vmatprep.subr.mxu0 0.0
        %1778 = vmatpush2.msra.mxu0 0.0
        %1779 = vmatprep.subr.mxu0 0.0
        %1780 = vmatpush2.msra.mxu0 0.0
        %1781 = vmatprep.subr.mxu0 0.0
        %1782 = vmatpush2.msra.mxu0 0.0
        %1783 = vmatprep.subr.mxu0 0.0
        %1784 = vmatpush2.msra.mxu0 0.0
        %1785 = vmatprep.subr.mxu0 0.0
        %1786 = vmatpush2.msra.mxu0 0.0
        %1787 = vmatprep.subr.mxu0 0.0
        %1788 = vmatpush2.msra.mxu0 0.0
        %1789 = vmatprep.subr.mxu0 0.0
        %1790 = vmatpush2.msra.mxu0 0.0
        %1791 = vmatprep.mubr.f32.mxu0 0.0
        %1792 = vmatmul.mubr.f32.gmra.mxu0 %v1717
        %v1793 = vpop.f32.mrf.mxu0
        %v1794 = vadd.f32 0.0, %v1793
        %v1795 = vpop.f32.mrf.mxu0
        %v1796 = vadd.f32 0.0, %v1795
        %1797 = vmatprep.mubr.f32.mxu0 0.0
        %1798 = vmatmul.mubr.f32.gmra.mxu0 %v1719
        %v1799 = vpop.f32.mrf.mxu0
        %v1800 = vadd.f32 0.0, %v1799
        %v1801 = vpop.f32.mrf.mxu0
        %v1802 = vadd.f32 0.0, %v1801
        %1803 = vdwg.mxu0
        %v1804 = vadd.f32 %v1687, %v1794
        %v1805 = vadd.f32 %v1688, %v1796
        %v1806 = vadd.f32 %v1689, %v1800
        %v1807 = vadd.f32 %v1690, %v1802
        %v1808 = vld [vmem:[%s4] sm:$0x3]
        %v1810 = vlaneseq
        %v1811 = vshrl.u32 %v1810, 7
        %v1812 = vsub.s32 0, %v1811
        %v1813 = vrot.slane %v1808, %v1812
        %v1814 = vlaneseq
        %v1815 = vshrl.u32 %v1814, 7
        %v1816 = vsub.s32 1, %v1815
        %v1817 = vrot.slane %v1808, %v1816
        %v1820 = vadd.f32 %v1804, %v1813
        %v1821 = vadd.f32 %v1805, %v1817
        %v1822 = vadd.f32 %v1806, %v1813
        %v1823 = vadd.f32 %v1807, %v1817
        %vm1824 = vcmask 80896
        %v1825 = vsel %vm1824, %v781, 0
        %vm1827 = vcmask 1041408
        %v1829 = vsel %vm1827, %v1822, 0
        %v1832 = vsel %vm1827, %v1823, 0
        %1834 = vmatprep.subr.mxu0 0.0
        %1835 = vmatpush1.msra.mxu0 0.0
        %1836 = vmatprep.subr.mxu0 0.0
        %1837 = vmatpush1.msra.mxu0 0.0
        %1838 = vmatprep.subr.mxu0 0.0
        %1839 = vmatpush1.msra.mxu0 0.0
        %1840 = vmatprep.subr.mxu0 0.0
        %1841 = vmatpush1.msra.mxu0 0.0
        %1842 = vmatprep.subr.mxu0 0.0
        %1843 = vmatpush1.msra.mxu0 0.0
        %1844 = vmatprep.subr.mxu0 0.0
        %1845 = vmatpush1.msra.mxu0 0.0
        %1846 = vmatprep.subr.mxu0 0.0
        %1847 = vmatpush1.msra.mxu0 0.0
        %1848 = vmatprep.subr.mxu0 0.0
        %1849 = vmatpush1.msra.mxu0 0.0
        %1850 = vmatprep.subr.mxu0 0.0
        %1851 = vmatpush1.msra.mxu0 0.0
        %1852 = vmatprep.subr.mxu0 0.0
        %1853 = vmatpush1.msra.mxu0 0.0
        %1854 = vmatprep.subr.mxu0 0.0
        %1855 = vmatpush1.msra.mxu0 0.0
        %1856 = vmatprep.subr.mxu0 0.0
        %1857 = vmatpush1.msra.mxu0 0.0
        %1858 = vmatprep.subr.mxu0 0.0
        %1859 = vmatpush1.msra.mxu0 0.0
        %1860 = vmatprep.subr.mxu0 0.0
        %1861 = vmatpush1.msra.mxu0 0.0
        %1862 = vmatprep.subr.mxu0 %v1832
        %1863 = vmatpush1.msra.mxu0 %v1829
        %1864 = vmatprep.subr.mxu0 %v1821
        %1865 = vmatpush1.msra.mxu0 %v1820
        %1866 = vmatprep.subr.mxu0 0.0
        %1867 = vmatpush2.msra.mxu0 0.0
        %1868 = vmatprep.subr.mxu0 0.0
        %1869 = vmatpush2.msra.mxu0 0.0
        %1870 = vmatprep.subr.mxu0 0.0
        %1871 = vmatpush2.msra.mxu0 0.0
        %1872 = vmatprep.subr.mxu0 0.0
        %1873 = vmatpush2.msra.mxu0 0.0
        %1874 = vmatprep.subr.mxu0 0.0
        %1875 = vmatpush2.msra.mxu0 0.0
        %1876 = vmatprep.subr.mxu0 0.0
        %1877 = vmatpush2.msra.mxu0 0.0
        %1878 = vmatprep.subr.mxu0 0.0
        %1879 = vmatpush2.msra.mxu0 0.0
        %1880 = vmatprep.subr.mxu0 0.0
        %1881 = vmatpush2.msra.mxu0 0.0
        %1882 = vmatprep.subr.mxu0 0.0
        %1883 = vmatpush2.msra.mxu0 0.0
        %1884 = vmatprep.subr.mxu0 0.0
        %1885 = vmatpush2.msra.mxu0 0.0
        %1886 = vmatprep.subr.mxu0 0.0
        %1887 = vmatpush2.msra.mxu0 0.0
        %1888 = vmatprep.subr.mxu0 0.0
        %1889 = vmatpush2.msra.mxu0 0.0
        %1890 = vmatprep.subr.mxu0 0.0
        %1891 = vmatpush2.msra.mxu0 0.0
        %1892 = vmatprep.subr.mxu0 0.0
        %1893 = vmatpush2.msra.mxu0 0.0
        %1894 = vmatprep.subr.mxu0 0.0
        %1895 = vmatpush2.msra.mxu0 0.0
        %1896 = vmatprep.subr.mxu0 0.0
        %1897 = vmatpush2.msra.mxu0 0.0
        %1898 = vmatprep.mubr.f32.mxu0 0.0
        %1899 = vmatmul.mubr.f32.gmra.mxu0 %v1825
        %v1900 = vpop.f32.mrf.mxu0
        %v1901 = vadd.f32 0.0, %v1900
        %v1902 = vpop.f32.mrf.mxu0
        %v1903 = vadd.f32 0.0, %v1902
        %1904 = vdwg.mxu0
        %v1905 = vsel %vm1824, %v787, 0
        %1907 = vmatprep.subr.mxu0 0.0
        %1908 = vmatpush1.msra.mxu0 0.0
        %1909 = vmatprep.subr.mxu0 0.0
        %1910 = vmatpush1.msra.mxu0 0.0
        %1911 = vmatprep.subr.mxu0 0.0
        %1912 = vmatpush1.msra.mxu0 0.0
        %1913 = vmatprep.subr.mxu0 0.0
        %1914 = vmatpush1.msra.mxu0 0.0
        %1915 = vmatprep.subr.mxu0 0.0
        %1916 = vmatpush1.msra.mxu0 0.0
        %1917 = vmatprep.subr.mxu0 0.0
        %1918 = vmatpush1.msra.mxu0 0.0
        %1919 = vmatprep.subr.mxu0 0.0
        %1920 = vmatpush1.msra.mxu0 0.0
        %1921 = vmatprep.subr.mxu0 0.0
        %1922 = vmatpush1.msra.mxu0 0.0
        %1923 = vmatprep.subr.mxu0 0.0
        %1924 = vmatpush1.msra.mxu0 0.0
        %1925 = vmatprep.subr.mxu0 0.0
        %1926 = vmatpush1.msra.mxu0 0.0
        %1927 = vmatprep.subr.mxu0 0.0
        %1928 = vmatpush1.msra.mxu0 0.0
        %1929 = vmatprep.subr.mxu0 0.0
        %1930 = vmatpush1.msra.mxu0 0.0
        %1931 = vmatprep.subr.mxu0 0.0
        %1932 = vmatpush1.msra.mxu0 0.0
        %1933 = vmatprep.subr.mxu0 0.0
        %1934 = vmatpush1.msra.mxu0 0.0
        %1935 = vmatprep.subr.mxu0 %v1832
        %1936 = vmatpush1.msra.mxu0 %v1829
        %1937 = vmatprep.subr.mxu0 %v1821
        %1938 = vmatpush1.msra.mxu0 %v1820
        %1939 = vmatprep.subr.mxu0 0.0
        %1940 = vmatpush2.msra.mxu0 0.0
        %1941 = vmatprep.subr.mxu0 0.0
        %1942 = vmatpush2.msra.mxu0 0.0
        %1943 = vmatprep.subr.mxu0 0.0
        %1944 = vmatpush2.msra.mxu0 0.0
        %1945 = vmatprep.subr.mxu0 0.0
        %1946 = vmatpush2.msra.mxu0 0.0
        %1947 = vmatprep.subr.mxu0 0.0
        %1948 = vmatpush2.msra.mxu0 0.0
        %1949 = vmatprep.subr.mxu0 0.0
        %1950 = vmatpush2.msra.mxu0 0.0
        %1951 = vmatprep.subr.mxu0 0.0
        %1952 = vmatpush2.msra.mxu0 0.0
        %1953 = vmatprep.subr.mxu0 0.0
        %1954 = vmatpush2.msra.mxu0 0.0
        %1955 = vmatprep.subr.mxu0 0.0
        %1956 = vmatpush2.msra.mxu0 0.0
        %1957 = vmatprep.subr.mxu0 0.0
        %1958 = vmatpush2.msra.mxu0 0.0
        %1959 = vmatprep.subr.mxu0 0.0
        %1960 = vmatpush2.msra.mxu0 0.0
        %1961 = vmatprep.subr.mxu0 0.0
        %1962 = vmatpush2.msra.mxu0 0.0
        %1963 = vmatprep.subr.mxu0 0.0
        %1964 = vmatpush2.msra.mxu0 0.0
        %1965 = vmatprep.subr.mxu0 0.0
        %1966 = vmatpush2.msra.mxu0 0.0
        %1967 = vmatprep.subr.mxu0 0.0
        %1968 = vmatpush2.msra.mxu0 0.0
        %1969 = vmatprep.subr.mxu0 0.0
        %1970 = vmatpush2.msra.mxu0 0.0
        %1971 = vmatprep.mubr.f32.mxu0 0.0
        %1972 = vmatmul.mubr.f32.gmra.mxu0 %v1905
        %v1973 = vpop.f32.mrf.mxu0
        %v1974 = vadd.f32 0.0, %v1973
        %v1975 = vpop.f32.mrf.mxu0
        %v1976 = vadd.f32 0.0, %v1975
        %1977 = vdwg.mxu0
        %v1978 = vmax.f32 %v1901, %v1974
        %v1979 = vmax.f32 %v1903, %v1976
        %vm1980 = vcmask 261120
        %v1982 = vsel %vm1980, %v1979, 0
        %1984 = vmatprep.subr.mxu0 0.0
        %1985 = vmatpush1.msra.mxu0 %v1023
        %1986 = vmatprep.subr.mxu0 0.0
        %1987 = vmatpush1.msra.mxu0 %v1022
        %1988 = vmatprep.subr.mxu0 0.0
        %1989 = vmatpush1.msra.mxu0 %v1021
        %1990 = vmatprep.subr.mxu0 0.0
        %1991 = vmatpush1.msra.mxu0 %v1020
        %1992 = vmatprep.subr.mxu0 0.0
        %1993 = vmatpush1.msra.mxu0 %v1019
        %1994 = vmatprep.subr.mxu0 0.0
        %1995 = vmatpush1.msra.mxu0 %v1018
        %1996 = vmatprep.subr.mxu0 0.0
        %1997 = vmatpush1.msra.mxu0 %v1017
        %1998 = vmatprep.subr.mxu0 0.0
        %1999 = vmatpush1.msra.mxu0 %v1016
        %2000 = vmatprep.subr.mxu0 0.0
        %2001 = vmatpush1.msra.mxu0 %v1015
        %2002 = vmatprep.subr.mxu0 0.0
        %2003 = vmatpush1.msra.mxu0 %v1014
        %2004 = vmatprep.subr.mxu0 0.0
        %2005 = vmatpush1.msra.mxu0 %v1013
        %2006 = vmatprep.subr.mxu0 0.0
        %2007 = vmatpush1.msra.mxu0 %v1012
        %2008 = vmatprep.subr.mxu0 0.0
        %2009 = vmatpush1.msra.mxu0 %v1011
        %2010 = vmatprep.subr.mxu0 0.0
        %2011 = vmatpush1.msra.mxu0 %v1010
        %2012 = vmatprep.subr.mxu0 0.0
        %2013 = vmatpush1.msra.mxu0 %v1009
        %2014 = vmatprep.subr.mxu0 0.0
        %2015 = vmatpush1.msra.mxu0 %v1008
        %2016 = vmatprep.subr.mxu0 0.0
        %2017 = vmatpush2.msra.mxu0 0.0
        %2018 = vmatprep.subr.mxu0 0.0
        %2019 = vmatpush2.msra.mxu0 0.0
        %2020 = vmatprep.subr.mxu0 0.0
        %2021 = vmatpush2.msra.mxu0 0.0
        %2022 = vmatprep.subr.mxu0 0.0
        %2023 = vmatpush2.msra.mxu0 0.0
        %2024 = vmatprep.subr.mxu0 0.0
        %2025 = vmatpush2.msra.mxu0 0.0
        %2026 = vmatprep.subr.mxu0 0.0
        %2027 = vmatpush2.msra.mxu0 0.0
        %2028 = vmatprep.subr.mxu0 0.0
        %2029 = vmatpush2.msra.mxu0 0.0
        %2030 = vmatprep.subr.mxu0 0.0
        %2031 = vmatpush2.msra.mxu0 0.0
        %2032 = vmatprep.subr.mxu0 0.0
        %2033 = vmatpush2.msra.mxu0 0.0
        %2034 = vmatprep.subr.mxu0 0.0
        %2035 = vmatpush2.msra.mxu0 0.0
        %2036 = vmatprep.subr.mxu0 0.0
        %2037 = vmatpush2.msra.mxu0 0.0
        %2038 = vmatprep.subr.mxu0 0.0
        %2039 = vmatpush2.msra.mxu0 0.0
        %2040 = vmatprep.subr.mxu0 0.0
        %2041 = vmatpush2.msra.mxu0 %v1027
        %2042 = vmatprep.subr.mxu0 0.0
        %2043 = vmatpush2.msra.mxu0 %v1026
        %2044 = vmatprep.subr.mxu0 0.0
        %2045 = vmatpush2.msra.mxu0 %v1025
        %2046 = vmatprep.subr.mxu0 0.0
        %2047 = vmatpush2.msra.mxu0 %v1024
        %2048 = vmatprep.mubr.f32.mxu0 %v1982
        %2049 = vmatmul.mubr.f32.gmra.mxu0 %v1978
        %v2050 = vpop.f32.mrf.mxu0
        %v2051 = vadd.f32 0.0, %v2050
        %v2052 = vpop.f32.mrf.mxu0
        %2053 = vdwg.mxu0
        %2054 = vmatprep.subr.mxu0 0.0
        %2055 = vmatpush1.msra.mxu0 %v1066
        %2056 = vmatprep.subr.mxu0 0.0
        %2057 = vmatpush1.msra.mxu0 %v1065
        %2058 = vmatprep.subr.mxu0 0.0
        %2059 = vmatpush1.msra.mxu0 %v1064
        %2060 = vmatprep.subr.mxu0 0.0
        %2061 = vmatpush1.msra.mxu0 %v1063
        %2062 = vmatprep.subr.mxu0 0.0
        %2063 = vmatpush1.msra.mxu0 %v1062
        %2064 = vmatprep.subr.mxu0 0.0
        %2065 = vmatpush1.msra.mxu0 %v1061
        %2066 = vmatprep.subr.mxu0 0.0
        %2067 = vmatpush1.msra.mxu0 %v1060
        %2068 = vmatprep.subr.mxu0 0.0
        %2069 = vmatpush1.msra.mxu0 %v1059
        %2070 = vmatprep.subr.mxu0 0.0
        %2071 = vmatpush1.msra.mxu0 %v1058
        %2072 = vmatprep.subr.mxu0 0.0
        %2073 = vmatpush1.msra.mxu0 %v1057
        %2074 = vmatprep.subr.mxu0 0.0
        %2075 = vmatpush1.msra.mxu0 %v1056
        %2076 = vmatprep.subr.mxu0 0.0
        %2077 = vmatpush1.msra.mxu0 %v1055
        %2078 = vmatprep.subr.mxu0 0.0
        %2079 = vmatpush1.msra.mxu0 %v1054
        %2080 = vmatprep.subr.mxu0 0.0
        %2081 = vmatpush1.msra.mxu0 %v1053
        %2082 = vmatprep.subr.mxu0 0.0
        %2083 = vmatpush1.msra.mxu0 %v1052
        %2084 = vmatprep.subr.mxu0 0.0
        %2085 = vmatpush1.msra.mxu0 %v1051
        %2086 = vmatprep.subr.mxu0 0.0
        %2087 = vmatpush2.msra.mxu0 0.0
        %2088 = vmatprep.subr.mxu0 0.0
        %2089 = vmatpush2.msra.mxu0 0.0
        %2090 = vmatprep.subr.mxu0 0.0
        %2091 = vmatpush2.msra.mxu0 0.0
        %2092 = vmatprep.subr.mxu0 0.0
        %2093 = vmatpush2.msra.mxu0 0.0
        %2094 = vmatprep.subr.mxu0 0.0
        %2095 = vmatpush2.msra.mxu0 0.0
        %2096 = vmatprep.subr.mxu0 0.0
        %2097 = vmatpush2.msra.mxu0 0.0
        %2098 = vmatprep.subr.mxu0 0.0
        %2099 = vmatpush2.msra.mxu0 0.0
        %2100 = vmatprep.subr.mxu0 0.0
        %2101 = vmatpush2.msra.mxu0 0.0
        %2102 = vmatprep.subr.mxu0 0.0
        %2103 = vmatpush2.msra.mxu0 0.0
        %2104 = vmatprep.subr.mxu0 0.0
        %2105 = vmatpush2.msra.mxu0 0.0
        %2106 = vmatprep.subr.mxu0 0.0
        %2107 = vmatpush2.msra.mxu0 0.0
        %2108 = vmatprep.subr.mxu0 0.0
        %2109 = vmatpush2.msra.mxu0 0.0
        %2110 = vmatprep.subr.mxu0 0.0
        %2111 = vmatpush2.msra.mxu0 %v1070
        %2112 = vmatprep.subr.mxu0 0.0
        %2113 = vmatpush2.msra.mxu0 %v1069
        %2114 = vmatprep.subr.mxu0 0.0
        %2115 = vmatpush2.msra.mxu0 %v1068
        %2116 = vmatprep.subr.mxu0 0.0
        %2117 = vmatpush2.msra.mxu0 %v1067
        %2118 = vmatprep.mubr.f32.mxu0 %v1982
        %2119 = vmatmul.mubr.f32.gmra.mxu0 %v1978
        %v2120 = vpop.f32.mrf.mxu0
        %v2121 = vadd.f32 0.0, %v2120
        %v2122 = vpop.f32.mrf.mxu0
        %2123 = vdwg.mxu0
        %v2124 = vmax.f32 %v2051, %v2121
        %v2125 = vld [vmem:[%s6] sm:$0x1]
        %v2126 = vld [vmem:[%s5] sm:$0xff]
        %v2127 = vld [vmem:[%s5 + $0x8] sm:$0xff]
        %v2128 = vld [vmem:[%s5 + $0x10] sm:$0xff]
        %v2129 = vld [vmem:[%s5 + $0x18] sm:$0xff]
        %v2130 = vld [vmem:[%s5 + $0x20] sm:$0xff]
        %v2131 = vld [vmem:[%s5 + $0x28] sm:$0xff]
        %v2132 = vld [vmem:[%s5 + $0x30] sm:$0xff]
        %v2133 = vld [vmem:[%s5 + $0x38] sm:$0xff]
        %v2134 = vld [vmem:[%s5 + $0x40] sm:$0xff]
        %v2135 = vld [vmem:[%s5 + $0x48] sm:$0xff]
        %vm2136 = vcmask 654336
        %v2138 = vsel %vm2136, %v2124, 0
        %2140 = vmatprep.subr.mxu0 0.0
        %2141 = vmatpush1.msra.mxu0 0.0
        %2142 = vmatprep.subr.mxu0 0.0
        %2143 = vmatpush1.msra.mxu0 0.0
        %2144 = vmatprep.subr.mxu0 0.0
        %2145 = vmatpush1.msra.mxu0 0.0
        %2146 = vmatprep.subr.mxu0 0.0
        %2147 = vmatpush1.msra.mxu0 0.0
        %2148 = vmatprep.subr.mxu0 0.0
        %2149 = vmatpush1.msra.mxu0 0.0
        %2150 = vmatprep.subr.mxu0 0.0
        %2151 = vmatpush1.msra.mxu0 0.0
        %2152 = vmatprep.subr.mxu0 0.0
        %2153 = vmatpush1.msra.mxu0 %v2135
        %2154 = vmatprep.subr.mxu0 0.0
        %2155 = vmatpush1.msra.mxu0 %v2134
        %2156 = vmatprep.subr.mxu0 0.0
        %2157 = vmatpush1.msra.mxu0 %v2133
        %2158 = vmatprep.subr.mxu0 0.0
        %2159 = vmatpush1.msra.mxu0 %v2132
        %2160 = vmatprep.subr.mxu0 0.0
        %2161 = vmatpush1.msra.mxu0 %v2131
        %2162 = vmatprep.subr.mxu0 0.0
        %2163 = vmatpush1.msra.mxu0 %v2130
        %2164 = vmatprep.subr.mxu0 0.0
        %2165 = vmatpush1.msra.mxu0 %v2129
        %2166 = vmatprep.subr.mxu0 0.0
        %2167 = vmatpush1.msra.mxu0 %v2128
        %2168 = vmatprep.subr.mxu0 0.0
        %2169 = vmatpush1.msra.mxu0 %v2127
        %2170 = vmatprep.subr.mxu0 0.0
        %2171 = vmatpush1.msra.mxu0 %v2126
        %2172 = vmatprep.subr.mxu0 0.0
        %2173 = vmatpush2.msra.mxu0 0.0
        %2174 = vmatprep.subr.mxu0 0.0
        %2175 = vmatpush2.msra.mxu0 0.0
        %2176 = vmatprep.subr.mxu0 0.0
        %2177 = vmatpush2.msra.mxu0 0.0
        %2178 = vmatprep.subr.mxu0 0.0
        %2179 = vmatpush2.msra.mxu0 0.0
        %2180 = vmatprep.subr.mxu0 0.0
        %2181 = vmatpush2.msra.mxu0 0.0
        %2182 = vmatprep.subr.mxu0 0.0
        %2183 = vmatpush2.msra.mxu0 0.0
        %2184 = vmatprep.subr.mxu0 0.0
        %2185 = vmatpush2.msra.mxu0 0.0
        %2186 = vmatprep.subr.mxu0 0.0
        %2187 = vmatpush2.msra.mxu0 0.0
        %2188 = vmatprep.subr.mxu0 0.0
        %2189 = vmatpush2.msra.mxu0 0.0
        %2190 = vmatprep.subr.mxu0 0.0
        %2191 = vmatpush2.msra.mxu0 0.0
        %2192 = vmatprep.subr.mxu0 0.0
        %2193 = vmatpush2.msra.mxu0 0.0
        %2194 = vmatprep.subr.mxu0 0.0
        %2195 = vmatpush2.msra.mxu0 0.0
        %2196 = vmatprep.subr.mxu0 0.0
        %2197 = vmatpush2.msra.mxu0 0.0
        %2198 = vmatprep.subr.mxu0 0.0
        %2199 = vmatpush2.msra.mxu0 0.0
        %2200 = vmatprep.subr.mxu0 0.0
        %2201 = vmatpush2.msra.mxu0 0.0
        %2202 = vmatprep.subr.mxu0 0.0
        %2203 = vmatpush2.msra.mxu0 0.0
        %2204 = vmatprep.mubr.f32.mxu0 0.0
        %2205 = vmatmul.mubr.f32.gmra.mxu0 %v2138
        %v2206 = vpop.f32.mrf.mxu0
        %v2207 = vadd.f32 0.0, %v2206
        %v2208 = vpop.f32.mrf.mxu0
        %2209 = vdwg.mxu0
        %v2210 = vadd.f32 %v2125, %v2207
        %s2211 = scalar_lea.vmem %s5, 80
        %v2212 = vld [vmem:[%s2211] sm:$0xff]
        %v2213 = vld [vmem:[%s2211 + $0x8] sm:$0xff]
        %v2214 = vld [vmem:[%s2211 + $0x10] sm:$0xff]
        %v2215 = vld [vmem:[%s2211 + $0x18] sm:$0xff]
        %v2216 = vld [vmem:[%s2211 + $0x20] sm:$0xff]
        %v2217 = vld [vmem:[%s2211 + $0x28] sm:$0xff]
        %v2218 = vld [vmem:[%s2211 + $0x30] sm:$0xff]
        %v2219 = vld [vmem:[%s2211 + $0x38] sm:$0xff]
        %v2220 = vld [vmem:[%s2211 + $0x40] sm:$0xff]
        %v2221 = vld [vmem:[%s2211 + $0x48] sm:$0xff]
        %v2222 = vrot.slane %v2124, 1
        %v2223 = vsel %vm2136, %v2222, 0
        %2225 = vmatprep.subr.mxu0 0.0
        %2226 = vmatpush1.msra.mxu0 0.0
        %2227 = vmatprep.subr.mxu0 0.0
        %2228 = vmatpush1.msra.mxu0 0.0
        %2229 = vmatprep.subr.mxu0 0.0
        %2230 = vmatpush1.msra.mxu0 0.0
        %2231 = vmatprep.subr.mxu0 0.0
        %2232 = vmatpush1.msra.mxu0 0.0
        %2233 = vmatprep.subr.mxu0 0.0
        %2234 = vmatpush1.msra.mxu0 0.0
        %2235 = vmatprep.subr.mxu0 0.0
        %2236 = vmatpush1.msra.mxu0 0.0
        %2237 = vmatprep.subr.mxu0 0.0
        %2238 = vmatpush1.msra.mxu0 %v2221
        %2239 = vmatprep.subr.mxu0 0.0
        %2240 = vmatpush1.msra.mxu0 %v2220
        %2241 = vmatprep.subr.mxu0 0.0
        %2242 = vmatpush1.msra.mxu0 %v2219
        %2243 = vmatprep.subr.mxu0 0.0
        %2244 = vmatpush1.msra.mxu0 %v2218
        %2245 = vmatprep.subr.mxu0 0.0
        %2246 = vmatpush1.msra.mxu0 %v2217
        %2247 = vmatprep.subr.mxu0 0.0
        %2248 = vmatpush1.msra.mxu0 %v2216
        %2249 = vmatprep.subr.mxu0 0.0
        %2250 = vmatpush1.msra.mxu0 %v2215
        %2251 = vmatprep.subr.mxu0 0.0
        %2252 = vmatpush1.msra.mxu0 %v2214
        %2253 = vmatprep.subr.mxu0 0.0
        %2254 = vmatpush1.msra.mxu0 %v2213
        %2255 = vmatprep.subr.mxu0 0.0
        %2256 = vmatpush1.msra.mxu0 %v2212
        %2257 = vmatprep.subr.mxu0 0.0
        %2258 = vmatpush2.msra.mxu0 0.0
        %2259 = vmatprep.subr.mxu0 0.0
        %2260 = vmatpush2.msra.mxu0 0.0
        %2261 = vmatprep.subr.mxu0 0.0
        %2262 = vmatpush2.msra.mxu0 0.0
        %2263 = vmatprep.subr.mxu0 0.0
        %2264 = vmatpush2.msra.mxu0 0.0
        %2265 = vmatprep.subr.mxu0 0.0
        %2266 = vmatpush2.msra.mxu0 0.0
        %2267 = vmatprep.subr.mxu0 0.0
        %2268 = vmatpush2.msra.mxu0 0.0
        %2269 = vmatprep.subr.mxu0 0.0
        %2270 = vmatpush2.msra.mxu0 0.0
        %2271 = vmatprep.subr.mxu0 0.0
        %2272 = vmatpush2.msra.mxu0 0.0
        %2273 = vmatprep.subr.mxu0 0.0
        %2274 = vmatpush2.msra.mxu0 0.0
        %2275 = vmatprep.subr.mxu0 0.0
        %2276 = vmatpush2.msra.mxu0 0.0
        %2277 = vmatprep.subr.mxu0 0.0
        %2278 = vmatpush2.msra.mxu0 0.0
        %2279 = vmatprep.subr.mxu0 0.0
        %2280 = vmatpush2.msra.mxu0 0.0
        %2281 = vmatprep.subr.mxu0 0.0
        %2282 = vmatpush2.msra.mxu0 0.0
        %2283 = vmatprep.subr.mxu0 0.0
        %2284 = vmatpush2.msra.mxu0 0.0
        %2285 = vmatprep.subr.mxu0 0.0
        %2286 = vmatpush2.msra.mxu0 0.0
        %2287 = vmatprep.subr.mxu0 0.0
        %2288 = vmatpush2.msra.mxu0 0.0
        %2289 = vmatprep.mubr.f32.mxu0 0.0
        %2290 = vmatmul.mubr.f32.gmra.mxu0 %v2223
        %v2291 = vpop.f32.mrf.mxu0
        %v2292 = vadd.f32 0.0, %v2291
        %v2293 = vpop.f32.mrf.mxu0
        %2294 = vdwg.mxu0
        %v2295 = vadd.f32 %v2210, %v2292
        %s2296 = scalar_lea.vmem %s5, 160
        %v2297 = vld [vmem:[%s2296] sm:$0xff]
        %v2298 = vld [vmem:[%s2296 + $0x8] sm:$0xff]
        %v2299 = vld [vmem:[%s2296 + $0x10] sm:$0xff]
        %v2300 = vld [vmem:[%s2296 + $0x18] sm:$0xff]
        %v2301 = vld [vmem:[%s2296 + $0x20] sm:$0xff]
        %v2302 = vld [vmem:[%s2296 + $0x28] sm:$0xff]
        %v2303 = vld [vmem:[%s2296 + $0x30] sm:$0xff]
        %v2304 = vld [vmem:[%s2296 + $0x38] sm:$0xff]
        %v2305 = vld [vmem:[%s2296 + $0x40] sm:$0xff]
        %v2306 = vld [vmem:[%s2296 + $0x48] sm:$0xff]
        %v2307 = vrot.slane %v2124, 2
        %v2308 = vsel %vm2136, %v2307, 0
        %2310 = vmatprep.subr.mxu0 0.0
        %2311 = vmatpush1.msra.mxu0 0.0
        %2312 = vmatprep.subr.mxu0 0.0
        %2313 = vmatpush1.msra.mxu0 0.0
        %2314 = vmatprep.subr.mxu0 0.0
        %2315 = vmatpush1.msra.mxu0 0.0
        %2316 = vmatprep.subr.mxu0 0.0
        %2317 = vmatpush1.msra.mxu0 0.0
        %2318 = vmatprep.subr.mxu0 0.0
        %2319 = vmatpush1.msra.mxu0 0.0
        %2320 = vmatprep.subr.mxu0 0.0
        %2321 = vmatpush1.msra.mxu0 0.0
        %2322 = vmatprep.subr.mxu0 0.0
        %2323 = vmatpush1.msra.mxu0 %v2306
        %2324 = vmatprep.subr.mxu0 0.0
        %2325 = vmatpush1.msra.mxu0 %v2305
        %2326 = vmatprep.subr.mxu0 0.0
        %2327 = vmatpush1.msra.mxu0 %v2304
        %2328 = vmatprep.subr.mxu0 0.0
        %2329 = vmatpush1.msra.mxu0 %v2303
        %2330 = vmatprep.subr.mxu0 0.0
        %2331 = vmatpush1.msra.mxu0 %v2302
        %2332 = vmatprep.subr.mxu0 0.0
        %2333 = vmatpush1.msra.mxu0 %v2301
        %2334 = vmatprep.subr.mxu0 0.0
        %2335 = vmatpush1.msra.mxu0 %v2300
        %2336 = vmatprep.subr.mxu0 0.0
        %2337 = vmatpush1.msra.mxu0 %v2299
        %2338 = vmatprep.subr.mxu0 0.0
        %2339 = vmatpush1.msra.mxu0 %v2298
        %2340 = vmatprep.subr.mxu0 0.0
        %2341 = vmatpush1.msra.mxu0 %v2297
        %2342 = vmatprep.subr.mxu0 0.0
        %2343 = vmatpush2.msra.mxu0 0.0
        %2344 = vmatprep.subr.mxu0 0.0
        %2345 = vmatpush2.msra.mxu0 0.0
        %2346 = vmatprep.subr.mxu0 0.0
        %2347 = vmatpush2.msra.mxu0 0.0
        %2348 = vmatprep.subr.mxu0 0.0
        %2349 = vmatpush2.msra.mxu0 0.0
        %2350 = vmatprep.subr.mxu0 0.0
        %2351 = vmatpush2.msra.mxu0 0.0
        %2352 = vmatprep.subr.mxu0 0.0
        %2353 = vmatpush2.msra.mxu0 0.0
        %2354 = vmatprep.subr.mxu0 0.0
        %2355 = vmatpush2.msra.mxu0 0.0
        %2356 = vmatprep.subr.mxu0 0.0
        %2357 = vmatpush2.msra.mxu0 0.0
        %2358 = vmatprep.subr.mxu0 0.0
        %2359 = vmatpush2.msra.mxu0 0.0
        %2360 = vmatprep.subr.mxu0 0.0
        %2361 = vmatpush2.msra.mxu0 0.0
        %2362 = vmatprep.subr.mxu0 0.0
        %2363 = vmatpush2.msra.mxu0 0.0
        %2364 = vmatprep.subr.mxu0 0.0
        %2365 = vmatpush2.msra.mxu0 0.0
        %2366 = vmatprep.subr.mxu0 0.0
        %2367 = vmatpush2.msra.mxu0 0.0
        %2368 = vmatprep.subr.mxu0 0.0
        %2369 = vmatpush2.msra.mxu0 0.0
        %2370 = vmatprep.subr.mxu0 0.0
        %2371 = vmatpush2.msra.mxu0 0.0
        %2372 = vmatprep.subr.mxu0 0.0
        %2373 = vmatpush2.msra.mxu0 0.0
        %2374 = vmatprep.mubr.f32.mxu0 0.0
        %2375 = vmatmul.mubr.f32.gmra.mxu0 %v2308
        %v2376 = vpop.f32.mrf.mxu0
        %v2377 = vadd.f32 0.0, %v2376
        %v2378 = vpop.f32.mrf.mxu0
        %2379 = vdwg.mxu0
        %v2380 = vadd.f32 %v2295, %v2377
        %s2381 = scalar_lea.vmem %s5, 240
        %v2382 = vld [vmem:[%s2381] sm:$0xff]
        %v2383 = vld [vmem:[%s2381 + $0x8] sm:$0xff]
        %v2384 = vld [vmem:[%s2381 + $0x10] sm:$0xff]
        %v2385 = vld [vmem:[%s2381 + $0x18] sm:$0xff]
        %v2386 = vld [vmem:[%s2381 + $0x20] sm:$0xff]
        %v2387 = vld [vmem:[%s2381 + $0x28] sm:$0xff]
        %v2388 = vld [vmem:[%s2381 + $0x30] sm:$0xff]
        %v2389 = vld [vmem:[%s2381 + $0x38] sm:$0xff]
        %v2390 = vld [vmem:[%s2381 + $0x40] sm:$0xff]
        %v2391 = vld [vmem:[%s2381 + $0x48] sm:$0xff]
        %v2392 = vrot.slane %v2124, 3
        %v2393 = vsel %vm2136, %v2392, 0
        %2395 = vmatprep.subr.mxu0 0.0
        %2396 = vmatpush1.msra.mxu0 0.0
        %2397 = vmatprep.subr.mxu0 0.0
        %2398 = vmatpush1.msra.mxu0 0.0
        %2399 = vmatprep.subr.mxu0 0.0
        %2400 = vmatpush1.msra.mxu0 0.0
        %2401 = vmatprep.subr.mxu0 0.0
        %2402 = vmatpush1.msra.mxu0 0.0
        %2403 = vmatprep.subr.mxu0 0.0
        %2404 = vmatpush1.msra.mxu0 0.0
        %2405 = vmatprep.subr.mxu0 0.0
        %2406 = vmatpush1.msra.mxu0 0.0
        %2407 = vmatprep.subr.mxu0 0.0
        %2408 = vmatpush1.msra.mxu0 %v2391
        %2409 = vmatprep.subr.mxu0 0.0
        %2410 = vmatpush1.msra.mxu0 %v2390
        %2411 = vmatprep.subr.mxu0 0.0
        %2412 = vmatpush1.msra.mxu0 %v2389
        %2413 = vmatprep.subr.mxu0 0.0
        %2414 = vmatpush1.msra.mxu0 %v2388
        %2415 = vmatprep.subr.mxu0 0.0
        %2416 = vmatpush1.msra.mxu0 %v2387
        %2417 = vmatprep.subr.mxu0 0.0
        %2418 = vmatpush1.msra.mxu0 %v2386
        %2419 = vmatprep.subr.mxu0 0.0
        %2420 = vmatpush1.msra.mxu0 %v2385
        %2421 = vmatprep.subr.mxu0 0.0
        %2422 = vmatpush1.msra.mxu0 %v2384
        %2423 = vmatprep.subr.mxu0 0.0
        %2424 = vmatpush1.msra.mxu0 %v2383
        %2425 = vmatprep.subr.mxu0 0.0
        %2426 = vmatpush1.msra.mxu0 %v2382
        %2427 = vmatprep.subr.mxu0 0.0
        %2428 = vmatpush2.msra.mxu0 0.0
        %2429 = vmatprep.subr.mxu0 0.0
        %2430 = vmatpush2.msra.mxu0 0.0
        %2431 = vmatprep.subr.mxu0 0.0
        %2432 = vmatpush2.msra.mxu0 0.0
        %2433 = vmatprep.subr.mxu0 0.0
        %2434 = vmatpush2.msra.mxu0 0.0
        %2435 = vmatprep.subr.mxu0 0.0
        %2436 = vmatpush2.msra.mxu0 0.0
        %2437 = vmatprep.subr.mxu0 0.0
        %2438 = vmatpush2.msra.mxu0 0.0
        %2439 = vmatprep.subr.mxu0 0.0
        %2440 = vmatpush2.msra.mxu0 0.0
        %2441 = vmatprep.subr.mxu0 0.0
        %2442 = vmatpush2.msra.mxu0 0.0
        %2443 = vmatprep.subr.mxu0 0.0
        %2444 = vmatpush2.msra.mxu0 0.0
        %2445 = vmatprep.subr.mxu0 0.0
        %2446 = vmatpush2.msra.mxu0 0.0
        %2447 = vmatprep.subr.mxu0 0.0
        %2448 = vmatpush2.msra.mxu0 0.0
        %2449 = vmatprep.subr.mxu0 0.0
        %2450 = vmatpush2.msra.mxu0 0.0
        %2451 = vmatprep.subr.mxu0 0.0
        %2452 = vmatpush2.msra.mxu0 0.0
        %2453 = vmatprep.subr.mxu0 0.0
        %2454 = vmatpush2.msra.mxu0 0.0
        %2455 = vmatprep.subr.mxu0 0.0
        %2456 = vmatpush2.msra.mxu0 0.0
        %2457 = vmatprep.subr.mxu0 0.0
        %2458 = vmatpush2.msra.mxu0 0.0
        %2459 = vmatprep.mubr.f32.mxu0 0.0
        %2460 = vmatmul.mubr.f32.gmra.mxu0 %v2393
        %v2461 = vpop.f32.mrf.mxu0
        %v2462 = vadd.f32 0.0, %v2461
        %v2463 = vpop.f32.mrf.mxu0
        %2464 = vdwg.mxu0
        %v2465 = vadd.f32 %v2380, %v2462
        %s2466 = scalar_lea.vmem %s5, 320
        %v2467 = vld [vmem:[%s2466] sm:$0xff]
        %v2468 = vld [vmem:[%s2466 + $0x8] sm:$0xff]
        %v2469 = vld [vmem:[%s2466 + $0x10] sm:$0xff]
        %v2470 = vld [vmem:[%s2466 + $0x18] sm:$0xff]
        %v2471 = vld [vmem:[%s2466 + $0x20] sm:$0xff]
        %v2472 = vld [vmem:[%s2466 + $0x28] sm:$0xff]
        %v2473 = vld [vmem:[%s2466 + $0x30] sm:$0xff]
        %v2474 = vld [vmem:[%s2466 + $0x38] sm:$0xff]
        %v2475 = vld [vmem:[%s2466 + $0x40] sm:$0xff]
        %v2476 = vld [vmem:[%s2466 + $0x48] sm:$0xff]
        %v2477 = vrot.slane %v2124, 4
        %v2478 = vsel %vm2136, %v2477, 0
        %2480 = vmatprep.subr.mxu0 0.0
        %2481 = vmatpush1.msra.mxu0 0.0
        %2482 = vmatprep.subr.mxu0 0.0
        %2483 = vmatpush1.msra.mxu0 0.0
        %2484 = vmatprep.subr.mxu0 0.0
        %2485 = vmatpush1.msra.mxu0 0.0
        %2486 = vmatprep.subr.mxu0 0.0
        %2487 = vmatpush1.msra.mxu0 0.0
        %2488 = vmatprep.subr.mxu0 0.0
        %2489 = vmatpush1.msra.mxu0 0.0
        %2490 = vmatprep.subr.mxu0 0.0
        %2491 = vmatpush1.msra.mxu0 0.0
        %2492 = vmatprep.subr.mxu0 0.0
        %2493 = vmatpush1.msra.mxu0 %v2476
        %2494 = vmatprep.subr.mxu0 0.0
        %2495 = vmatpush1.msra.mxu0 %v2475
        %2496 = vmatprep.subr.mxu0 0.0
        %2497 = vmatpush1.msra.mxu0 %v2474
        %2498 = vmatprep.subr.mxu0 0.0
        %2499 = vmatpush1.msra.mxu0 %v2473
        %2500 = vmatprep.subr.mxu0 0.0
        %2501 = vmatpush1.msra.mxu0 %v2472
        %2502 = vmatprep.subr.mxu0 0.0
        %2503 = vmatpush1.msra.mxu0 %v2471
        %2504 = vmatprep.subr.mxu0 0.0
        %2505 = vmatpush1.msra.mxu0 %v2470
        %2506 = vmatprep.subr.mxu0 0.0
        %2507 = vmatpush1.msra.mxu0 %v2469
        %2508 = vmatprep.subr.mxu0 0.0
        %2509 = vmatpush1.msra.mxu0 %v2468
        %2510 = vmatprep.subr.mxu0 0.0
        %2511 = vmatpush1.msra.mxu0 %v2467
        %2512 = vmatprep.subr.mxu0 0.0
        %2513 = vmatpush2.msra.mxu0 0.0
        %2514 = vmatprep.subr.mxu0 0.0
        %2515 = vmatpush2.msra.mxu0 0.0
        %2516 = vmatprep.subr.mxu0 0.0
        %2517 = vmatpush2.msra.mxu0 0.0
        %2518 = vmatprep.subr.mxu0 0.0
        %2519 = vmatpush2.msra.mxu0 0.0
        %2520 = vmatprep.subr.mxu0 0.0
        %2521 = vmatpush2.msra.mxu0 0.0
        %2522 = vmatprep.subr.mxu0 0.0
        %2523 = vmatpush2.msra.mxu0 0.0
        %2524 = vmatprep.subr.mxu0 0.0
        %2525 = vmatpush2.msra.mxu0 0.0
        %2526 = vmatprep.subr.mxu0 0.0
        %2527 = vmatpush2.msra.mxu0 0.0
        %2528 = vmatprep.subr.mxu0 0.0
        %2529 = vmatpush2.msra.mxu0 0.0
        %2530 = vmatprep.subr.mxu0 0.0
        %2531 = vmatpush2.msra.mxu0 0.0
        %2532 = vmatprep.subr.mxu0 0.0
        %2533 = vmatpush2.msra.mxu0 0.0
        %2534 = vmatprep.subr.mxu0 0.0
        %2535 = vmatpush2.msra.mxu0 0.0
        %2536 = vmatprep.subr.mxu0 0.0
        %2537 = vmatpush2.msra.mxu0 0.0
        %2538 = vmatprep.subr.mxu0 0.0
        %2539 = vmatpush2.msra.mxu0 0.0
        %2540 = vmatprep.subr.mxu0 0.0
        %2541 = vmatpush2.msra.mxu0 0.0
        %2542 = vmatprep.subr.mxu0 0.0
        %2543 = vmatpush2.msra.mxu0 0.0
        %2544 = vmatprep.mubr.f32.mxu0 0.0
        %2545 = vmatmul.mubr.f32.gmra.mxu0 %v2478
        %v2546 = vpop.f32.mrf.mxu0
        %v2547 = vadd.f32 0.0, %v2546
        %v2548 = vpop.f32.mrf.mxu0
        %2549 = vdwg.mxu0
        %v2550 = vadd.f32 %v2465, %v2547
        %v2551 = vld [vmem:[%s7] sm:$0xff]
        %v2552 = vld [vmem:[%s7 + $0x8] sm:$0xff]
        %v2553 = vld [vmem:[%s7 + $0x10] sm:$0xff]
        %v2554 = vld [vmem:[%s7 + $0x18] sm:$0xff]
        %v2555 = vld [vmem:[%s7 + $0x20] sm:$0xff]
        %v2556 = vld [vmem:[%s7 + $0x28] sm:$0xff]
        %v2557 = vld [vmem:[%s7 + $0x30] sm:$0xff]
        %v2558 = vld [vmem:[%s7 + $0x38] sm:$0xff]
        %v2559 = vld [vmem:[%s7 + $0x40] sm:$0xff]
        %v2560 = vld [vmem:[%s7 + $0x48] sm:$0xff]
        %v2561 = vld [vmem:[%s7 + $0x50] sm:$0xff]
        %v2562 = vld [vmem:[%s7 + $0x58] sm:$0xff]
        %v2563 = vld [vmem:[%s7 + $0x60] sm:$0xff]
        %v2564 = vld [vmem:[%s7 + $0x68] sm:$0xff]
        %v2565 = vld [vmem:[%s7 + $0x70] sm:$0xff]
        %v2566 = vld [vmem:[%s8] sm:$0x1]
        %vm2567 = vcmask 982016
        %v2569 = vsel %vm2567, %v2550, 0
        %2571 = vmatprep.subr.mxu0 0.0
        %2572 = vmatpush1.msra.mxu0 0.0
        %2573 = vmatprep.subr.mxu0 0.0
        %2574 = vmatpush1.msra.mxu0 %v2565
        %2575 = vmatprep.subr.mxu0 0.0
        %2576 = vmatpush1.msra.mxu0 %v2564
        %2577 = vmatprep.subr.mxu0 0.0
        %2578 = vmatpush1.msra.mxu0 %v2563
        %2579 = vmatprep.subr.mxu0 0.0
        %2580 = vmatpush1.msra.mxu0 %v2562
        %2581 = vmatprep.subr.mxu0 0.0
        %2582 = vmatpush1.msra.mxu0 %v2561
        %2583 = vmatprep.subr.mxu0 0.0
        %2584 = vmatpush1.msra.mxu0 %v2560
        %2585 = vmatprep.subr.mxu0 0.0
        %2586 = vmatpush1.msra.mxu0 %v2559
        %2587 = vmatprep.subr.mxu0 0.0
        %2588 = vmatpush1.msra.mxu0 %v2558
        %2589 = vmatprep.subr.mxu0 0.0
        %2590 = vmatpush1.msra.mxu0 %v2557
        %2591 = vmatprep.subr.mxu0 0.0
        %2592 = vmatpush1.msra.mxu0 %v2556
        %2593 = vmatprep.subr.mxu0 0.0
        %2594 = vmatpush1.msra.mxu0 %v2555
        %2595 = vmatprep.subr.mxu0 0.0
        %2596 = vmatpush1.msra.mxu0 %v2554
        %2597 = vmatprep.subr.mxu0 0.0
        %2598 = vmatpush1.msra.mxu0 %v2553
        %2599 = vmatprep.subr.mxu0 0.0
        %2600 = vmatpush1.msra.mxu0 %v2552
        %2601 = vmatprep.subr.mxu0 0.0
        %2602 = vmatpush1.msra.mxu0 %v2551
        %2603 = vmatprep.subr.mxu0 0.0
        %2604 = vmatpush2.msra.mxu0 0.0
        %2605 = vmatprep.subr.mxu0 0.0
        %2606 = vmatpush2.msra.mxu0 0.0
        %2607 = vmatprep.subr.mxu0 0.0
        %2608 = vmatpush2.msra.mxu0 0.0
        %2609 = vmatprep.subr.mxu0 0.0
        %2610 = vmatpush2.msra.mxu0 0.0
        %2611 = vmatprep.subr.mxu0 0.0
        %2612 = vmatpush2.msra.mxu0 0.0
        %2613 = vmatprep.subr.mxu0 0.0
        %2614 = vmatpush2.msra.mxu0 0.0
        %2615 = vmatprep.subr.mxu0 0.0
        %2616 = vmatpush2.msra.mxu0 0.0
        %2617 = vmatprep.subr.mxu0 0.0
        %2618 = vmatpush2.msra.mxu0 0.0
        %2619 = vmatprep.subr.mxu0 0.0
        %2620 = vmatpush2.msra.mxu0 0.0
        %2621 = vmatprep.subr.mxu0 0.0
        %2622 = vmatpush2.msra.mxu0 0.0
        %2623 = vmatprep.subr.mxu0 0.0
        %2624 = vmatpush2.msra.mxu0 0.0
        %2625 = vmatprep.subr.mxu0 0.0
        %2626 = vmatpush2.msra.mxu0 0.0
        %2627 = vmatprep.subr.mxu0 0.0
        %2628 = vmatpush2.msra.mxu0 0.0
        %2629 = vmatprep.subr.mxu0 0.0
        %2630 = vmatpush2.msra.mxu0 0.0
        %2631 = vmatprep.subr.mxu0 0.0
        %2632 = vmatpush2.msra.mxu0 0.0
        %2633 = vmatprep.subr.mxu0 0.0
        %2634 = vmatpush2.msra.mxu0 0.0
        %2635 = vmatprep.mubr.f32.mxu0 0.0
        %2636 = vmatmul.mubr.f32.gmra.mxu0 %v2569
        %v2637 = vpop.f32.mrf.mxu0
        %v2638 = vadd.f32 %v2566, %v2637
        %v2639 = vpop.f32.mrf.mxu0
        %2640 = vdwg.mxu0
        %v2641 = vld [vmem:[%s9] sm:$0xff]
        %v2642 = vld [vmem:[%s9 + $0x8] sm:$0xff]
        %v2643 = vld [vmem:[%s9 + $0x10] sm:$0xff]
        %v2644 = vld [vmem:[%s9 + $0x18] sm:$0xff]
        %v2645 = vld [vmem:[%s9 + $0x20] sm:$0xff]
        %v2646 = vld [vmem:[%s9 + $0x28] sm:$0xff]
        %v2647 = vld [vmem:[%s9 + $0x30] sm:$0xff]
        %v2648 = vld [vmem:[%s9 + $0x38] sm:$0xff]
        %v2649 = vld [vmem:[%s9 + $0x40] sm:$0xff]
        %v2650 = vld [vmem:[%s9 + $0x48] sm:$0xff]
        %v2651 = vld [vmem:[%s9 + $0x50] sm:$0xf]
        %v2652 = vld [vmem:[%s10] sm:$0x1]
        %v2654 = vsel %vm1281, %v2638, 0
        %v2657 = vsel %vm796, %v2651, 0
        %2659 = vmatprep.subr.mxu0 0.0
        %2660 = vmatpush1.msra.mxu0 0.0
        %2661 = vmatprep.subr.mxu0 0.0
        %2662 = vmatpush1.msra.mxu0 0.0
        %2663 = vmatprep.subr.mxu0 0.0
        %2664 = vmatpush1.msra.mxu0 0.0
        %2665 = vmatprep.subr.mxu0 0.0
        %2666 = vmatpush1.msra.mxu0 0.0
        %2667 = vmatprep.subr.mxu0 0.0
        %2668 = vmatpush1.msra.mxu0 0.0
        %2669 = vmatprep.subr.mxu0 0.0
        %2670 = vmatpush1.msra.mxu0 %v2657
        %2671 = vmatprep.subr.mxu0 0.0
        %2672 = vmatpush1.msra.mxu0 %v2650
        %2673 = vmatprep.subr.mxu0 0.0
        %2674 = vmatpush1.msra.mxu0 %v2649
        %2675 = vmatprep.subr.mxu0 0.0
        %2676 = vmatpush1.msra.mxu0 %v2648
        %2677 = vmatprep.subr.mxu0 0.0
        %2678 = vmatpush1.msra.mxu0 %v2647
        %2679 = vmatprep.subr.mxu0 0.0
        %2680 = vmatpush1.msra.mxu0 %v2646
        %2681 = vmatprep.subr.mxu0 0.0
        %2682 = vmatpush1.msra.mxu0 %v2645
        %2683 = vmatprep.subr.mxu0 0.0
        %2684 = vmatpush1.msra.mxu0 %v2644
        %2685 = vmatprep.subr.mxu0 0.0
        %2686 = vmatpush1.msra.mxu0 %v2643
        %2687 = vmatprep.subr.mxu0 0.0
        %2688 = vmatpush1.msra.mxu0 %v2642
        %2689 = vmatprep.subr.mxu0 0.0
        %2690 = vmatpush1.msra.mxu0 %v2641
        %2691 = vmatprep.subr.mxu0 0.0
        %2692 = vmatpush2.msra.mxu0 0.0
        %2693 = vmatprep.subr.mxu0 0.0
        %2694 = vmatpush2.msra.mxu0 0.0
        %2695 = vmatprep.subr.mxu0 0.0
        %2696 = vmatpush2.msra.mxu0 0.0
        %2697 = vmatprep.subr.mxu0 0.0
        %2698 = vmatpush2.msra.mxu0 0.0
        %2699 = vmatprep.subr.mxu0 0.0
        %2700 = vmatpush2.msra.mxu0 0.0
        %2701 = vmatprep.subr.mxu0 0.0
        %2702 = vmatpush2.msra.mxu0 0.0
        %2703 = vmatprep.subr.mxu0 0.0
        %2704 = vmatpush2.msra.mxu0 0.0
        %2705 = vmatprep.subr.mxu0 0.0
        %2706 = vmatpush2.msra.mxu0 0.0
        %2707 = vmatprep.subr.mxu0 0.0
        %2708 = vmatpush2.msra.mxu0 0.0
        %2709 = vmatprep.subr.mxu0 0.0
        %2710 = vmatpush2.msra.mxu0 0.0
        %2711 = vmatprep.subr.mxu0 0.0
        %2712 = vmatpush2.msra.mxu0 0.0
        %2713 = vmatprep.subr.mxu0 0.0
        %2714 = vmatpush2.msra.mxu0 0.0
        %2715 = vmatprep.subr.mxu0 0.0
        %2716 = vmatpush2.msra.mxu0 0.0
        %2717 = vmatprep.subr.mxu0 0.0
        %2718 = vmatpush2.msra.mxu0 0.0
        %2719 = vmatprep.subr.mxu0 0.0
        %2720 = vmatpush2.msra.mxu0 0.0
        %2721 = vmatprep.subr.mxu0 0.0
        %2722 = vmatpush2.msra.mxu0 0.0
        %2723 = vmatprep.mubr.f32.mxu0 0.0
        %2724 = vmatmul.mubr.f32.gmra.mxu0 %v2654
        %v2725 = vpop.f32.mrf.mxu0
        %v2726 = vadd.f32 %v2652, %v2725
        %v2727 = vpop.f32.mrf.mxu0
        %2728 = vdwg.mxu0
        %vm2729 = vcmask 73728
        %2730 = vst.msk [vmem:[%s378] sm:$0x1] %vm2729, %v2726
        %s2731 = sand.u32 %s269, 1
        %s2732 = scalar_lea.sflag [#allocation3], %s2731
        %s2733 = sand.u32 %s269, 1
        %s2734 = scalar_lea.vmem [#allocation2], %s2733
        // Predicated region
        $region65: #{lenet_forward.1} parent=63 // pred_check
          %p2735 = pneg %p279
        $region66: #{lenet_forward.1} parent=63 // pred_check_branch
          %2737 = sbr.rel (%p2735) target = $region68
        $region67: #{lenet_forward.1} parent=63 // pred_region
          %s2739 = ssub.s32 16, 16
          %2740 = vsyncadd %s2732, %s2739
          %s2741 = smul.addr %s25, 16
          %s2742 = scalar_lea.hbm %s11, %s2741
          %s2744 = sshll.u32 %s2734, 4
          %s2745 = int_to_ptr.vmem [resolvable:$true] %s2744
          %2747 = dma.vmem_to_hbm [thread:$0]  %s2745, 16, %s2742, %s2732
        $region68: #{lenet_forward.1} parent=63 // pred_fallthru
          _
      $region64: #{lenet_forward.1} parent=5 // pred_fallthru
        _
      %p2748 = scmp.le.s32.totalorder 2, %s20
      // Predicated region
      $region69: #{lenet_forward.1} parent=5 // pred_check
        %p2749 = pneg %p2748
      $region70: #{lenet_forward.1} parent=5 // pred_check_branch
        %2751 = sbr.rel (%p2749) target = $region72
      $region71: #{lenet_forward.1} parent=5 // pred_region
        %s2752 = ssub.s32 %s20, 2
        // Predicated region
        $region73: #{lenet_forward.1} parent=71 // pred_check
          %p2753 = pneg %p285
        $region74: #{lenet_forward.1} parent=71 // pred_check_branch
          %2755 = sbr.rel (%p2753) target = $region76
        $region75: #{lenet_forward.1} parent=71 // pred_region
          %s2756 = sand.u32 %s270, 1
          %s2757 = scalar_lea.sflag [#allocation3], %s2756
          %s2758 = sand.u32 %s270, 1
          %s2759 = scalar_lea.vmem [#allocation2], %s2758
          %2760 = dma.done %s2757, 16
        $region76: #{lenet_forward.1} parent=71 // pred_fallthru
          _
      $region72: #{lenet_forward.1} parent=5 // pred_fallthru
        _
    $region6: #{lenet_forward.1} parent=1 // loop_footer
      %s24 = sadd.s32 1, %s20
    $region7: #{lenet_forward.1} parent=1 // loop_footer_branch
      %19 = sbr.rel target = $region3
    $region8: #{lenet_forward.1} parent=1 // loop_exit
      _
    %2761 = vsyncpa [#allocation3], 1
    %s2762 = scalar_lea.sflag [#allocation3], 1
    %2763 = vsyncpa %s2762, 1

</llo_original>
